<compile_context>
chip_gen: v6e
topology: v6e:2x2x1
jax: 0.10.0
libtpu: 0.0.40
codegen_flags: <defaults>
</compile_context>

<pallas_src>
import jax
import jax.numpy as jnp
from jax.experimental import pallas as pl
from jax.experimental.pallas import tpu as pltpu

# ---------------- configuration (small but faithful to the module) ----------
B = 8            # batch (fills all 8 f32 sublanes per weight fetch)
S = 8            # text sequence length
HID = 128        # text_config.hidden_size (small BERT-like hidden)
VOCAB = 1000
IMG_C, IMG_H, IMG_W = 3, 56, 56   # stand-in image (backbone reduces to 7x7)
FEAT_C = 2048    # resnet50 backbone channels (hardcoded in module)
PROJ = 1024      # projector width (hardcoded in module)
FC1 = 256        # fc hidden (hardcoded in module)
OUT_DIM = 1      # out_dim (module default)
BN_EPS = 1e-5
L2_EPS = 1e-12   # F.normalize default eps

TK = 512                 # K-tile of the projector (2048x1024) matmul
KT = FEAT_C // TK        # grid length


# ---------------- Pallas kernel: the fused head ------------------------------
def head_kernel(text_ref,            # (B, HID)   bf16  first-token hidden
                img_ref,             # (B, TK)    bf16  pooled+normalized feat tile
                wp_ref, bp_ref,      # Pooler Linear: (HID,HID) bf16, (1,HID) f32
                w1_ref, b1_ref,      # projector (BN folded): (TK,PROJ) bf16, (1,PROJ) f32
                w2t_ref, w2i_ref,    # fc[0] split (BN folded): (HID,FC1), (PROJ,FC1) bf16
                b2_ref,              # (1, FC1) f32
                w3_ref, b3_ref,      # fc[4]: (OUT_DIM,FC1) f32 lane-dense, (1,OUT_DIM) f32
                out_ref,             # (B, OUT_DIM) f32
                acc_ref):            # scratch (B, PROJ) f32 accumulator
    k = pl.program_id(0)

    @pl.when(k == 0)
    def _():
        acc_ref[...] = jnp.zeros_like(acc_ref)

    # Stream one (B,TK)x(TK,PROJ) slice of the projector matmul (bf16 MXU,
    # f32 accumulation); the next weight tile DMA overlaps this compute.
    acc_ref[...] += jnp.dot(img_ref[...], w1_ref[...],
                            preferred_element_type=jnp.float32)

    @pl.when(k == pl.num_programs(0) - 1)
    def _():
        # ---- text branch: Pooler = tanh(Linear(first_token)), math in f32 ----
        pooled = jnp.tanh(
            jnp.dot(text_ref[...], wp_ref[...],
                    preferred_element_type=jnp.float32) + bp_ref[...])    # (B, HID)

        # ---- projector epilogue: BN1d folded into (w1,b1); ReLU; Dropout=id ----
        h = jnp.maximum(acc_ref[...] + b1_ref[...], 0.0)                  # (B, PROJ)

        # ---- fc[0]: cat(text, image) @ w2 == pooled @ w2t + h @ w2i ----
        z = (jnp.dot(pooled.astype(jnp.bfloat16), w2t_ref[...],
                     preferred_element_type=jnp.float32)
             + jnp.dot(h.astype(jnp.bfloat16), w2i_ref[...],
                       preferred_element_type=jnp.float32)
             + b2_ref[...])
        z = jnp.maximum(z, 0.0)                                           # (B, FC1)

        # ---- fc[4]: Linear(256, out_dim=1) as lane-dense VPU mul + reduction ----
        out_ref[...] = (jnp.sum(z * w3_ref[...], axis=-1, keepdims=True)
                        + b3_ref[...])


# ---------------- stand-in frozen backbones (plain JAX glue) ------------------
def synth_text_encoder(input_ids, attention_mask, emb_table):
    # TODO(synk): frozen pretrained BERT (AutoModel) cannot be reproduced here;
    # deterministic embedding-lookup stand-in producing (B, S, HID).
    h = emb_table[input_ids]                                      # (B, S, HID)
    return h * attention_mask[..., None].astype(h.dtype)


def synth_resnet_backbone(image, chan_proj):
    # TODO(synk): frozen pretrained ResNet-50 backbone cannot be reproduced here;
    # stand-in = average pooling to a 7x7 grid + 1x1 channel projection 3->2048.
    b, c, hh, ww = image.shape
    x = image.reshape(b, c, 7, hh // 7, 7, ww // 7).mean(axis=(3, 5))  # (B,3,7,7)
    x = jnp.einsum('bchw,cd->bdhw', x, chan_proj)                      # (B,2048,7,7)
    return x


# ---------------- host-side weight prep (BN folding, bf16, splits) -----------
# Runs ONCE outside the jitted forward -> no per-call re-folding / re-casting.
def prepare_params(p):
    f32 = jnp.float32
    bf16 = jnp.bfloat16
    # Fold BatchNorm1d(1024) into projector Linear (inference stats => exact).
    s1 = p['g1'] * jax.lax.rsqrt(p['v1'] + BN_EPS)                 # (1, PROJ)
    w1f = (p['w1'] * s1).astype(bf16)                              # (FEAT_C, PROJ)
    b1f = ((p['b1'] - p['m1']) * s1 + p['be1']).astype(f32)        # (1, PROJ)
    # Fold BatchNorm1d(256) into fc[0] Linear, then split text/image rows.
    s2 = p['g2'] * jax.lax.rsqrt(p['v2'] + BN_EPS)                 # (1, FC1)
    w2f = p['w2'] * s2                                             # (HID+PROJ, FC1)
    b2f = ((p['b2'] - p['m2']) * s2 + p['be2']).astype(f32)        # (1, FC1)
    return {
        # frozen stand-in backbones
        'emb': p['emb'], 'chan_proj': p['chan_proj'],
        # head
        'wp': p['wp'].astype(bf16), 'bp': p['bp'].astype(f32),
        'w1': w1f, 'b1': b1f,
        'w2t': w2f[:HID].astype(bf16), 'w2i': w2f[HID:].astype(bf16), 'b2': b2f,
        # lane-dense final-layer weight (VPU path assumes out_dim == 1, the default)
        'w3': p['w3'].T.astype(f32),                               # (OUT_DIM, FC1)
        'b3': p['b3'].astype(f32),                                 # (1, OUT_DIM)
    }


# ---------------- wrapper ----------------------------------------------------
@jax.jit
def multi_model_forward(input_ids, attention_mask, image, hp):
    # frozen feature extractors (plain JAX glue)
    text_hidden = synth_text_encoder(input_ids, attention_mask, hp['emb'])  # (B,S,HID)
    out_7x7 = synth_resnet_backbone(image, hp['chan_proj'])                 # (B,2048,7,7)

    text_first = text_hidden[:, 0, :].astype(jnp.bfloat16)                  # (B, HID)

    # AdaptiveAvgPool2d((1,1)) + F.normalize in f32 in the wrapper; the kernel
    # then streams only a (B, 2048) bf16 feature row (16 KB) into VMEM.
    img = out_7x7.mean(axis=(2, 3))                                         # (B, 2048)
    img = img / jnp.maximum(
        jnp.sqrt(jnp.sum(img * img, axis=-1, keepdims=True)), L2_EPS)
    img = img.astype(jnp.bfloat16)

    grid_spec = pltpu.PrefetchScalarGridSpec(
        num_scalar_prefetch=0,
        grid=(KT,),
        in_specs=[
            pl.BlockSpec((B, HID), lambda k: (0, 0)),        # text (resident)
            pl.BlockSpec((B, TK), lambda k: (0, k)),         # img feature K-tile
            pl.BlockSpec((HID, HID), lambda k: (0, 0)),      # wp
            pl.BlockSpec((1, HID), lambda k: (0, 0)),        # bp
            pl.BlockSpec((TK, PROJ), lambda k: (k, 0)),      # w1 K-tile (streamed)
            pl.BlockSpec((1, PROJ), lambda k: (0, 0)),       # b1 (BN1 folded)
            pl.BlockSpec((HID, FC1), lambda k: (0, 0)),      # w2 text rows
            pl.BlockSpec((PROJ, FC1), lambda k: (0, 0)),     # w2 image rows
            pl.BlockSpec((1, FC1), lambda k: (0, 0)),        # b2 (BN2 folded)
            pl.BlockSpec((OUT_DIM, FC1), lambda k: (0, 0)),  # w3 lane-dense
            pl.BlockSpec((1, OUT_DIM), lambda k: (0, 0)),    # b3
        ],
        out_specs=pl.BlockSpec((B, OUT_DIM), lambda k: (0, 0)),
        scratch_shapes=[pltpu.VMEM((B, PROJ), jnp.float32)],
    )

    out = pl.pallas_call(
        head_kernel,
        out_shape=jax.ShapeDtypeStruct((B, OUT_DIM), jnp.float32),
        grid_spec=grid_spec,
        compiler_params=pltpu.CompilerParams(
            dimension_semantics=("arbitrary",),          # K axis is a reduction
            vmem_limit_bytes=32 * 1024 * 1024),          # fits v5e/v6e/v7x (<=64 MiB)
    )(text_first, img,
      hp['wp'], hp['bp'], hp['w1'], hp['b1'],
      hp['w2t'], hp['w2i'], hp['b2'], hp['w3'], hp['b3'])
    return out


def reference_forward(input_ids, attention_mask, image, hp):
    """Pure-JAX reference of the same head (same bf16 / folded weights)."""
    text_hidden = synth_text_encoder(input_ids, attention_mask, hp['emb'])
    out_7x7 = synth_resnet_backbone(image, hp['chan_proj'])

    text_first = text_hidden[:, 0, :].astype(jnp.bfloat16)
    pooled = jnp.tanh(jnp.dot(text_first, hp['wp'],
                              preferred_element_type=jnp.float32) + hp['bp'])

    img = out_7x7.mean(axis=(2, 3))
    img = img / jnp.maximum(
        jnp.sqrt(jnp.sum(img * img, axis=-1, keepdims=True)), L2_EPS)
    img = img.astype(jnp.bfloat16)

    h = jnp.maximum(jnp.dot(img, hp['w1'],
                            preferred_element_type=jnp.float32) + hp['b1'], 0.0)
    z = (jnp.dot(pooled.astype(jnp.bfloat16), hp['w2t'],
                 preferred_element_type=jnp.float32)
         + jnp.dot(h.astype(jnp.bfloat16), hp['w2i'],
                   preferred_element_type=jnp.float32)
         + hp['b2'])
    z = jnp.maximum(z, 0.0)
    return jnp.sum(z * hp['w3'], axis=-1, keepdims=True) + hp['b3']


def init_params(key):
    names = ['emb', 'chan_proj', 'wp', 'bp', 'w1', 'b1', 'g1', 'be1', 'm1', 'v1',
             'w2', 'b2', 'g2', 'be2', 'm2', 'v2', 'w3', 'b3']
    ks = dict(zip(names, jax.random.split(key, len(names))))
    f32 = jnp.float32

    def w(k, shape, scale=0.02):
        return (scale * jax.random.normal(k, shape)).astype(f32)

    params = {
        # stand-in backbones
        'emb': w(ks['emb'], (VOCAB, HID), 0.05),
        'chan_proj': w(ks['chan_proj'], (IMG_C, FEAT_C), 0.1),
        # Pooler
        'wp': w(ks['wp'], (HID, HID)), 'bp': w(ks['bp'], (1, HID)),
        # projector Linear(2048,1024) + BN(1024)
        'w1': w(ks['w1'], (FEAT_C, PROJ)), 'b1': w(ks['b1'], (1, PROJ)),
        'g1': (1.0 + 0.1 * jax.random.normal(ks['g1'], (1, PROJ))).astype(f32),
        'be1': w(ks['be1'], (1, PROJ), 0.01),
        'm1': w(ks['m1'], (1, PROJ), 0.01),
        'v1': (1.0 + 0.1 * jnp.abs(jax.random.normal(ks['v1'], (1, PROJ)))).astype(f32),
        # fc[0] Linear(HID+1024, 256) + BN(256)
        'w2': w(ks['w2'], (HID + PROJ, FC1)), 'b2': w(ks['b2'], (1, FC1)),
        'g2': (1.0 + 0.1 * jax.random.normal(ks['g2'], (1, FC1))).astype(f32),
        'be2': w(ks['be2'], (1, FC1), 0.01),
        'm2': w(ks['m2'], (1, FC1), 0.01),
        'v2': (1.0 + 0.1 * jnp.abs(jax.random.normal(ks['v2'], (1, FC1)))).astype(f32),
        # fc[4] Linear(256, out_dim)
        'w3': w(ks['w3'], (FC1, OUT_DIM)), 'b3': w(ks['b3'], (1, OUT_DIM)),
    }
    return params


if __name__ == "__main__":
    key = jax.random.PRNGKey(0)
    k_ids, k_img, k_par = jax.random.split(key, 3)

    input_ids = jax.random.randint(k_ids, (B, S), 0, VOCAB, dtype=jnp.int32)
    attention_mask = jnp.ones((B, S), dtype=jnp.int32)
    image = jax.random.normal(k_img, (B, IMG_C, IMG_H, IMG_W), dtype=jnp.float32)

    params = init_params(k_par)
    head_params = jax.tree_util.tree_map(
        jax.block_until_ready, prepare_params(params))   # one-time weight prep

    out = jax.block_until_ready(
        multi_model_forward(input_ids, attention_mask, image, head_params))
    assert out.shape == (B, OUT_DIM), out.shape

    ref = reference_forward(input_ids, attention_mask, image, head_params)
    assert jnp.allclose(out, ref, rtol=1e-3, atol=1e-3), (out, ref)

    print("KERNEL_OK")
</pallas_src>

<mosaic_0001>
module attributes {stable_mosaic.version = 11 : i64} {
  func.func @head_kernel(%arg0: i32, %arg1: memref<8x128xbf16, #tpu.memory_space<vmem>>, %arg2: memref<8x512xbf16, #tpu.memory_space<vmem>>, %arg3: memref<128x128xbf16, #tpu.memory_space<vmem>>, %arg4: memref<1x128xf32, #tpu.memory_space<vmem>>, %arg5: memref<512x1024xbf16, #tpu.memory_space<vmem>>, %arg6: memref<1x1024xf32, #tpu.memory_space<vmem>>, %arg7: memref<128x256xbf16, #tpu.memory_space<vmem>>, %arg8: memref<1024x256xbf16, #tpu.memory_space<vmem>>, %arg9: memref<1x256xf32, #tpu.memory_space<vmem>>, %arg10: memref<1x256xf32, #tpu.memory_space<vmem>>, %arg11: memref<1x1xf32, #tpu.memory_space<vmem>>, %arg12: memref<8x1xf32, #tpu.memory_space<vmem>>, %arg13: memref<8x1024xf32, #tpu.memory_space<vmem>>) attributes {dimension_semantics = [#tpu.dimension_semantics<arbitrary>], iteration_bounds = array<i64: 4>, scalar_prefetch = 0 : i64, scratch_operands = 1 : i64, tpu.core_type = #tpu.core_type<tc>, window_params = [{pipeline_mode = #tpu.pipeline_mode<synchronous>, transform_indices = @transform_0, window_bounds = array<i64: 8, 128>}, {transform_indices = @transform_1, window_bounds = array<i64: 8, 512>}, {pipeline_mode = #tpu.pipeline_mode<synchronous>, transform_indices = @transform_2, window_bounds = array<i64: 128, 128>}, {pipeline_mode = #tpu.pipeline_mode<synchronous>, transform_indices = @transform_3, window_bounds = array<i64: 1, 128>}, {transform_indices = @transform_4, window_bounds = array<i64: 512, 1024>}, {pipeline_mode = #tpu.pipeline_mode<synchronous>, transform_indices = @transform_5, window_bounds = array<i64: 1, 1024>}, {pipeline_mode = #tpu.pipeline_mode<synchronous>, transform_indices = @transform_6, window_bounds = array<i64: 128, 256>}, {pipeline_mode = #tpu.pipeline_mode<synchronous>, transform_indices = @transform_7, window_bounds = array<i64: 1024, 256>}, {pipeline_mode = #tpu.pipeline_mode<synchronous>, transform_indices = @transform_8, window_bounds = array<i64: 1, 256>}, {pipeline_mode = #tpu.pipeline_mode<synchronous>, transform_indices = @transform_9, window_bounds = array<i64: 1, 256>}, {pipeline_mode = #tpu.pipeline_mode<synchronous>, transform_indices = @transform_10, window_bounds = array<i64: 1, 1>}, {pipeline_mode = #tpu.pipeline_mode<synchronous>, transform_indices = @transform_11, window_bounds = array<i64: 8, 1>}]} {
    %c0_i32 = arith.constant 0 : i32
    %0 = arith.cmpi eq, %arg0, %c0_i32 : i32
    %1 = arith.extui %0 : i1 to i32
    %c0_i32_0 = arith.constant 0 : i32
    %2 = arith.cmpi ne, %1, %c0_i32_0 : i32
    scf.if %2 {
      %cst_9 = arith.constant 0.000000e+00 : f32
      %12 = vector.broadcast %cst_9 : f32 to vector<8x1024xf32>
      %c0_10 = arith.constant 0 : index
      %c0_11 = arith.constant 0 : index
      %13 = vector.load %arg13[%c0_10, %c0_11] : memref<8x1024xf32, #tpu.memory_space<vmem>>, vector<8x1024xf32>
      tpu.vector_store %arg13[%c0_10, %c0_11], %12 {strides = array<i32>} : memref<8x1024xf32, #tpu.memory_space<vmem>>, vector<8x1024xf32>,
    } else {
    }
    %c0 = arith.constant 0 : index
    %c0_1 = arith.constant 0 : index
    %3 = vector.load %arg13[%c0, %c0_1] : memref<8x1024xf32, #tpu.memory_space<vmem>>, vector<8x1024xf32>
    %c0_2 = arith.constant 0 : index
    %c0_3 = arith.constant 0 : index
    %4 = vector.load %arg2[%c0_2, %c0_3] : memref<8x512xbf16, #tpu.memory_space<vmem>>, vector<8x512xbf16>
    %c0_4 = arith.constant 0 : index
    %c0_5 = arith.constant 0 : index
    %5 = vector.load %arg5[%c0_4, %c0_5] : memref<512x1024xbf16, #tpu.memory_space<vmem>>, vector<512x1024xbf16>
    %cst = arith.constant dense<0.000000e+00> : vector<8x1024xf32>
    %6 = tpu.matmul %4, %5, %cst {dimension_numbers = #tpu.dot_dimension_numbers<[1], [0], [0], [1], [0, 0, 1, 1], [], []>} : vector<8x512xbf16>, vector<512x1024xbf16>, vector<8x1024xf32> -> vector<8x1024xf32>
    %7 = arith.addf %3, %6 : vector<8x1024xf32>
    %c0_6 = arith.constant 0 : index
    %c0_7 = arith.constant 0 : index
    %8 = vector.load %arg13[%c0_6, %c0_7] : memref<8x1024xf32, #tpu.memory_space<vmem>>, vector<8x1024xf32>
    tpu.vector_store %arg13[%c0_6, %c0_7], %7 {strides = array<i32>} : memref<8x1024xf32, #tpu.memory_space<vmem>>, vector<8x1024xf32>,
    %c3_i32 = arith.constant 3 : i32
    %9 = arith.cmpi eq, %arg0, %c3_i32 : i32
    %10 = arith.extui %9 : i1 to i32
    %c0_i32_8 = arith.constant 0 : i32
    %11 = arith.cmpi ne, %10, %c0_i32_8 : i32
    scf.if %11 {
      %c0_9 = arith.constant 0 : index
      %c0_10 = arith.constant 0 : index
      %12 = vector.load %arg1[%c0_9, %c0_10] : memref<8x128xbf16, #tpu.memory_space<vmem>>, vector<8x128xbf16>
      %c0_11 = arith.constant 0 : index
      %c0_12 = arith.constant 0 : index
      %13 = vector.load %arg3[%c0_11, %c0_12] : memref<128x128xbf16, #tpu.memory_space<vmem>>, vector<128x128xbf16>
      %cst_13 = arith.constant dense<0.000000e+00> : vector<8x128xf32>
      %14 = tpu.matmul %12, %13, %cst_13 {dimension_numbers = #tpu.dot_dimension_numbers<[1], [0], [0], [1], [0, 0, 1, 1], [], []>} : vector<8x128xbf16>, vector<128x128xbf16>, vector<8x128xf32> -> vector<8x128xf32>
      %c0_14 = arith.constant 0 : index
      %c0_15 = arith.constant 0 : index
      %15 = vector.load %arg4[%c0_14, %c0_15] : memref<1x128xf32, #tpu.memory_space<vmem>>, vector<1x128xf32>
      %16 = vector.broadcast %15 : vector<1x128xf32> to vector<8x128xf32>
      %17 = arith.addf %14, %16 : vector<8x128xf32>
      %18 = math.tanh %17 : vector<8x128xf32>
      %c0_16 = arith.constant 0 : index
      %c0_17 = arith.constant 0 : index
      %19 = vector.load %arg13[%c0_16, %c0_17] : memref<8x1024xf32, #tpu.memory_space<vmem>>, vector<8x1024xf32>
      %c0_18 = arith.constant 0 : index
      %c0_19 = arith.constant 0 : index
      %20 = vector.load %arg6[%c0_18, %c0_19] : memref<1x1024xf32, #tpu.memory_space<vmem>>, vector<1x1024xf32>
      %21 = vector.broadcast %20 : vector<1x1024xf32> to vector<8x1024xf32>
      %22 = arith.addf %19, %21 : vector<8x1024xf32>
      %cst_20 = arith.constant 0.000000e+00 : f32
      %23 = vector.broadcast %cst_20 : f32 to vector<8x1024xf32>
      %24 = arith.maximumf %22, %23 : vector<8x1024xf32>
      %25 = arith.truncf %18 : vector<8x128xf32> to vector<8x128xbf16>
      %c0_21 = arith.constant 0 : index
      %c0_22 = arith.constant 0 : index
      %26 = vector.load %arg7[%c0_21, %c0_22] : memref<128x256xbf16, #tpu.memory_space<vmem>>, vector<128x256xbf16>
      %cst_23 = arith.constant dense<0.000000e+00> : vector<8x256xf32>
      %27 = tpu.matmul %25, %26, %cst_23 {dimension_numbers = #tpu.dot_dimension_numbers<[1], [0], [0], [1], [0, 0, 1, 1], [], []>} : vector<8x128xbf16>, vector<128x256xbf16>, vector<8x256xf32> -> vector<8x256xf32>
      %28 = arith.truncf %24 : vector<8x1024xf32> to vector<8x1024xbf16>
      %c0_24 = arith.constant 0 : index
      %c0_25 = arith.constant 0 : index
      %29 = vector.load %arg8[%c0_24, %c0_25] : memref<1024x256xbf16, #tpu.memory_space<vmem>>, vector<1024x256xbf16>
      %cst_26 = arith.constant dense<0.000000e+00> : vector<8x256xf32>
      %30 = tpu.matmul %28, %29, %cst_26 {dimension_numbers = #tpu.dot_dimension_numbers<[1], [0], [0], [1], [0, 0, 1, 1], [], []>} : vector<8x1024xbf16>, vector<1024x256xbf16>, vector<8x256xf32> -> vector<8x256xf32>
      %31 = arith.addf %27, %30 : vector<8x256xf32>
      %c0_27 = arith.constant 0 : index
      %c0_28 = arith.constant 0 : index
      %32 = vector.load %arg9[%c0_27, %c0_28] : memref<1x256xf32, #tpu.memory_space<vmem>>, vector<1x256xf32>
      %33 = vector.broadcast %32 : vector<1x256xf32> to vector<8x256xf32>
      %34 = arith.addf %31, %33 : vector<8x256xf32>
      %cst_29 = arith.constant 0.000000e+00 : f32
      %35 = vector.broadcast %cst_29 : f32 to vector<8x256xf32>
      %36 = arith.maximumf %34, %35 : vector<8x256xf32>
      %c0_30 = arith.constant 0 : index
      %c0_31 = arith.constant 0 : index
      %37 = vector.load %arg10[%c0_30, %c0_31] : memref<1x256xf32, #tpu.memory_space<vmem>>, vector<1x256xf32>
      %38 = vector.broadcast %37 : vector<1x256xf32> to vector<8x256xf32>
      %39 = arith.mulf %36, %38 : vector<8x256xf32>
      %cst_32 = arith.constant dense<0.000000e+00> : vector<8xf32>
      %40 = vector.multi_reduction <add>, %39, %cst_32 [1] : vector<8x256xf32> to vector<8xf32>
      %41 = vector.shape_cast %40 : vector<8xf32> to vector<8x1xf32>
      %c0_33 = arith.constant 0 : index
      %c0_34 = arith.constant 0 : index
      %42 = vector.load %arg11[%c0_33, %c0_34] : memref<1x1xf32, #tpu.memory_space<vmem>>, vector<1x1xf32>
      %43 = vector.broadcast %42 : vector<1x1xf32> to vector<8x1xf32>
      %44 = arith.addf %41, %43 : vector<8x1xf32>
      %c0_35 = arith.constant 0 : index
      %c0_36 = arith.constant 0 : index
      %45 = vector.load %arg12[%c0_35, %c0_36] : memref<8x1xf32, #tpu.memory_space<vmem>>, vector<8x1xf32>
      tpu.vector_store %arg12[%c0_35, %c0_36], %44 {strides = array<i32>} : memref<8x1xf32, #tpu.memory_space<vmem>>, vector<8x1xf32>,
    } else {
    }
    return
  }
  func.func @transform_0(%arg0: i32) -> (i32, i32) {
    %c0_i32 = arith.constant 0 : i32
    %c0_i32_0 = arith.constant 0 : i32
    %c0_i32_1 = arith.constant 0 : i32
    return %c0_i32, %c0_i32_0 : i32, i32
  }
  func.func @transform_1(%arg0: i32) -> (i32, i32) {
    %c0_i32 = arith.constant 0 : i32
    %c0_i32_0 = arith.constant 0 : i32
    return %c0_i32, %arg0 : i32, i32
  }
  func.func @transform_2(%arg0: i32) -> (i32, i32) {
    %c0_i32 = arith.constant 0 : i32
    %c0_i32_0 = arith.constant 0 : i32
    %c0_i32_1 = arith.constant 0 : i32
    return %c0_i32, %c0_i32_0 : i32, i32
  }
  func.func @transform_3(%arg0: i32) -> (i32, i32) {
    %c0_i32 = arith.constant 0 : i32
    %c0_i32_0 = arith.constant 0 : i32
    %c0_i32_1 = arith.constant 0 : i32
    return %c0_i32, %c0_i32_0 : i32, i32
  }
  func.func @transform_4(%arg0: i32) -> (i32, i32) {
    %c0_i32 = arith.constant 0 : i32
    %c0_i32_0 = arith.constant 0 : i32
    return %arg0, %c0_i32 : i32, i32
  }
  func.func @transform_5(%arg0: i32) -> (i32, i32) {
    %c0_i32 = arith.constant 0 : i32
    %c0_i32_0 = arith.constant 0 : i32
    %c0_i32_1 = arith.constant 0 : i32
    return %c0_i32, %c0_i32_0 : i32, i32
  }
  func.func @transform_6(%arg0: i32) -> (i32, i32) {
    %c0_i32 = arith.constant 0 : i32
    %c0_i32_0 = arith.constant 0 : i32
    %c0_i32_1 = arith.constant 0 : i32
    return %c0_i32, %c0_i32_0 : i32, i32
  }
  func.func @transform_7(%arg0: i32) -> (i32, i32) {
    %c0_i32 = arith.constant 0 : i32
    %c0_i32_0 = arith.constant 0 : i32
    %c0_i32_1 = arith.constant 0 : i32
    return %c0_i32, %c0_i32_0 : i32, i32
  }
  func.func @transform_8(%arg0: i32) -> (i32, i32) {
    %c0_i32 = arith.constant 0 : i32
    %c0_i32_0 = arith.constant 0 : i32
    %c0_i32_1 = arith.constant 0 : i32
    return %c0_i32, %c0_i32_0 : i32, i32
  }
  func.func @transform_9(%arg0: i32) -> (i32, i32) {
    %c0_i32 = arith.constant 0 : i32
    %c0_i32_0 = arith.constant 0 : i32
    %c0_i32_1 = arith.constant 0 : i32
    return %c0_i32, %c0_i32_0 : i32, i32
  }
  func.func @transform_10(%arg0: i32) -> (i32, i32) {
    %c0_i32 = arith.constant 0 : i32
    %c0_i32_0 = arith.constant 0 : i32
    %c0_i32_1 = arith.constant 0 : i32
    return %c0_i32, %c0_i32_0 : i32, i32
  }
  func.func @transform_11(%arg0: i32) -> (i32, i32) {
    %c0_i32 = arith.constant 0 : i32
    %c0_i32_0 = arith.constant 0 : i32
    %c0_i32_1 = arith.constant 0 : i32
    return %c0_i32, %c0_i32_0 : i32, i32
  }
}

</mosaic_0001>

<llo_original>
// kernel: multi_model_forward.1
$region0: #{multi_model_forward.1}
  #allocation0 [shape = 'u32[]', space=smem, size = 0x4, offset = 0x4, fixed_abs, tag = 'smem constant byte address 0x4 - core index']
  #allocation1 [shape = 'u32[144,128]{1,0:T(1,128)}', space=vmem, size = 0x12000, scoped, tag = 'internal scratch']
  #allocation2 [shape = 'f32[8,1024]{1,0:T(8,128)}', space=vmem, size = 0x8000, scoped, tag = 'scratch operand']
  #allocation3 [shape = 'f32[1,1]{1,0:T(1,128)S(1)}', space=vmem, size = 0x200, scoped, tag = 'scoped memory for multi_model_forward.1']
  %s0 = inlined_call_operand.vmem [shape: bf16[8,128], index: 0, kind: input, shape index: {}]
  %s1 = inlined_call_operand.vmem [shape: bf16[8,2048], index: 1, kind: input, shape index: {}]
  %s2 = inlined_call_operand.vmem [shape: bf16[128,128], index: 2, kind: input, shape index: {}]
  %s3 = inlined_call_operand.vmem [shape: f32[1,128], index: 3, kind: input, shape index: {}]
  %s4 = inlined_call_operand.vmem [shape: bf16[2048,1024], index: 4, kind: input, shape index: {}]
  %s5 = inlined_call_operand.vmem [shape: f32[1,1024], index: 5, kind: input, shape index: {}]
  %s6 = inlined_call_operand.vmem [shape: bf16[128,256], index: 6, kind: input, shape index: {}]
  %s7 = inlined_call_operand.vmem [shape: bf16[1024,256], index: 7, kind: input, shape index: {}]
  %s8 = inlined_call_operand.vmem [shape: f32[1,256], index: 8, kind: input, shape index: {}]
  %s9 = inlined_call_operand.vmem [shape: f32[1,256], index: 9, kind: input, shape index: {}]
  %s10 = inlined_call_operand.<no memory space> [shape: f32[1,1], index: 10, kind: input, shape index: {}]
  %s11 = inlined_call_operand.vmem [shape: f32[8,1], index: 11, kind: output, shape index: {}]
  %s12 = sld [smem:[#allocation0]]
  $region85: #{multi_model_forward.1} parent=0
    _
  %s14 = ssub.s32 1, %s12
  %s15 = scalar_select 0, %s14, %s12
  %v16 = vstv %s10
  %17 = vst [vmem:[#allocation3] sm:$0x1] %v16
  loop: start=0, step=1, limit=6
  $region2: #{multi_model_forward.1} parent=0 // loop_pre_header
    _
  $region3: #{multi_model_forward.1} parent=0 // loop_header
    %s19 = sphi 0, %s23
    %p20 = scmp.ge.s32.totalorder %s19, 6
    %s27 = sphi 0, %s27
    %s29 = sphi 0, %s27
    %s30 = sphi 0, %s29
    %s44 = sphi 0, %s30
    %s50 = sphi 0, %s52
    %s53 = sphi 0, %s50
    %s54 = sphi 0, %s53
    %s70 = sphi 0, %s54
    %s74 = sphi 0, %s74
    %s76 = sphi 0, %s74
    %s77 = sphi 0, %s76
    %s91 = sphi 0, %s77
    %s95 = sphi 0, %s95
    %s97 = sphi 0, %s95
    %s98 = sphi 0, %s97
    %s112 = sphi 0, %s98
    %s118 = sphi 0, %s120
    %s121 = sphi 0, %s118
    %s122 = sphi 0, %s121
    %s138 = sphi 0, %s122
    %s142 = sphi 0, %s142
    %s144 = sphi 0, %s142
    %s145 = sphi 0, %s144
    %s159 = sphi 0, %s145
    %s163 = sphi 0, %s163
    %s165 = sphi 0, %s163
    %s166 = sphi 0, %s165
    %s180 = sphi 0, %s166
    %s184 = sphi 0, %s184
    %s186 = sphi 0, %s184
    %s187 = sphi 0, %s186
    %s201 = sphi 0, %s187
    %s205 = sphi 0, %s205
    %s207 = sphi 0, %s205
    %s208 = sphi 0, %s207
    %s222 = sphi 0, %s208
    %s226 = sphi 0, %s226
    %s228 = sphi 0, %s226
    %s229 = sphi 0, %s228
    %s243 = sphi 0, %s229
    %s247 = sphi 0, %s247
    %s249 = sphi 0, %s247
    %s250 = sphi 0, %s249
    %s264 = sphi 0, %s250
    %s268 = sphi 0, %s268
    %s270 = sphi 0, %s268
    %s271 = sphi 0, %s270
    %s285 = sphi 0, %s271
  $region4: #{multi_model_forward.1} parent=0 // loop_header_branch
    %22 = sbr.rel (%p20) target = $region8
  $region5: #{multi_model_forward.1} parent=0 // loop_body
    %s24 = ssub.s32 %s19, 1
    %s25 = ssub.s32 %s19, 2
    %s26 = sadd.s32 %s19, 1
    %s28 = sadd.s32 %s27, 1
    %p31 = scmp.eq.s32.totalorder %s19, 3
    %p32 = scmp.ne.s32.totalorder %s27, %s29
    %p33 = scmp.eq.s32.totalorder %s19, 0
    %p34 = por %p32, %p33
    %p35 = scmp.ne.s32.totalorder %s27, %s29
    %p36 = scmp.eq.s32.totalorder %s24, 3
    %p37 = por %p35, %p36
    %p38 = scmp.ne.s32.totalorder %s29, %s30
    %p39 = scmp.eq.s32.totalorder %s24, 0
    %p40 = por %p38, %p39
    %p41 = scmp.ne.s32.totalorder %s29, %s30
    %p42 = scmp.eq.s32.totalorder %s25, 3
    %p43 = por %p41, %p42
    %p45 = scmp.ne.s32.totalorder %s30, %s44
    %p46 = scmp.eq.s32.totalorder %s25, 0
    %p47 = por %p45, %p46
    %s48 = ssub.s32 %s19, %s26
    %p49 = scmp.eq.s32.totalorder %s48, 0
    %s51 = sadd.s32 %s50, 1
    %s52 = scalar_select %p49, %s50, %s51
    %p55 = pneg %p49
    %p56 = scmp.eq.s32.totalorder %s19, 3
    %p57 = por %p55, %p56
    %p58 = scmp.ne.s32.totalorder %s50, %s53
    %p59 = scmp.eq.s32.totalorder %s19, 0
    %p60 = por %p58, %p59
    %p61 = scmp.ne.s32.totalorder %s50, %s53
    %p62 = scmp.eq.s32.totalorder %s24, 3
    %p63 = por %p61, %p62
    %p64 = scmp.ne.s32.totalorder %s53, %s54
    %p65 = scmp.eq.s32.totalorder %s24, 0
    %p66 = por %p64, %p65
    %p67 = scmp.ne.s32.totalorder %s53, %s54
    %p68 = scmp.eq.s32.totalorder %s25, 3
    %p69 = por %p67, %p68
    %p71 = scmp.ne.s32.totalorder %s54, %s70
    %p72 = scmp.eq.s32.totalorder %s25, 0
    %p73 = por %p71, %p72
    %s75 = sadd.s32 %s74, 1
    %p78 = scmp.eq.s32.totalorder %s19, 3
    %p79 = scmp.ne.s32.totalorder %s74, %s76
    %p80 = scmp.eq.s32.totalorder %s19, 0
    %p81 = por %p79, %p80
    %p82 = scmp.ne.s32.totalorder %s74, %s76
    %p83 = scmp.eq.s32.totalorder %s24, 3
    %p84 = por %p82, %p83
    %p85 = scmp.ne.s32.totalorder %s76, %s77
    %p86 = scmp.eq.s32.totalorder %s24, 0
    %p87 = por %p85, %p86
    %p88 = scmp.ne.s32.totalorder %s76, %s77
    %p89 = scmp.eq.s32.totalorder %s25, 3
    %p90 = por %p88, %p89
    %p92 = scmp.ne.s32.totalorder %s77, %s91
    %p93 = scmp.eq.s32.totalorder %s25, 0
    %p94 = por %p92, %p93
    %s96 = sadd.s32 %s95, 1
    %p99 = scmp.eq.s32.totalorder %s19, 3
    %p100 = scmp.ne.s32.totalorder %s95, %s97
    %p101 = scmp.eq.s32.totalorder %s19, 0
    %p102 = por %p100, %p101
    %p103 = scmp.ne.s32.totalorder %s95, %s97
    %p104 = scmp.eq.s32.totalorder %s24, 3
    %p105 = por %p103, %p104
    %p106 = scmp.ne.s32.totalorder %s97, %s98
    %p107 = scmp.eq.s32.totalorder %s24, 0
    %p108 = por %p106, %p107
    %p109 = scmp.ne.s32.totalorder %s97, %s98
    %p110 = scmp.eq.s32.totalorder %s25, 3
    %p111 = por %p109, %p110
    %p113 = scmp.ne.s32.totalorder %s98, %s112
    %p114 = scmp.eq.s32.totalorder %s25, 0
    %p115 = por %p113, %p114
    %s116 = ssub.s32 %s19, %s26
    %p117 = scmp.eq.s32.totalorder %s116, 0
    %s119 = sadd.s32 %s118, 1
    %s120 = scalar_select %p117, %s118, %s119
    %p123 = pneg %p117
    %p124 = scmp.eq.s32.totalorder %s19, 3
    %p125 = por %p123, %p124
    %p126 = scmp.ne.s32.totalorder %s118, %s121
    %p127 = scmp.eq.s32.totalorder %s19, 0
    %p128 = por %p126, %p127
    %p129 = scmp.ne.s32.totalorder %s118, %s121
    %p130 = scmp.eq.s32.totalorder %s24, 3
    %p131 = por %p129, %p130
    %p132 = scmp.ne.s32.totalorder %s121, %s122
    %p133 = scmp.eq.s32.totalorder %s24, 0
    %p134 = por %p132, %p133
    %p135 = scmp.ne.s32.totalorder %s121, %s122
    %p136 = scmp.eq.s32.totalorder %s25, 3
    %p137 = por %p135, %p136
    %p139 = scmp.ne.s32.totalorder %s122, %s138
    %p140 = scmp.eq.s32.totalorder %s25, 0
    %p141 = por %p139, %p140
    %s143 = sadd.s32 %s142, 1
    %p146 = scmp.eq.s32.totalorder %s19, 3
    %p147 = scmp.ne.s32.totalorder %s142, %s144
    %p148 = scmp.eq.s32.totalorder %s19, 0
    %p149 = por %p147, %p148
    %p150 = scmp.ne.s32.totalorder %s142, %s144
    %p151 = scmp.eq.s32.totalorder %s24, 3
    %p152 = por %p150, %p151
    %p153 = scmp.ne.s32.totalorder %s144, %s145
    %p154 = scmp.eq.s32.totalorder %s24, 0
    %p155 = por %p153, %p154
    %p156 = scmp.ne.s32.totalorder %s144, %s145
    %p157 = scmp.eq.s32.totalorder %s25, 3
    %p158 = por %p156, %p157
    %p160 = scmp.ne.s32.totalorder %s145, %s159
    %p161 = scmp.eq.s32.totalorder %s25, 0
    %p162 = por %p160, %p161
    %s164 = sadd.s32 %s163, 1
    %p167 = scmp.eq.s32.totalorder %s19, 3
    %p168 = scmp.ne.s32.totalorder %s163, %s165
    %p169 = scmp.eq.s32.totalorder %s19, 0
    %p170 = por %p168, %p169
    %p171 = scmp.ne.s32.totalorder %s163, %s165
    %p172 = scmp.eq.s32.totalorder %s24, 3
    %p173 = por %p171, %p172
    %p174 = scmp.ne.s32.totalorder %s165, %s166
    %p175 = scmp.eq.s32.totalorder %s24, 0
    %p176 = por %p174, %p175
    %p177 = scmp.ne.s32.totalorder %s165, %s166
    %p178 = scmp.eq.s32.totalorder %s25, 3
    %p179 = por %p177, %p178
    %p181 = scmp.ne.s32.totalorder %s166, %s180
    %p182 = scmp.eq.s32.totalorder %s25, 0
    %p183 = por %p181, %p182
    %s185 = sadd.s32 %s184, 1
    %p188 = scmp.eq.s32.totalorder %s19, 3
    %p189 = scmp.ne.s32.totalorder %s184, %s186
    %p190 = scmp.eq.s32.totalorder %s19, 0
    %p191 = por %p189, %p190
    %p192 = scmp.ne.s32.totalorder %s184, %s186
    %p193 = scmp.eq.s32.totalorder %s24, 3
    %p194 = por %p192, %p193
    %p195 = scmp.ne.s32.totalorder %s186, %s187
    %p196 = scmp.eq.s32.totalorder %s24, 0
    %p197 = por %p195, %p196
    %p198 = scmp.ne.s32.totalorder %s186, %s187
    %p199 = scmp.eq.s32.totalorder %s25, 3
    %p200 = por %p198, %p199
    %p202 = scmp.ne.s32.totalorder %s187, %s201
    %p203 = scmp.eq.s32.totalorder %s25, 0
    %p204 = por %p202, %p203
    %s206 = sadd.s32 %s205, 1
    %p209 = scmp.eq.s32.totalorder %s19, 3
    %p210 = scmp.ne.s32.totalorder %s205, %s207
    %p211 = scmp.eq.s32.totalorder %s19, 0
    %p212 = por %p210, %p211
    %p213 = scmp.ne.s32.totalorder %s205, %s207
    %p214 = scmp.eq.s32.totalorder %s24, 3
    %p215 = por %p213, %p214
    %p216 = scmp.ne.s32.totalorder %s207, %s208
    %p217 = scmp.eq.s32.totalorder %s24, 0
    %p218 = por %p216, %p217
    %p219 = scmp.ne.s32.totalorder %s207, %s208
    %p220 = scmp.eq.s32.totalorder %s25, 3
    %p221 = por %p219, %p220
    %p223 = scmp.ne.s32.totalorder %s208, %s222
    %p224 = scmp.eq.s32.totalorder %s25, 0
    %p225 = por %p223, %p224
    %s227 = sadd.s32 %s226, 1
    %p230 = scmp.eq.s32.totalorder %s19, 3
    %p231 = scmp.ne.s32.totalorder %s226, %s228
    %p232 = scmp.eq.s32.totalorder %s19, 0
    %p233 = por %p231, %p232
    %p234 = scmp.ne.s32.totalorder %s226, %s228
    %p235 = scmp.eq.s32.totalorder %s24, 3
    %p236 = por %p234, %p235
    %p237 = scmp.ne.s32.totalorder %s228, %s229
    %p238 = scmp.eq.s32.totalorder %s24, 0
    %p239 = por %p237, %p238
    %p240 = scmp.ne.s32.totalorder %s228, %s229
    %p241 = scmp.eq.s32.totalorder %s25, 3
    %p242 = por %p240, %p241
    %p244 = scmp.ne.s32.totalorder %s229, %s243
    %p245 = scmp.eq.s32.totalorder %s25, 0
    %p246 = por %p244, %p245
    %s248 = sadd.s32 %s247, 1
    %p251 = scmp.eq.s32.totalorder %s19, 3
    %p252 = scmp.ne.s32.totalorder %s247, %s249
    %p253 = scmp.eq.s32.totalorder %s19, 0
    %p254 = por %p252, %p253
    %p255 = scmp.ne.s32.totalorder %s247, %s249
    %p256 = scmp.eq.s32.totalorder %s24, 3
    %p257 = por %p255, %p256
    %p258 = scmp.ne.s32.totalorder %s249, %s250
    %p259 = scmp.eq.s32.totalorder %s24, 0
    %p260 = por %p258, %p259
    %p261 = scmp.ne.s32.totalorder %s249, %s250
    %p262 = scmp.eq.s32.totalorder %s25, 3
    %p263 = por %p261, %p262
    %p265 = scmp.ne.s32.totalorder %s250, %s264
    %p266 = scmp.eq.s32.totalorder %s25, 0
    %p267 = por %p265, %p266
    %s269 = sadd.s32 %s268, 1
    %p272 = scmp.eq.s32.totalorder %s19, 3
    %p273 = scmp.ne.s32.totalorder %s268, %s270
    %p274 = scmp.eq.s32.totalorder %s19, 0
    %p275 = por %p273, %p274
    %p276 = scmp.ne.s32.totalorder %s268, %s270
    %p277 = scmp.eq.s32.totalorder %s24, 3
    %p278 = por %p276, %p277
    %p279 = scmp.ne.s32.totalorder %s270, %s271
    %p280 = scmp.eq.s32.totalorder %s24, 0
    %p281 = por %p279, %p280
    %p282 = scmp.ne.s32.totalorder %s270, %s271
    %p283 = scmp.eq.s32.totalorder %s25, 3
    %p284 = por %p282, %p283
    %p286 = scmp.ne.s32.totalorder %s271, %s285
    %p287 = scmp.eq.s32.totalorder %s25, 0
    %p288 = por %p286, %p287
    %p289 = scmp.le.s32.totalorder 1, %s19
    %p290 = scmp.lt.s32.totalorder %s19, 5
    %p291 = pnand %p289, %p290
    %p292 = pneg %p291
    // Predicated region
    $region9: #{multi_model_forward.1} parent=5 // pred_check
      _
    $region10: #{multi_model_forward.1} parent=5 // pred_check_branch
      %294 = sbr.rel (%p291) target = $region12
    $region11: #{multi_model_forward.1} parent=5 // pred_region
      %s295 = ssub.s32 %s19, 1
      // Predicated region
      $region13: #{multi_model_forward.1} parent=11 // pred_check
        %p296 = pneg %p40
      $region14: #{multi_model_forward.1} parent=11 // pred_check_branch
        %298 = sbr.rel (%p296) target = $region16
      $region15: #{multi_model_forward.1} parent=11 // pred_region
        _
      $region16: #{multi_model_forward.1} parent=11 // pred_fallthru
        _
      // Predicated region
      $region17: #{multi_model_forward.1} parent=11 // pred_check
        %p299 = pneg %p87
      $region18: #{multi_model_forward.1} parent=11 // pred_check_branch
        %301 = sbr.rel (%p299) target = $region20
      $region19: #{multi_model_forward.1} parent=11 // pred_region
        _
      $region20: #{multi_model_forward.1} parent=11 // pred_fallthru
        _
      // Predicated region
      $region21: #{multi_model_forward.1} parent=11 // pred_check
        %p302 = pneg %p108
      $region22: #{multi_model_forward.1} parent=11 // pred_check_branch
        %304 = sbr.rel (%p302) target = $region24
      $region23: #{multi_model_forward.1} parent=11 // pred_region
        _
      $region24: #{multi_model_forward.1} parent=11 // pred_fallthru
        _
      // Predicated region
      $region25: #{multi_model_forward.1} parent=11 // pred_check
        %p305 = pneg %p155
      $region26: #{multi_model_forward.1} parent=11 // pred_check_branch
        %307 = sbr.rel (%p305) target = $region28
      $region27: #{multi_model_forward.1} parent=11 // pred_region
        _
      $region28: #{multi_model_forward.1} parent=11 // pred_fallthru
        _
      // Predicated region
      $region29: #{multi_model_forward.1} parent=11 // pred_check
        %p308 = pneg %p176
      $region30: #{multi_model_forward.1} parent=11 // pred_check_branch
        %310 = sbr.rel (%p308) target = $region32
      $region31: #{multi_model_forward.1} parent=11 // pred_region
        _
      $region32: #{multi_model_forward.1} parent=11 // pred_fallthru
        _
      // Predicated region
      $region33: #{multi_model_forward.1} parent=11 // pred_check
        %p311 = pneg %p197
      $region34: #{multi_model_forward.1} parent=11 // pred_check_branch
        %313 = sbr.rel (%p311) target = $region36
      $region35: #{multi_model_forward.1} parent=11 // pred_region
        _
      $region36: #{multi_model_forward.1} parent=11 // pred_fallthru
        _
      // Predicated region
      $region37: #{multi_model_forward.1} parent=11 // pred_check
        %p314 = pneg %p218
      $region38: #{multi_model_forward.1} parent=11 // pred_check_branch
        %316 = sbr.rel (%p314) target = $region40
      $region39: #{multi_model_forward.1} parent=11 // pred_region
        _
      $region40: #{multi_model_forward.1} parent=11 // pred_fallthru
        _
      // Predicated region
      $region41: #{multi_model_forward.1} parent=11 // pred_check
        %p317 = pneg %p239
      $region42: #{multi_model_forward.1} parent=11 // pred_check_branch
        %319 = sbr.rel (%p317) target = $region44
      $region43: #{multi_model_forward.1} parent=11 // pred_region
        _
      $region44: #{multi_model_forward.1} parent=11 // pred_fallthru
        _
      // Predicated region
      $region45: #{multi_model_forward.1} parent=11 // pred_check
        %p320 = pneg %p260
      $region46: #{multi_model_forward.1} parent=11 // pred_check_branch
        %322 = sbr.rel (%p320) target = $region48
      $region47: #{multi_model_forward.1} parent=11 // pred_region
        _
      $region48: #{multi_model_forward.1} parent=11 // pred_fallthru
        _
    $region12: #{multi_model_forward.1} parent=5 // pred_fallthru
      _
    %p323 = scmp.lt.s32.totalorder %s19, 4
    // Predicated region
    $region49: #{multi_model_forward.1} parent=5 // pred_check
      %p324 = pneg %p323
    $region50: #{multi_model_forward.1} parent=5 // pred_check_branch
      %326 = sbr.rel (%p324) target = $region52
    $region51: #{multi_model_forward.1} parent=5 // pred_region
      // Predicated region
      $region53: #{multi_model_forward.1} parent=51 // pred_check
        %p327 = pneg %p60
      $region54: #{multi_model_forward.1} parent=51 // pred_check_branch
        %329 = sbr.rel (%p327) target = $region56
      $region55: #{multi_model_forward.1} parent=51 // pred_region
        %s330 = smul.u32 4, %s19
        %p331 = scmp.lt.s32.totalorder %s330, 15
        %s332 = scalar_select %p331, %s330, 15
        %s333 = smul.addr %s332, 4
        %s334 = scalar_lea.vmem %s1, %s333
        %s335 = smul.u32 4, %s19
      $region56: #{multi_model_forward.1} parent=51 // pred_fallthru
        _
      // Predicated region
      $region57: #{multi_model_forward.1} parent=51 // pred_check
        %p336 = pneg %p128
      $region58: #{multi_model_forward.1} parent=51 // pred_check_branch
        %338 = sbr.rel (%p336) target = $region60
      $region59: #{multi_model_forward.1} parent=51 // pred_region
        %s339 = smul.u32 64, %s19
        %p340 = scmp.lt.s32.totalorder %s339, 255
        %s341 = scalar_select %p340, %s339, 255
        %s342 = smul.addr %s341, 8
        %s343 = smul.addr %s342, 4
        %s344 = scalar_lea.vmem %s4, %s343
        %s345 = smul.u32 64, %s19
      $region60: #{multi_model_forward.1} parent=51 // pred_fallthru
        _
    $region52: #{multi_model_forward.1} parent=5 // pred_fallthru
      _
    %p346 = scmp.le.s32.totalorder 1, %s19
    %p347 = scmp.lt.s32.totalorder %s19, 5
    %p348 = pnand %p346, %p347
    %p349 = pneg %p348
    // Predicated region
    $region61: #{multi_model_forward.1} parent=5 // pred_check
      _
    $region62: #{multi_model_forward.1} parent=5 // pred_check_branch
      %351 = sbr.rel (%p348) target = $region64
    $region63: #{multi_model_forward.1} parent=5 // pred_region
      %s352 = ssub.s32 %s19, 1
      %p353 = pneg %p40
      %p354 = pneg %p37
      %s355 = smul.u32 4, %s24
      %p356 = scmp.lt.s32.totalorder %s355, 15
      %s357 = scalar_select %p356, %s355, 15
      %s358 = smul.addr %s357, 4
      %s359 = scalar_lea.vmem %s1, %s358
      %p360 = pneg %p66
      %p361 = pneg %p63
      %p362 = pneg %p87
      %p363 = pneg %p84
      %p364 = pneg %p108
      %p365 = pneg %p105
      %s366 = smul.u32 64, %s24
      %p367 = scmp.lt.s32.totalorder %s366, 255
      %s368 = scalar_select %p367, %s366, 255
      %s369 = smul.addr %s368, 8
      %s370 = smul.addr %s369, 4
      %s371 = scalar_lea.vmem %s4, %s370
      %p372 = pneg %p134
      %p373 = pneg %p131
      %p374 = pneg %p155
      %p375 = pneg %p152
      %p376 = pneg %p176
      %p377 = pneg %p173
      %p378 = pneg %p197
      %p379 = pneg %p194
      %p380 = pneg %p218
      %p381 = pneg %p215
      %p382 = pneg %p239
      %p383 = pneg %p236
      %p384 = pneg %p260
      %p385 = pneg %p257
      %p386 = pneg %p281
      %p387 = pneg %p278
      %s388 = smul.u32 4, %s24
      %p389 = scmp.lt.s32.totalorder %s388, 15
      %s390 = scalar_select %p389, %s388, 15
      %s391 = smul.addr %s390, 4
      %s392 = scalar_lea.vmem %s1, %s391
      %s393 = smul.u32 4, %s24
      %s394 = smul.u32 64, %s24
      %p395 = scmp.lt.s32.totalorder %s394, 255
      %s396 = scalar_select %p395, %s394, 255
      %s397 = smul.addr %s396, 8
      %s398 = smul.addr %s397, 4
      %s399 = scalar_lea.vmem %s4, %s398
      %s400 = smul.u32 64, %s24
      %p402 = scmp.eq.s32.totalorder %s24, 0
      // Predicated region
      $region65: #{multi_model_forward.1} parent=63 // pred_check
        %p403 = pneg %p402
      $region66: #{multi_model_forward.1} parent=63 // pred_check_branch
        %405 = sbr.rel (%p403) target = $region68
      $region67: #{multi_model_forward.1} parent=63 // pred_region
        %406 = vst [vmem:[#allocation2] sm:$0xff] 0.0
        %407 = vst [vmem:[#allocation2 + $0x8] sm:$0xff] 0.0
        %408 = vst [vmem:[#allocation2 + $0x10] sm:$0xff] 0.0
        %409 = vst [vmem:[#allocation2 + $0x18] sm:$0xff] 0.0
        %410 = vst [vmem:[#allocation2 + $0x20] sm:$0xff] 0.0
        %411 = vst [vmem:[#allocation2 + $0x28] sm:$0xff] 0.0
        %412 = vst [vmem:[#allocation2 + $0x30] sm:$0xff] 0.0
        %413 = vst [vmem:[#allocation2 + $0x38] sm:$0xff] 0.0
      $region68: #{multi_model_forward.1} parent=63 // pred_fallthru
        _
      %v414 = vld [vmem:[#allocation2] sm:$0xff]
      %v415 = vld [vmem:[#allocation2 + $0x8] sm:$0xff]
      %v416 = vld [vmem:[#allocation2 + $0x10] sm:$0xff]
      %v417 = vld [vmem:[#allocation2 + $0x18] sm:$0xff]
      %v418 = vld [vmem:[#allocation2 + $0x20] sm:$0xff]
      %v419 = vld [vmem:[#allocation2 + $0x28] sm:$0xff]
      %v420 = vld [vmem:[#allocation2 + $0x30] sm:$0xff]
      %v421 = vld [vmem:[#allocation2 + $0x38] sm:$0xff]
      %v422 = vld [vmem:[%s392] sm:$0xff]
      %v423 = vld [vmem:[%s392 + $0x8] sm:$0xff]
      %v424 = vld [vmem:[%s399] sm:$0xff]
      %v425 = vld [vmem:[%s399 + $0x8] sm:$0xff]
      %v426 = vld [vmem:[%s399 + $0x10] sm:$0xff]
      %v427 = vld [vmem:[%s399 + $0x18] sm:$0xff]
      %v428 = vld [vmem:[%s399 + $0x20] sm:$0xff]
      %v429 = vld [vmem:[%s399 + $0x28] sm:$0xff]
      %v430 = vld [vmem:[%s399 + $0x30] sm:$0xff]
      %v431 = vld [vmem:[%s399 + $0x38] sm:$0xff]
      %v432 = vld [vmem:[%s399 + $0x40] sm:$0xff]
      %v433 = vld [vmem:[%s399 + $0x48] sm:$0xff]
      %v434 = vld [vmem:[%s399 + $0x50] sm:$0xff]
      %v435 = vld [vmem:[%s399 + $0x58] sm:$0xff]
      %v436 = vld [vmem:[%s399 + $0x60] sm:$0xff]
      %v437 = vld [vmem:[%s399 + $0x68] sm:$0xff]
      %v438 = vld [vmem:[%s399 + $0x70] sm:$0xff]
      %v439 = vld [vmem:[%s399 + $0x78] sm:$0xff]
      %v440 = vld [vmem:[%s399 + $0x80] sm:$0xff]
      %v441 = vld [vmem:[%s399 + $0x88] sm:$0xff]
      %v442 = vld [vmem:[%s399 + $0x90] sm:$0xff]
      %v443 = vld [vmem:[%s399 + $0x98] sm:$0xff]
      %v444 = vld [vmem:[%s399 + $0xa0] sm:$0xff]
      %v445 = vld [vmem:[%s399 + $0xa8] sm:$0xff]
      %v446 = vld [vmem:[%s399 + $0xb0] sm:$0xff]
      %v447 = vld [vmem:[%s399 + $0xb8] sm:$0xff]
      %v448 = vld [vmem:[%s399 + $0xc0] sm:$0xff]
      %v449 = vld [vmem:[%s399 + $0xc8] sm:$0xff]
      %v450 = vld [vmem:[%s399 + $0xd0] sm:$0xff]
      %v451 = vld [vmem:[%s399 + $0xd8] sm:$0xff]
      %v452 = vld [vmem:[%s399 + $0xe0] sm:$0xff]
      %v453 = vld [vmem:[%s399 + $0xe8] sm:$0xff]
      %v454 = vld [vmem:[%s399 + $0xf0] sm:$0xff]
      %v455 = vld [vmem:[%s399 + $0xf8] sm:$0xff]
      %v456 = vld [vmem:[%s399 + $0x100] sm:$0xff]
      %v457 = vld [vmem:[%s399 + $0x108] sm:$0xff]
      %v458 = vld [vmem:[%s399 + $0x110] sm:$0xff]
      %v459 = vld [vmem:[%s399 + $0x118] sm:$0xff]
      %v460 = vld [vmem:[%s399 + $0x120] sm:$0xff]
      %v461 = vld [vmem:[%s399 + $0x128] sm:$0xff]
      %v462 = vld [vmem:[%s399 + $0x130] sm:$0xff]
      %v463 = vld [vmem:[%s399 + $0x138] sm:$0xff]
      %v464 = vld [vmem:[%s399 + $0x140] sm:$0xff]
      %v465 = vld [vmem:[%s399 + $0x148] sm:$0xff]
      %v466 = vld [vmem:[%s399 + $0x150] sm:$0xff]
      %v467 = vld [vmem:[%s399 + $0x158] sm:$0xff]
      %v468 = vld [vmem:[%s399 + $0x160] sm:$0xff]
      %v469 = vld [vmem:[%s399 + $0x168] sm:$0xff]
      %v470 = vld [vmem:[%s399 + $0x170] sm:$0xff]
      %v471 = vld [vmem:[%s399 + $0x178] sm:$0xff]
      %v472 = vld [vmem:[%s399 + $0x180] sm:$0xff]
      %v473 = vld [vmem:[%s399 + $0x188] sm:$0xff]
      %v474 = vld [vmem:[%s399 + $0x190] sm:$0xff]
      %v475 = vld [vmem:[%s399 + $0x198] sm:$0xff]
      %v476 = vld [vmem:[%s399 + $0x1a0] sm:$0xff]
      %v477 = vld [vmem:[%s399 + $0x1a8] sm:$0xff]
      %v478 = vld [vmem:[%s399 + $0x1b0] sm:$0xff]
      %v479 = vld [vmem:[%s399 + $0x1b8] sm:$0xff]
      %v480 = vld [vmem:[%s399 + $0x1c0] sm:$0xff]
      %v481 = vld [vmem:[%s399 + $0x1c8] sm:$0xff]
      %v482 = vld [vmem:[%s399 + $0x1d0] sm:$0xff]
      %v483 = vld [vmem:[%s399 + $0x1d8] sm:$0xff]
      %v484 = vld [vmem:[%s399 + $0x1e0] sm:$0xff]
      %v485 = vld [vmem:[%s399 + $0x1e8] sm:$0xff]
      %v486 = vld [vmem:[%s399 + $0x1f0] sm:$0xff]
      %v487 = vld [vmem:[%s399 + $0x1f8] sm:$0xff]
      %v488 = vld [vmem:[%s399 + $0x200] sm:$0xff]
      %v489 = vld [vmem:[%s399 + $0x208] sm:$0xff]
      %v490 = vld [vmem:[%s399 + $0x210] sm:$0xff]
      %v491 = vld [vmem:[%s399 + $0x218] sm:$0xff]
      %v492 = vld [vmem:[%s399 + $0x220] sm:$0xff]
      %v493 = vld [vmem:[%s399 + $0x228] sm:$0xff]
      %v494 = vld [vmem:[%s399 + $0x230] sm:$0xff]
      %v495 = vld [vmem:[%s399 + $0x238] sm:$0xff]
      %v496 = vld [vmem:[%s399 + $0x240] sm:$0xff]
      %v497 = vld [vmem:[%s399 + $0x248] sm:$0xff]
      %v498 = vld [vmem:[%s399 + $0x250] sm:$0xff]
      %v499 = vld [vmem:[%s399 + $0x258] sm:$0xff]
      %v500 = vld [vmem:[%s399 + $0x260] sm:$0xff]
      %v501 = vld [vmem:[%s399 + $0x268] sm:$0xff]
      %v502 = vld [vmem:[%s399 + $0x270] sm:$0xff]
      %v503 = vld [vmem:[%s399 + $0x278] sm:$0xff]
      %v504 = vld [vmem:[%s399 + $0x280] sm:$0xff]
      %v505 = vld [vmem:[%s399 + $0x288] sm:$0xff]
      %v506 = vld [vmem:[%s399 + $0x290] sm:$0xff]
      %v507 = vld [vmem:[%s399 + $0x298] sm:$0xff]
      %v508 = vld [vmem:[%s399 + $0x2a0] sm:$0xff]
      %v509 = vld [vmem:[%s399 + $0x2a8] sm:$0xff]
      %v510 = vld [vmem:[%s399 + $0x2b0] sm:$0xff]
      %v511 = vld [vmem:[%s399 + $0x2b8] sm:$0xff]
      %v512 = vld [vmem:[%s399 + $0x2c0] sm:$0xff]
      %v513 = vld [vmem:[%s399 + $0x2c8] sm:$0xff]
      %v514 = vld [vmem:[%s399 + $0x2d0] sm:$0xff]
      %v515 = vld [vmem:[%s399 + $0x2d8] sm:$0xff]
      %v516 = vld [vmem:[%s399 + $0x2e0] sm:$0xff]
      %v517 = vld [vmem:[%s399 + $0x2e8] sm:$0xff]
      %v518 = vld [vmem:[%s399 + $0x2f0] sm:$0xff]
      %v519 = vld [vmem:[%s399 + $0x2f8] sm:$0xff]
      %v520 = vld [vmem:[%s399 + $0x300] sm:$0xff]
      %v521 = vld [vmem:[%s399 + $0x308] sm:$0xff]
      %v522 = vld [vmem:[%s399 + $0x310] sm:$0xff]
      %v523 = vld [vmem:[%s399 + $0x318] sm:$0xff]
      %v524 = vld [vmem:[%s399 + $0x320] sm:$0xff]
      %v525 = vld [vmem:[%s399 + $0x328] sm:$0xff]
      %v526 = vld [vmem:[%s399 + $0x330] sm:$0xff]
      %v527 = vld [vmem:[%s399 + $0x338] sm:$0xff]
      %v528 = vld [vmem:[%s399 + $0x340] sm:$0xff]
      %v529 = vld [vmem:[%s399 + $0x348] sm:$0xff]
      %v530 = vld [vmem:[%s399 + $0x350] sm:$0xff]
      %v531 = vld [vmem:[%s399 + $0x358] sm:$0xff]
      %v532 = vld [vmem:[%s399 + $0x360] sm:$0xff]
      %v533 = vld [vmem:[%s399 + $0x368] sm:$0xff]
      %v534 = vld [vmem:[%s399 + $0x370] sm:$0xff]
      %v535 = vld [vmem:[%s399 + $0x378] sm:$0xff]
      %v536 = vld [vmem:[%s399 + $0x380] sm:$0xff]
      %v537 = vld [vmem:[%s399 + $0x388] sm:$0xff]
      %v538 = vld [vmem:[%s399 + $0x390] sm:$0xff]
      %v539 = vld [vmem:[%s399 + $0x398] sm:$0xff]
      %v540 = vld [vmem:[%s399 + $0x3a0] sm:$0xff]
      %v541 = vld [vmem:[%s399 + $0x3a8] sm:$0xff]
      %v542 = vld [vmem:[%s399 + $0x3b0] sm:$0xff]
      %v543 = vld [vmem:[%s399 + $0x3b8] sm:$0xff]
      %v544 = vld [vmem:[%s399 + $0x3c0] sm:$0xff]
      %v545 = vld [vmem:[%s399 + $0x3c8] sm:$0xff]
      %v546 = vld [vmem:[%s399 + $0x3d0] sm:$0xff]
      %v547 = vld [vmem:[%s399 + $0x3d8] sm:$0xff]
      %v548 = vld [vmem:[%s399 + $0x3e0] sm:$0xff]
      %v549 = vld [vmem:[%s399 + $0x3e8] sm:$0xff]
      %v550 = vld [vmem:[%s399 + $0x3f0] sm:$0xff]
      %v551 = vld [vmem:[%s399 + $0x3f8] sm:$0xff]
      %v552 = vld [vmem:[%s399 + $0x400] sm:$0xff]
      %v553 = vld [vmem:[%s399 + $0x408] sm:$0xff]
      %v554 = vld [vmem:[%s399 + $0x410] sm:$0xff]
      %v555 = vld [vmem:[%s399 + $0x418] sm:$0xff]
      %v556 = vld [vmem:[%s399 + $0x420] sm:$0xff]
      %v557 = vld [vmem:[%s399 + $0x428] sm:$0xff]
      %v558 = vld [vmem:[%s399 + $0x430] sm:$0xff]
      %v559 = vld [vmem:[%s399 + $0x438] sm:$0xff]
      %v560 = vld [vmem:[%s399 + $0x440] sm:$0xff]
      %v561 = vld [vmem:[%s399 + $0x448] sm:$0xff]
      %v562 = vld [vmem:[%s399 + $0x450] sm:$0xff]
      %v563 = vld [vmem:[%s399 + $0x458] sm:$0xff]
      %v564 = vld [vmem:[%s399 + $0x460] sm:$0xff]
      %v565 = vld [vmem:[%s399 + $0x468] sm:$0xff]
      %v566 = vld [vmem:[%s399 + $0x470] sm:$0xff]
      %v567 = vld [vmem:[%s399 + $0x478] sm:$0xff]
      %v568 = vld [vmem:[%s399 + $0x480] sm:$0xff]
      %v569 = vld [vmem:[%s399 + $0x488] sm:$0xff]
      %v570 = vld [vmem:[%s399 + $0x490] sm:$0xff]
      %v571 = vld [vmem:[%s399 + $0x498] sm:$0xff]
      %v572 = vld [vmem:[%s399 + $0x4a0] sm:$0xff]
      %v573 = vld [vmem:[%s399 + $0x4a8] sm:$0xff]
      %v574 = vld [vmem:[%s399 + $0x4b0] sm:$0xff]
      %v575 = vld [vmem:[%s399 + $0x4b8] sm:$0xff]
      %v576 = vld [vmem:[%s399 + $0x4c0] sm:$0xff]
      %v577 = vld [vmem:[%s399 + $0x4c8] sm:$0xff]
      %v578 = vld [vmem:[%s399 + $0x4d0] sm:$0xff]
      %v579 = vld [vmem:[%s399 + $0x4d8] sm:$0xff]
      %v580 = vld [vmem:[%s399 + $0x4e0] sm:$0xff]
      %v581 = vld [vmem:[%s399 + $0x4e8] sm:$0xff]
      %v582 = vld [vmem:[%s399 + $0x4f0] sm:$0xff]
      %v583 = vld [vmem:[%s399 + $0x4f8] sm:$0xff]
      %v584 = vld [vmem:[%s399 + $0x500] sm:$0xff]
      %v585 = vld [vmem:[%s399 + $0x508] sm:$0xff]
      %v586 = vld [vmem:[%s399 + $0x510] sm:$0xff]
      %v587 = vld [vmem:[%s399 + $0x518] sm:$0xff]
      %v588 = vld [vmem:[%s399 + $0x520] sm:$0xff]
      %v589 = vld [vmem:[%s399 + $0x528] sm:$0xff]
      %v590 = vld [vmem:[%s399 + $0x530] sm:$0xff]
      %v591 = vld [vmem:[%s399 + $0x538] sm:$0xff]
      %v592 = vld [vmem:[%s399 + $0x540] sm:$0xff]
      %v593 = vld [vmem:[%s399 + $0x548] sm:$0xff]
      %v594 = vld [vmem:[%s399 + $0x550] sm:$0xff]
      %v595 = vld [vmem:[%s399 + $0x558] sm:$0xff]
      %v596 = vld [vmem:[%s399 + $0x560] sm:$0xff]
      %v597 = vld [vmem:[%s399 + $0x568] sm:$0xff]
      %v598 = vld [vmem:[%s399 + $0x570] sm:$0xff]
      %v599 = vld [vmem:[%s399 + $0x578] sm:$0xff]
      %v600 = vld [vmem:[%s399 + $0x580] sm:$0xff]
      %v601 = vld [vmem:[%s399 + $0x588] sm:$0xff]
      %v602 = vld [vmem:[%s399 + $0x590] sm:$0xff]
      %v603 = vld [vmem:[%s399 + $0x598] sm:$0xff]
      %v604 = vld [vmem:[%s399 + $0x5a0] sm:$0xff]
      %v605 = vld [vmem:[%s399 + $0x5a8] sm:$0xff]
      %v606 = vld [vmem:[%s399 + $0x5b0] sm:$0xff]
      %v607 = vld [vmem:[%s399 + $0x5b8] sm:$0xff]
      %v608 = vld [vmem:[%s399 + $0x5c0] sm:$0xff]
      %v609 = vld [vmem:[%s399 + $0x5c8] sm:$0xff]
      %v610 = vld [vmem:[%s399 + $0x5d0] sm:$0xff]
      %v611 = vld [vmem:[%s399 + $0x5d8] sm:$0xff]
      %v612 = vld [vmem:[%s399 + $0x5e0] sm:$0xff]
      %v613 = vld [vmem:[%s399 + $0x5e8] sm:$0xff]
      %v614 = vld [vmem:[%s399 + $0x5f0] sm:$0xff]
      %v615 = vld [vmem:[%s399 + $0x5f8] sm:$0xff]
      %v616 = vld [vmem:[%s399 + $0x600] sm:$0xff]
      %v617 = vld [vmem:[%s399 + $0x608] sm:$0xff]
      %v618 = vld [vmem:[%s399 + $0x610] sm:$0xff]
      %v619 = vld [vmem:[%s399 + $0x618] sm:$0xff]
      %v620 = vld [vmem:[%s399 + $0x620] sm:$0xff]
      %v621 = vld [vmem:[%s399 + $0x628] sm:$0xff]
      %v622 = vld [vmem:[%s399 + $0x630] sm:$0xff]
      %v623 = vld [vmem:[%s399 + $0x638] sm:$0xff]
      %v624 = vld [vmem:[%s399 + $0x640] sm:$0xff]
      %v625 = vld [vmem:[%s399 + $0x648] sm:$0xff]
      %v626 = vld [vmem:[%s399 + $0x650] sm:$0xff]
      %v627 = vld [vmem:[%s399 + $0x658] sm:$0xff]
      %v628 = vld [vmem:[%s399 + $0x660] sm:$0xff]
      %v629 = vld [vmem:[%s399 + $0x668] sm:$0xff]
      %v630 = vld [vmem:[%s399 + $0x670] sm:$0xff]
      %v631 = vld [vmem:[%s399 + $0x678] sm:$0xff]
      %v632 = vld [vmem:[%s399 + $0x680] sm:$0xff]
      %v633 = vld [vmem:[%s399 + $0x688] sm:$0xff]
      %v634 = vld [vmem:[%s399 + $0x690] sm:$0xff]
      %v635 = vld [vmem:[%s399 + $0x698] sm:$0xff]
      %v636 = vld [vmem:[%s399 + $0x6a0] sm:$0xff]
      %v637 = vld [vmem:[%s399 + $0x6a8] sm:$0xff]
      %v638 = vld [vmem:[%s399 + $0x6b0] sm:$0xff]
      %v639 = vld [vmem:[%s399 + $0x6b8] sm:$0xff]
      %v640 = vld [vmem:[%s399 + $0x6c0] sm:$0xff]
      %v641 = vld [vmem:[%s399 + $0x6c8] sm:$0xff]
      %v642 = vld [vmem:[%s399 + $0x6d0] sm:$0xff]
      %v643 = vld [vmem:[%s399 + $0x6d8] sm:$0xff]
      %v644 = vld [vmem:[%s399 + $0x6e0] sm:$0xff]
      %v645 = vld [vmem:[%s399 + $0x6e8] sm:$0xff]
      %v646 = vld [vmem:[%s399 + $0x6f0] sm:$0xff]
      %v647 = vld [vmem:[%s399 + $0x6f8] sm:$0xff]
      %v648 = vld [vmem:[%s399 + $0x700] sm:$0xff]
      %v649 = vld [vmem:[%s399 + $0x708] sm:$0xff]
      %v650 = vld [vmem:[%s399 + $0x710] sm:$0xff]
      %v651 = vld [vmem:[%s399 + $0x718] sm:$0xff]
      %v652 = vld [vmem:[%s399 + $0x720] sm:$0xff]
      %v653 = vld [vmem:[%s399 + $0x728] sm:$0xff]
      %v654 = vld [vmem:[%s399 + $0x730] sm:$0xff]
      %v655 = vld [vmem:[%s399 + $0x738] sm:$0xff]
      %v656 = vld [vmem:[%s399 + $0x740] sm:$0xff]
      %v657 = vld [vmem:[%s399 + $0x748] sm:$0xff]
      %v658 = vld [vmem:[%s399 + $0x750] sm:$0xff]
      %v659 = vld [vmem:[%s399 + $0x758] sm:$0xff]
      %v660 = vld [vmem:[%s399 + $0x760] sm:$0xff]
      %v661 = vld [vmem:[%s399 + $0x768] sm:$0xff]
      %v662 = vld [vmem:[%s399 + $0x770] sm:$0xff]
      %v663 = vld [vmem:[%s399 + $0x778] sm:$0xff]
      %v664 = vld [vmem:[%s399 + $0x780] sm:$0xff]
      %v665 = vld [vmem:[%s399 + $0x788] sm:$0xff]
      %v666 = vld [vmem:[%s399 + $0x790] sm:$0xff]
      %v667 = vld [vmem:[%s399 + $0x798] sm:$0xff]
      %v668 = vld [vmem:[%s399 + $0x7a0] sm:$0xff]
      %v669 = vld [vmem:[%s399 + $0x7a8] sm:$0xff]
      %v670 = vld [vmem:[%s399 + $0x7b0] sm:$0xff]
      %v671 = vld [vmem:[%s399 + $0x7b8] sm:$0xff]
      %v672 = vld [vmem:[%s399 + $0x7c0] sm:$0xff]
      %v673 = vld [vmem:[%s399 + $0x7c8] sm:$0xff]
      %v674 = vld [vmem:[%s399 + $0x7d0] sm:$0xff]
      %v675 = vld [vmem:[%s399 + $0x7d8] sm:$0xff]
      %v676 = vld [vmem:[%s399 + $0x7e0] sm:$0xff]
      %v677 = vld [vmem:[%s399 + $0x7e8] sm:$0xff]
      %v678 = vld [vmem:[%s399 + $0x7f0] sm:$0xff]
      %v679 = vld [vmem:[%s399 + $0x7f8] sm:$0xff]
      %v682 = vunpack.c.l.b16 %v422
      %v683 = vunpack.c.h.b16 %v422
      %v684 = vunpack.c.l.b16 %v423
      %v685 = vunpack.c.h.b16 %v423
      %v686 = vpack.c.b16 %v682, %v682
      %v687 = vpack.c.b16 %v683, %v683
      %v688 = vpack.c.b16 %v684, %v684
      %v689 = vpack.c.b16 %v685, %v685
      %v950 = vunpack.c.l.b16 %v424
      %v951 = vunpack.c.h.b16 %v424
      %v952 = vunpack.c.l.b16 %v425
      %v953 = vunpack.c.h.b16 %v425
      %v954 = vunpack.c.l.b16 %v426
      %v955 = vunpack.c.h.b16 %v426
      %v956 = vunpack.c.l.b16 %v427
      %v957 = vunpack.c.h.b16 %v427
      %v958 = vunpack.c.l.b16 %v428
      %v959 = vunpack.c.h.b16 %v428
      %v960 = vunpack.c.l.b16 %v429
      %v961 = vunpack.c.h.b16 %v429
      %v962 = vunpack.c.l.b16 %v430
      %v963 = vunpack.c.h.b16 %v430
      %v964 = vunpack.c.l.b16 %v431
      %v965 = vunpack.c.h.b16 %v431
      %v966 = vunpack.c.l.b16 %v432
      %v967 = vunpack.c.h.b16 %v432
      %v968 = vunpack.c.l.b16 %v433
      %v969 = vunpack.c.h.b16 %v433
      %v970 = vunpack.c.l.b16 %v434
      %v971 = vunpack.c.h.b16 %v434
      %v972 = vunpack.c.l.b16 %v435
      %v973 = vunpack.c.h.b16 %v435
      %v974 = vunpack.c.l.b16 %v436
      %v975 = vunpack.c.h.b16 %v436
      %v976 = vunpack.c.l.b16 %v437
      %v977 = vunpack.c.h.b16 %v437
      %v978 = vunpack.c.l.b16 %v438
      %v979 = vunpack.c.h.b16 %v438
      %v980 = vunpack.c.l.b16 %v439
      %v981 = vunpack.c.h.b16 %v439
      %v982 = vunpack.c.l.b16 %v440
      %v983 = vunpack.c.h.b16 %v440
      %v984 = vunpack.c.l.b16 %v441
      %v985 = vunpack.c.h.b16 %v441
      %v986 = vunpack.c.l.b16 %v442
      %v987 = vunpack.c.h.b16 %v442
      %v988 = vunpack.c.l.b16 %v443
      %v989 = vunpack.c.h.b16 %v443
      %v990 = vunpack.c.l.b16 %v444
      %v991 = vunpack.c.h.b16 %v444
      %v992 = vunpack.c.l.b16 %v445
      %v993 = vunpack.c.h.b16 %v445
      %v994 = vunpack.c.l.b16 %v446
      %v995 = vunpack.c.h.b16 %v446
      %v996 = vunpack.c.l.b16 %v447
      %v997 = vunpack.c.h.b16 %v447
      %v998 = vunpack.c.l.b16 %v448
      %v999 = vunpack.c.h.b16 %v448
      %v1000 = vunpack.c.l.b16 %v449
      %v1001 = vunpack.c.h.b16 %v449
      %v1002 = vunpack.c.l.b16 %v450
      %v1003 = vunpack.c.h.b16 %v450
      %v1004 = vunpack.c.l.b16 %v451
      %v1005 = vunpack.c.h.b16 %v451
      %v1006 = vunpack.c.l.b16 %v452
      %v1007 = vunpack.c.h.b16 %v452
      %v1008 = vunpack.c.l.b16 %v453
      %v1009 = vunpack.c.h.b16 %v453
      %v1010 = vunpack.c.l.b16 %v454
      %v1011 = vunpack.c.h.b16 %v454
      %v1012 = vunpack.c.l.b16 %v455
      %v1013 = vunpack.c.h.b16 %v455
      %v1014 = vunpack.c.l.b16 %v456
      %v1015 = vunpack.c.h.b16 %v456
      %v1016 = vunpack.c.l.b16 %v457
      %v1017 = vunpack.c.h.b16 %v457
      %v1018 = vunpack.c.l.b16 %v458
      %v1019 = vunpack.c.h.b16 %v458
      %v1020 = vunpack.c.l.b16 %v459
      %v1021 = vunpack.c.h.b16 %v459
      %v1022 = vunpack.c.l.b16 %v460
      %v1023 = vunpack.c.h.b16 %v460
      %v1024 = vunpack.c.l.b16 %v461
      %v1025 = vunpack.c.h.b16 %v461
      %v1026 = vunpack.c.l.b16 %v462
      %v1027 = vunpack.c.h.b16 %v462
      %v1028 = vunpack.c.l.b16 %v463
      %v1029 = vunpack.c.h.b16 %v463
      %v1030 = vunpack.c.l.b16 %v464
      %v1031 = vunpack.c.h.b16 %v464
      %v1032 = vunpack.c.l.b16 %v465
      %v1033 = vunpack.c.h.b16 %v465
      %v1034 = vunpack.c.l.b16 %v466
      %v1035 = vunpack.c.h.b16 %v466
      %v1036 = vunpack.c.l.b16 %v467
      %v1037 = vunpack.c.h.b16 %v467
      %v1038 = vunpack.c.l.b16 %v468
      %v1039 = vunpack.c.h.b16 %v468
      %v1040 = vunpack.c.l.b16 %v469
      %v1041 = vunpack.c.h.b16 %v469
      %v1042 = vunpack.c.l.b16 %v470
      %v1043 = vunpack.c.h.b16 %v470
      %v1044 = vunpack.c.l.b16 %v471
      %v1045 = vunpack.c.h.b16 %v471
      %v1046 = vunpack.c.l.b16 %v472
      %v1047 = vunpack.c.h.b16 %v472
      %v1048 = vunpack.c.l.b16 %v473
      %v1049 = vunpack.c.h.b16 %v473
      %v1050 = vunpack.c.l.b16 %v474
      %v1051 = vunpack.c.h.b16 %v474
      %v1052 = vunpack.c.l.b16 %v475
      %v1053 = vunpack.c.h.b16 %v475
      %v1054 = vunpack.c.l.b16 %v476
      %v1055 = vunpack.c.h.b16 %v476
      %v1056 = vunpack.c.l.b16 %v477
      %v1057 = vunpack.c.h.b16 %v477
      %v1058 = vunpack.c.l.b16 %v478
      %v1059 = vunpack.c.h.b16 %v478
      %v1060 = vunpack.c.l.b16 %v479
      %v1061 = vunpack.c.h.b16 %v479
      %v1062 = vunpack.c.l.b16 %v480
      %v1063 = vunpack.c.h.b16 %v480
      %v1064 = vunpack.c.l.b16 %v481
      %v1065 = vunpack.c.h.b16 %v481
      %v1066 = vunpack.c.l.b16 %v482
      %v1067 = vunpack.c.h.b16 %v482
      %v1068 = vunpack.c.l.b16 %v483
      %v1069 = vunpack.c.h.b16 %v483
      %v1070 = vunpack.c.l.b16 %v484
      %v1071 = vunpack.c.h.b16 %v484
      %v1072 = vunpack.c.l.b16 %v485
      %v1073 = vunpack.c.h.b16 %v485
      %v1074 = vunpack.c.l.b16 %v486
      %v1075 = vunpack.c.h.b16 %v486
      %v1076 = vunpack.c.l.b16 %v487
      %v1077 = vunpack.c.h.b16 %v487
      %v1078 = vunpack.c.l.b16 %v488
      %v1079 = vunpack.c.h.b16 %v488
      %v1080 = vunpack.c.l.b16 %v489
      %v1081 = vunpack.c.h.b16 %v489
      %v1082 = vunpack.c.l.b16 %v490
      %v1083 = vunpack.c.h.b16 %v490
      %v1084 = vunpack.c.l.b16 %v491
      %v1085 = vunpack.c.h.b16 %v491
      %v1086 = vunpack.c.l.b16 %v492
      %v1087 = vunpack.c.h.b16 %v492
      %v1088 = vunpack.c.l.b16 %v493
      %v1089 = vunpack.c.h.b16 %v493
      %v1090 = vunpack.c.l.b16 %v494
      %v1091 = vunpack.c.h.b16 %v494
      %v1092 = vunpack.c.l.b16 %v495
      %v1093 = vunpack.c.h.b16 %v495
      %v1094 = vunpack.c.l.b16 %v496
      %v1095 = vunpack.c.h.b16 %v496
      %v1096 = vunpack.c.l.b16 %v497
      %v1097 = vunpack.c.h.b16 %v497
      %v1098 = vunpack.c.l.b16 %v498
      %v1099 = vunpack.c.h.b16 %v498
      %v1100 = vunpack.c.l.b16 %v499
      %v1101 = vunpack.c.h.b16 %v499
      %v1102 = vunpack.c.l.b16 %v500
      %v1103 = vunpack.c.h.b16 %v500
      %v1104 = vunpack.c.l.b16 %v501
      %v1105 = vunpack.c.h.b16 %v501
      %v1106 = vunpack.c.l.b16 %v502
      %v1107 = vunpack.c.h.b16 %v502
      %v1108 = vunpack.c.l.b16 %v503
      %v1109 = vunpack.c.h.b16 %v503
      %v1110 = vunpack.c.l.b16 %v504
      %v1111 = vunpack.c.h.b16 %v504
      %v1112 = vunpack.c.l.b16 %v505
      %v1113 = vunpack.c.h.b16 %v505
      %v1114 = vunpack.c.l.b16 %v506
      %v1115 = vunpack.c.h.b16 %v506
      %v1116 = vunpack.c.l.b16 %v507
      %v1117 = vunpack.c.h.b16 %v507
      %v1118 = vunpack.c.l.b16 %v508
      %v1119 = vunpack.c.h.b16 %v508
      %v1120 = vunpack.c.l.b16 %v509
      %v1121 = vunpack.c.h.b16 %v509
      %v1122 = vunpack.c.l.b16 %v510
      %v1123 = vunpack.c.h.b16 %v510
      %v1124 = vunpack.c.l.b16 %v511
      %v1125 = vunpack.c.h.b16 %v511
      %v1126 = vunpack.c.l.b16 %v512
      %v1127 = vunpack.c.h.b16 %v512
      %v1128 = vunpack.c.l.b16 %v513
      %v1129 = vunpack.c.h.b16 %v513
      %v1130 = vunpack.c.l.b16 %v514
      %v1131 = vunpack.c.h.b16 %v514
      %v1132 = vunpack.c.l.b16 %v515
      %v1133 = vunpack.c.h.b16 %v515
      %v1134 = vunpack.c.l.b16 %v516
      %v1135 = vunpack.c.h.b16 %v516
      %v1136 = vunpack.c.l.b16 %v517
      %v1137 = vunpack.c.h.b16 %v517
      %v1138 = vunpack.c.l.b16 %v518
      %v1139 = vunpack.c.h.b16 %v518
      %v1140 = vunpack.c.l.b16 %v519
      %v1141 = vunpack.c.h.b16 %v519
      %v1142 = vunpack.c.l.b16 %v520
      %v1143 = vunpack.c.h.b16 %v520
      %v1144 = vunpack.c.l.b16 %v521
      %v1145 = vunpack.c.h.b16 %v521
      %v1146 = vunpack.c.l.b16 %v522
      %v1147 = vunpack.c.h.b16 %v522
      %v1148 = vunpack.c.l.b16 %v523
      %v1149 = vunpack.c.h.b16 %v523
      %v1150 = vunpack.c.l.b16 %v524
      %v1151 = vunpack.c.h.b16 %v524
      %v1152 = vunpack.c.l.b16 %v525
      %v1153 = vunpack.c.h.b16 %v525
      %v1154 = vunpack.c.l.b16 %v526
      %v1155 = vunpack.c.h.b16 %v526
      %v1156 = vunpack.c.l.b16 %v527
      %v1157 = vunpack.c.h.b16 %v527
      %v1158 = vunpack.c.l.b16 %v528
      %v1159 = vunpack.c.h.b16 %v528
      %v1160 = vunpack.c.l.b16 %v529
      %v1161 = vunpack.c.h.b16 %v529
      %v1162 = vunpack.c.l.b16 %v530
      %v1163 = vunpack.c.h.b16 %v530
      %v1164 = vunpack.c.l.b16 %v531
      %v1165 = vunpack.c.h.b16 %v531
      %v1166 = vunpack.c.l.b16 %v532
      %v1167 = vunpack.c.h.b16 %v532
      %v1168 = vunpack.c.l.b16 %v533
      %v1169 = vunpack.c.h.b16 %v533
      %v1170 = vunpack.c.l.b16 %v534
      %v1171 = vunpack.c.h.b16 %v534
      %v1172 = vunpack.c.l.b16 %v535
      %v1173 = vunpack.c.h.b16 %v535
      %v1174 = vunpack.c.l.b16 %v536
      %v1175 = vunpack.c.h.b16 %v536
      %v1176 = vunpack.c.l.b16 %v537
      %v1177 = vunpack.c.h.b16 %v537
      %v1178 = vunpack.c.l.b16 %v538
      %v1179 = vunpack.c.h.b16 %v538
      %v1180 = vunpack.c.l.b16 %v539
      %v1181 = vunpack.c.h.b16 %v539
      %v1182 = vunpack.c.l.b16 %v540
      %v1183 = vunpack.c.h.b16 %v540
      %v1184 = vunpack.c.l.b16 %v541
      %v1185 = vunpack.c.h.b16 %v541
      %v1186 = vunpack.c.l.b16 %v542
      %v1187 = vunpack.c.h.b16 %v542
      %v1188 = vunpack.c.l.b16 %v543
      %v1189 = vunpack.c.h.b16 %v543
      %v1190 = vunpack.c.l.b16 %v544
      %v1191 = vunpack.c.h.b16 %v544
      %v1192 = vunpack.c.l.b16 %v545
      %v1193 = vunpack.c.h.b16 %v545
      %v1194 = vunpack.c.l.b16 %v546
      %v1195 = vunpack.c.h.b16 %v546
      %v1196 = vunpack.c.l.b16 %v547
      %v1197 = vunpack.c.h.b16 %v547
      %v1198 = vunpack.c.l.b16 %v548
      %v1199 = vunpack.c.h.b16 %v548
      %v1200 = vunpack.c.l.b16 %v549
      %v1201 = vunpack.c.h.b16 %v549
      %v1202 = vunpack.c.l.b16 %v550
      %v1203 = vunpack.c.h.b16 %v550
      %v1204 = vunpack.c.l.b16 %v551
      %v1205 = vunpack.c.h.b16 %v551
      %v1206 = vunpack.c.l.b16 %v552
      %v1207 = vunpack.c.h.b16 %v552
      %v1208 = vunpack.c.l.b16 %v553
      %v1209 = vunpack.c.h.b16 %v553
      %v1210 = vunpack.c.l.b16 %v554
      %v1211 = vunpack.c.h.b16 %v554
      %v1212 = vunpack.c.l.b16 %v555
      %v1213 = vunpack.c.h.b16 %v555
      %v1214 = vunpack.c.l.b16 %v556
      %v1215 = vunpack.c.h.b16 %v556
      %v1216 = vunpack.c.l.b16 %v557
      %v1217 = vunpack.c.h.b16 %v557
      %v1218 = vunpack.c.l.b16 %v558
      %v1219 = vunpack.c.h.b16 %v558
      %v1220 = vunpack.c.l.b16 %v559
      %v1221 = vunpack.c.h.b16 %v559
      %v1222 = vunpack.c.l.b16 %v560
      %v1223 = vunpack.c.h.b16 %v560
      %v1224 = vunpack.c.l.b16 %v561
      %v1225 = vunpack.c.h.b16 %v561
      %v1226 = vunpack.c.l.b16 %v562
      %v1227 = vunpack.c.h.b16 %v562
      %v1228 = vunpack.c.l.b16 %v563
      %v1229 = vunpack.c.h.b16 %v563
      %v1230 = vunpack.c.l.b16 %v564
      %v1231 = vunpack.c.h.b16 %v564
      %v1232 = vunpack.c.l.b16 %v565
      %v1233 = vunpack.c.h.b16 %v565
      %v1234 = vunpack.c.l.b16 %v566
      %v1235 = vunpack.c.h.b16 %v566
      %v1236 = vunpack.c.l.b16 %v567
      %v1237 = vunpack.c.h.b16 %v567
      %v1238 = vunpack.c.l.b16 %v568
      %v1239 = vunpack.c.h.b16 %v568
      %v1240 = vunpack.c.l.b16 %v569
      %v1241 = vunpack.c.h.b16 %v569
      %v1242 = vunpack.c.l.b16 %v570
      %v1243 = vunpack.c.h.b16 %v570
      %v1244 = vunpack.c.l.b16 %v571
      %v1245 = vunpack.c.h.b16 %v571
      %v1246 = vunpack.c.l.b16 %v572
      %v1247 = vunpack.c.h.b16 %v572
      %v1248 = vunpack.c.l.b16 %v573
      %v1249 = vunpack.c.h.b16 %v573
      %v1250 = vunpack.c.l.b16 %v574
      %v1251 = vunpack.c.h.b16 %v574
      %v1252 = vunpack.c.l.b16 %v575
      %v1253 = vunpack.c.h.b16 %v575
      %v1254 = vunpack.c.l.b16 %v576
      %v1255 = vunpack.c.h.b16 %v576
      %v1256 = vunpack.c.l.b16 %v577
      %v1257 = vunpack.c.h.b16 %v577
      %v1258 = vunpack.c.l.b16 %v578
      %v1259 = vunpack.c.h.b16 %v578
      %v1260 = vunpack.c.l.b16 %v579
      %v1261 = vunpack.c.h.b16 %v579
      %v1262 = vunpack.c.l.b16 %v580
      %v1263 = vunpack.c.h.b16 %v580
      %v1264 = vunpack.c.l.b16 %v581
      %v1265 = vunpack.c.h.b16 %v581
      %v1266 = vunpack.c.l.b16 %v582
      %v1267 = vunpack.c.h.b16 %v582
      %v1268 = vunpack.c.l.b16 %v583
      %v1269 = vunpack.c.h.b16 %v583
      %v1270 = vunpack.c.l.b16 %v584
      %v1271 = vunpack.c.h.b16 %v584
      %v1272 = vunpack.c.l.b16 %v585
      %v1273 = vunpack.c.h.b16 %v585
      %v1274 = vunpack.c.l.b16 %v586
      %v1275 = vunpack.c.h.b16 %v586
      %v1276 = vunpack.c.l.b16 %v587
      %v1277 = vunpack.c.h.b16 %v587
      %v1278 = vunpack.c.l.b16 %v588
      %v1279 = vunpack.c.h.b16 %v588
      %v1280 = vunpack.c.l.b16 %v589
      %v1281 = vunpack.c.h.b16 %v589
      %v1282 = vunpack.c.l.b16 %v590
      %v1283 = vunpack.c.h.b16 %v590
      %v1284 = vunpack.c.l.b16 %v591
      %v1285 = vunpack.c.h.b16 %v591
      %v1286 = vunpack.c.l.b16 %v592
      %v1287 = vunpack.c.h.b16 %v592
      %v1288 = vunpack.c.l.b16 %v593
      %v1289 = vunpack.c.h.b16 %v593
      %v1290 = vunpack.c.l.b16 %v594
      %v1291 = vunpack.c.h.b16 %v594
      %v1292 = vunpack.c.l.b16 %v595
      %v1293 = vunpack.c.h.b16 %v595
      %v1294 = vunpack.c.l.b16 %v596
      %v1295 = vunpack.c.h.b16 %v596
      %v1296 = vunpack.c.l.b16 %v597
      %v1297 = vunpack.c.h.b16 %v597
      %v1298 = vunpack.c.l.b16 %v598
      %v1299 = vunpack.c.h.b16 %v598
      %v1300 = vunpack.c.l.b16 %v599
      %v1301 = vunpack.c.h.b16 %v599
      %v1302 = vunpack.c.l.b16 %v600
      %v1303 = vunpack.c.h.b16 %v600
      %v1304 = vunpack.c.l.b16 %v601
      %v1305 = vunpack.c.h.b16 %v601
      %v1306 = vunpack.c.l.b16 %v602
      %v1307 = vunpack.c.h.b16 %v602
      %v1308 = vunpack.c.l.b16 %v603
      %v1309 = vunpack.c.h.b16 %v603
      %v1310 = vunpack.c.l.b16 %v604
      %v1311 = vunpack.c.h.b16 %v604
      %v1312 = vunpack.c.l.b16 %v605
      %v1313 = vunpack.c.h.b16 %v605
      %v1314 = vunpack.c.l.b16 %v606
      %v1315 = vunpack.c.h.b16 %v606
      %v1316 = vunpack.c.l.b16 %v607
      %v1317 = vunpack.c.h.b16 %v607
      %v1318 = vunpack.c.l.b16 %v608
      %v1319 = vunpack.c.h.b16 %v608
      %v1320 = vunpack.c.l.b16 %v609
      %v1321 = vunpack.c.h.b16 %v609
      %v1322 = vunpack.c.l.b16 %v610
      %v1323 = vunpack.c.h.b16 %v610
      %v1324 = vunpack.c.l.b16 %v611
      %v1325 = vunpack.c.h.b16 %v611
      %v1326 = vunpack.c.l.b16 %v612
      %v1327 = vunpack.c.h.b16 %v612
      %v1328 = vunpack.c.l.b16 %v613
      %v1329 = vunpack.c.h.b16 %v613
      %v1330 = vunpack.c.l.b16 %v614
      %v1331 = vunpack.c.h.b16 %v614
      %v1332 = vunpack.c.l.b16 %v615
      %v1333 = vunpack.c.h.b16 %v615
      %v1334 = vunpack.c.l.b16 %v616
      %v1335 = vunpack.c.h.b16 %v616
      %v1336 = vunpack.c.l.b16 %v617
      %v1337 = vunpack.c.h.b16 %v617
      %v1338 = vunpack.c.l.b16 %v618
      %v1339 = vunpack.c.h.b16 %v618
      %v1340 = vunpack.c.l.b16 %v619
      %v1341 = vunpack.c.h.b16 %v619
      %v1342 = vunpack.c.l.b16 %v620
      %v1343 = vunpack.c.h.b16 %v620
      %v1344 = vunpack.c.l.b16 %v621
      %v1345 = vunpack.c.h.b16 %v621
      %v1346 = vunpack.c.l.b16 %v622
      %v1347 = vunpack.c.h.b16 %v622
      %v1348 = vunpack.c.l.b16 %v623
      %v1349 = vunpack.c.h.b16 %v623
      %v1350 = vunpack.c.l.b16 %v624
      %v1351 = vunpack.c.h.b16 %v624
      %v1352 = vunpack.c.l.b16 %v625
      %v1353 = vunpack.c.h.b16 %v625
      %v1354 = vunpack.c.l.b16 %v626
      %v1355 = vunpack.c.h.b16 %v626
      %v1356 = vunpack.c.l.b16 %v627
      %v1357 = vunpack.c.h.b16 %v627
      %v1358 = vunpack.c.l.b16 %v628
      %v1359 = vunpack.c.h.b16 %v628
      %v1360 = vunpack.c.l.b16 %v629
      %v1361 = vunpack.c.h.b16 %v629
      %v1362 = vunpack.c.l.b16 %v630
      %v1363 = vunpack.c.h.b16 %v630
      %v1364 = vunpack.c.l.b16 %v631
      %v1365 = vunpack.c.h.b16 %v631
      %v1366 = vunpack.c.l.b16 %v632
      %v1367 = vunpack.c.h.b16 %v632
      %v1368 = vunpack.c.l.b16 %v633
      %v1369 = vunpack.c.h.b16 %v633
      %v1370 = vunpack.c.l.b16 %v634
      %v1371 = vunpack.c.h.b16 %v634
      %v1372 = vunpack.c.l.b16 %v635
      %v1373 = vunpack.c.h.b16 %v635
      %v1374 = vunpack.c.l.b16 %v636
      %v1375 = vunpack.c.h.b16 %v636
      %v1376 = vunpack.c.l.b16 %v637
      %v1377 = vunpack.c.h.b16 %v637
      %v1378 = vunpack.c.l.b16 %v638
      %v1379 = vunpack.c.h.b16 %v638
      %v1380 = vunpack.c.l.b16 %v639
      %v1381 = vunpack.c.h.b16 %v639
      %v1382 = vunpack.c.l.b16 %v640
      %v1383 = vunpack.c.h.b16 %v640
      %v1384 = vunpack.c.l.b16 %v641
      %v1385 = vunpack.c.h.b16 %v641
      %v1386 = vunpack.c.l.b16 %v642
      %v1387 = vunpack.c.h.b16 %v642
      %v1388 = vunpack.c.l.b16 %v643
      %v1389 = vunpack.c.h.b16 %v643
      %v1390 = vunpack.c.l.b16 %v644
      %v1391 = vunpack.c.h.b16 %v644
      %v1392 = vunpack.c.l.b16 %v645
      %v1393 = vunpack.c.h.b16 %v645
      %v1394 = vunpack.c.l.b16 %v646
      %v1395 = vunpack.c.h.b16 %v646
      %v1396 = vunpack.c.l.b16 %v647
      %v1397 = vunpack.c.h.b16 %v647
      %v1398 = vunpack.c.l.b16 %v648
      %v1399 = vunpack.c.h.b16 %v648
      %v1400 = vunpack.c.l.b16 %v649
      %v1401 = vunpack.c.h.b16 %v649
      %v1402 = vunpack.c.l.b16 %v650
      %v1403 = vunpack.c.h.b16 %v650
      %v1404 = vunpack.c.l.b16 %v651
      %v1405 = vunpack.c.h.b16 %v651
      %v1406 = vunpack.c.l.b16 %v652
      %v1407 = vunpack.c.h.b16 %v652
      %v1408 = vunpack.c.l.b16 %v653
      %v1409 = vunpack.c.h.b16 %v653
      %v1410 = vunpack.c.l.b16 %v654
      %v1411 = vunpack.c.h.b16 %v654
      %v1412 = vunpack.c.l.b16 %v655
      %v1413 = vunpack.c.h.b16 %v655
      %v1414 = vunpack.c.l.b16 %v656
      %v1415 = vunpack.c.h.b16 %v656
      %v1416 = vunpack.c.l.b16 %v657
      %v1417 = vunpack.c.h.b16 %v657
      %v1418 = vunpack.c.l.b16 %v658
      %v1419 = vunpack.c.h.b16 %v658
      %v1420 = vunpack.c.l.b16 %v659
      %v1421 = vunpack.c.h.b16 %v659
      %v1422 = vunpack.c.l.b16 %v660
      %v1423 = vunpack.c.h.b16 %v660
      %v1424 = vunpack.c.l.b16 %v661
      %v1425 = vunpack.c.h.b16 %v661
      %v1426 = vunpack.c.l.b16 %v662
      %v1427 = vunpack.c.h.b16 %v662
      %v1428 = vunpack.c.l.b16 %v663
      %v1429 = vunpack.c.h.b16 %v663
      %v1430 = vunpack.c.l.b16 %v664
      %v1431 = vunpack.c.h.b16 %v664
      %v1432 = vunpack.c.l.b16 %v665
      %v1433 = vunpack.c.h.b16 %v665
      %v1434 = vunpack.c.l.b16 %v666
      %v1435 = vunpack.c.h.b16 %v666
      %v1436 = vunpack.c.l.b16 %v667
      %v1437 = vunpack.c.h.b16 %v667
      %v1438 = vunpack.c.l.b16 %v668
      %v1439 = vunpack.c.h.b16 %v668
      %v1440 = vunpack.c.l.b16 %v669
      %v1441 = vunpack.c.h.b16 %v669
      %v1442 = vunpack.c.l.b16 %v670
      %v1443 = vunpack.c.h.b16 %v670
      %v1444 = vunpack.c.l.b16 %v671
      %v1445 = vunpack.c.h.b16 %v671
      %v1446 = vunpack.c.l.b16 %v672
      %v1447 = vunpack.c.h.b16 %v672
      %v1448 = vunpack.c.l.b16 %v673
      %v1449 = vunpack.c.h.b16 %v673
      %v1450 = vunpack.c.l.b16 %v674
      %v1451 = vunpack.c.h.b16 %v674
      %v1452 = vunpack.c.l.b16 %v675
      %v1453 = vunpack.c.h.b16 %v675
      %v1454 = vunpack.c.l.b16 %v676
      %v1455 = vunpack.c.h.b16 %v676
      %v1456 = vunpack.c.l.b16 %v677
      %v1457 = vunpack.c.h.b16 %v677
      %v1458 = vunpack.c.l.b16 %v678
      %v1459 = vunpack.c.h.b16 %v678
      %v1460 = vunpack.c.l.b16 %v679
      %v1461 = vunpack.c.h.b16 %v679
      %v1462 = vpack.c.b16 %v958, %v950
      %v1463 = vpack.c.b16 %v959, %v951
      %v1464 = vpack.c.b16 %v960, %v952
      %v1465 = vpack.c.b16 %v961, %v953
      %v1466 = vpack.c.b16 %v962, %v954
      %v1467 = vpack.c.b16 %v963, %v955
      %v1468 = vpack.c.b16 %v964, %v956
      %v1469 = vpack.c.b16 %v965, %v957
      %v1470 = vpack.c.b16 %v974, %v966
      %v1471 = vpack.c.b16 %v975, %v967
      %v1472 = vpack.c.b16 %v976, %v968
      %v1473 = vpack.c.b16 %v977, %v969
      %v1474 = vpack.c.b16 %v978, %v970
      %v1475 = vpack.c.b16 %v979, %v971
      %v1476 = vpack.c.b16 %v980, %v972
      %v1477 = vpack.c.b16 %v981, %v973
      %v1478 = vpack.c.b16 %v990, %v982
      %v1479 = vpack.c.b16 %v991, %v983
      %v1480 = vpack.c.b16 %v992, %v984
      %v1481 = vpack.c.b16 %v993, %v985
      %v1482 = vpack.c.b16 %v994, %v986
      %v1483 = vpack.c.b16 %v995, %v987
      %v1484 = vpack.c.b16 %v996, %v988
      %v1485 = vpack.c.b16 %v997, %v989
      %v1486 = vpack.c.b16 %v1006, %v998
      %v1487 = vpack.c.b16 %v1007, %v999
      %v1488 = vpack.c.b16 %v1008, %v1000
      %v1489 = vpack.c.b16 %v1009, %v1001
      %v1490 = vpack.c.b16 %v1010, %v1002
      %v1491 = vpack.c.b16 %v1011, %v1003
      %v1492 = vpack.c.b16 %v1012, %v1004
      %v1493 = vpack.c.b16 %v1013, %v1005
      %v1494 = vpack.c.b16 %v1022, %v1014
      %v1495 = vpack.c.b16 %v1023, %v1015
      %v1496 = vpack.c.b16 %v1024, %v1016
      %v1497 = vpack.c.b16 %v1025, %v1017
      %v1498 = vpack.c.b16 %v1026, %v1018
      %v1499 = vpack.c.b16 %v1027, %v1019
      %v1500 = vpack.c.b16 %v1028, %v1020
      %v1501 = vpack.c.b16 %v1029, %v1021
      %v1502 = vpack.c.b16 %v1038, %v1030
      %v1503 = vpack.c.b16 %v1039, %v1031
      %v1504 = vpack.c.b16 %v1040, %v1032
      %v1505 = vpack.c.b16 %v1041, %v1033
      %v1506 = vpack.c.b16 %v1042, %v1034
      %v1507 = vpack.c.b16 %v1043, %v1035
      %v1508 = vpack.c.b16 %v1044, %v1036
      %v1509 = vpack.c.b16 %v1045, %v1037
      %v1510 = vpack.c.b16 %v1054, %v1046
      %v1511 = vpack.c.b16 %v1055, %v1047
      %v1512 = vpack.c.b16 %v1056, %v1048
      %v1513 = vpack.c.b16 %v1057, %v1049
      %v1514 = vpack.c.b16 %v1058, %v1050
      %v1515 = vpack.c.b16 %v1059, %v1051
      %v1516 = vpack.c.b16 %v1060, %v1052
      %v1517 = vpack.c.b16 %v1061, %v1053
      %v1518 = vpack.c.b16 %v1070, %v1062
      %v1519 = vpack.c.b16 %v1071, %v1063
      %v1520 = vpack.c.b16 %v1072, %v1064
      %v1521 = vpack.c.b16 %v1073, %v1065
      %v1522 = vpack.c.b16 %v1074, %v1066
      %v1523 = vpack.c.b16 %v1075, %v1067
      %v1524 = vpack.c.b16 %v1076, %v1068
      %v1525 = vpack.c.b16 %v1077, %v1069
      %v1526 = vpack.c.b16 %v1086, %v1078
      %v1527 = vpack.c.b16 %v1087, %v1079
      %v1528 = vpack.c.b16 %v1088, %v1080
      %v1529 = vpack.c.b16 %v1089, %v1081
      %v1530 = vpack.c.b16 %v1090, %v1082
      %v1531 = vpack.c.b16 %v1091, %v1083
      %v1532 = vpack.c.b16 %v1092, %v1084
      %v1533 = vpack.c.b16 %v1093, %v1085
      %v1534 = vpack.c.b16 %v1102, %v1094
      %v1535 = vpack.c.b16 %v1103, %v1095
      %v1536 = vpack.c.b16 %v1104, %v1096
      %v1537 = vpack.c.b16 %v1105, %v1097
      %v1538 = vpack.c.b16 %v1106, %v1098
      %v1539 = vpack.c.b16 %v1107, %v1099
      %v1540 = vpack.c.b16 %v1108, %v1100
      %v1541 = vpack.c.b16 %v1109, %v1101
      %v1542 = vpack.c.b16 %v1118, %v1110
      %v1543 = vpack.c.b16 %v1119, %v1111
      %v1544 = vpack.c.b16 %v1120, %v1112
      %v1545 = vpack.c.b16 %v1121, %v1113
      %v1546 = vpack.c.b16 %v1122, %v1114
      %v1547 = vpack.c.b16 %v1123, %v1115
      %v1548 = vpack.c.b16 %v1124, %v1116
      %v1549 = vpack.c.b16 %v1125, %v1117
      %v1550 = vpack.c.b16 %v1134, %v1126
      %v1551 = vpack.c.b16 %v1135, %v1127
      %v1552 = vpack.c.b16 %v1136, %v1128
      %v1553 = vpack.c.b16 %v1137, %v1129
      %v1554 = vpack.c.b16 %v1138, %v1130
      %v1555 = vpack.c.b16 %v1139, %v1131
      %v1556 = vpack.c.b16 %v1140, %v1132
      %v1557 = vpack.c.b16 %v1141, %v1133
      %v1558 = vpack.c.b16 %v1150, %v1142
      %v1559 = vpack.c.b16 %v1151, %v1143
      %v1560 = vpack.c.b16 %v1152, %v1144
      %v1561 = vpack.c.b16 %v1153, %v1145
      %v1562 = vpack.c.b16 %v1154, %v1146
      %v1563 = vpack.c.b16 %v1155, %v1147
      %v1564 = vpack.c.b16 %v1156, %v1148
      %v1565 = vpack.c.b16 %v1157, %v1149
      %v1566 = vpack.c.b16 %v1166, %v1158
      %v1567 = vpack.c.b16 %v1167, %v1159
      %v1568 = vpack.c.b16 %v1168, %v1160
      %v1569 = vpack.c.b16 %v1169, %v1161
      %v1570 = vpack.c.b16 %v1170, %v1162
      %v1571 = vpack.c.b16 %v1171, %v1163
      %v1572 = vpack.c.b16 %v1172, %v1164
      %v1573 = vpack.c.b16 %v1173, %v1165
      %v1574 = vpack.c.b16 %v1182, %v1174
      %v1575 = vpack.c.b16 %v1183, %v1175
      %v1576 = vpack.c.b16 %v1184, %v1176
      %v1577 = vpack.c.b16 %v1185, %v1177
      %v1578 = vpack.c.b16 %v1186, %v1178
      %v1579 = vpack.c.b16 %v1187, %v1179
      %v1580 = vpack.c.b16 %v1188, %v1180
      %v1581 = vpack.c.b16 %v1189, %v1181
      %v1582 = vpack.c.b16 %v1198, %v1190
      %v1583 = vpack.c.b16 %v1199, %v1191
      %v1584 = vpack.c.b16 %v1200, %v1192
      %v1585 = vpack.c.b16 %v1201, %v1193
      %v1586 = vpack.c.b16 %v1202, %v1194
      %v1587 = vpack.c.b16 %v1203, %v1195
      %v1588 = vpack.c.b16 %v1204, %v1196
      %v1589 = vpack.c.b16 %v1205, %v1197
      %v1590 = vpack.c.b16 %v1214, %v1206
      %v1591 = vpack.c.b16 %v1215, %v1207
      %v1592 = vpack.c.b16 %v1216, %v1208
      %v1593 = vpack.c.b16 %v1217, %v1209
      %v1594 = vpack.c.b16 %v1218, %v1210
      %v1595 = vpack.c.b16 %v1219, %v1211
      %v1596 = vpack.c.b16 %v1220, %v1212
      %v1597 = vpack.c.b16 %v1221, %v1213
      %v1598 = vpack.c.b16 %v1230, %v1222
      %v1599 = vpack.c.b16 %v1231, %v1223
      %v1600 = vpack.c.b16 %v1232, %v1224
      %v1601 = vpack.c.b16 %v1233, %v1225
      %v1602 = vpack.c.b16 %v1234, %v1226
      %v1603 = vpack.c.b16 %v1235, %v1227
      %v1604 = vpack.c.b16 %v1236, %v1228
      %v1605 = vpack.c.b16 %v1237, %v1229
      %v1606 = vpack.c.b16 %v1246, %v1238
      %v1607 = vpack.c.b16 %v1247, %v1239
      %v1608 = vpack.c.b16 %v1248, %v1240
      %v1609 = vpack.c.b16 %v1249, %v1241
      %v1610 = vpack.c.b16 %v1250, %v1242
      %v1611 = vpack.c.b16 %v1251, %v1243
      %v1612 = vpack.c.b16 %v1252, %v1244
      %v1613 = vpack.c.b16 %v1253, %v1245
      %v1614 = vpack.c.b16 %v1262, %v1254
      %v1615 = vpack.c.b16 %v1263, %v1255
      %v1616 = vpack.c.b16 %v1264, %v1256
      %v1617 = vpack.c.b16 %v1265, %v1257
      %v1618 = vpack.c.b16 %v1266, %v1258
      %v1619 = vpack.c.b16 %v1267, %v1259
      %v1620 = vpack.c.b16 %v1268, %v1260
      %v1621 = vpack.c.b16 %v1269, %v1261
      %v1622 = vpack.c.b16 %v1278, %v1270
      %v1623 = vpack.c.b16 %v1279, %v1271
      %v1624 = vpack.c.b16 %v1280, %v1272
      %v1625 = vpack.c.b16 %v1281, %v1273
      %v1626 = vpack.c.b16 %v1282, %v1274
      %v1627 = vpack.c.b16 %v1283, %v1275
      %v1628 = vpack.c.b16 %v1284, %v1276
      %v1629 = vpack.c.b16 %v1285, %v1277
      %v1630 = vpack.c.b16 %v1294, %v1286
      %v1631 = vpack.c.b16 %v1295, %v1287
      %v1632 = vpack.c.b16 %v1296, %v1288
      %v1633 = vpack.c.b16 %v1297, %v1289
      %v1634 = vpack.c.b16 %v1298, %v1290
      %v1635 = vpack.c.b16 %v1299, %v1291
      %v1636 = vpack.c.b16 %v1300, %v1292
      %v1637 = vpack.c.b16 %v1301, %v1293
      %v1638 = vpack.c.b16 %v1310, %v1302
      %v1639 = vpack.c.b16 %v1311, %v1303
      %v1640 = vpack.c.b16 %v1312, %v1304
      %v1641 = vpack.c.b16 %v1313, %v1305
      %v1642 = vpack.c.b16 %v1314, %v1306
      %v1643 = vpack.c.b16 %v1315, %v1307
      %v1644 = vpack.c.b16 %v1316, %v1308
      %v1645 = vpack.c.b16 %v1317, %v1309
      %v1646 = vpack.c.b16 %v1326, %v1318
      %v1647 = vpack.c.b16 %v1327, %v1319
      %v1648 = vpack.c.b16 %v1328, %v1320
      %v1649 = vpack.c.b16 %v1329, %v1321
      %v1650 = vpack.c.b16 %v1330, %v1322
      %v1651 = vpack.c.b16 %v1331, %v1323
      %v1652 = vpack.c.b16 %v1332, %v1324
      %v1653 = vpack.c.b16 %v1333, %v1325
      %v1654 = vpack.c.b16 %v1342, %v1334
      %v1655 = vpack.c.b16 %v1343, %v1335
      %v1656 = vpack.c.b16 %v1344, %v1336
      %v1657 = vpack.c.b16 %v1345, %v1337
      %v1658 = vpack.c.b16 %v1346, %v1338
      %v1659 = vpack.c.b16 %v1347, %v1339
      %v1660 = vpack.c.b16 %v1348, %v1340
      %v1661 = vpack.c.b16 %v1349, %v1341
      %v1662 = vpack.c.b16 %v1358, %v1350
      %v1663 = vpack.c.b16 %v1359, %v1351
      %v1664 = vpack.c.b16 %v1360, %v1352
      %v1665 = vpack.c.b16 %v1361, %v1353
      %v1666 = vpack.c.b16 %v1362, %v1354
      %v1667 = vpack.c.b16 %v1363, %v1355
      %v1668 = vpack.c.b16 %v1364, %v1356
      %v1669 = vpack.c.b16 %v1365, %v1357
      %v1670 = vpack.c.b16 %v1374, %v1366
      %v1671 = vpack.c.b16 %v1375, %v1367
      %v1672 = vpack.c.b16 %v1376, %v1368
      %v1673 = vpack.c.b16 %v1377, %v1369
      %v1674 = vpack.c.b16 %v1378, %v1370
      %v1675 = vpack.c.b16 %v1379, %v1371
      %v1676 = vpack.c.b16 %v1380, %v1372
      %v1677 = vpack.c.b16 %v1381, %v1373
      %v1678 = vpack.c.b16 %v1390, %v1382
      %v1679 = vpack.c.b16 %v1391, %v1383
      %v1680 = vpack.c.b16 %v1392, %v1384
      %v1681 = vpack.c.b16 %v1393, %v1385
      %v1682 = vpack.c.b16 %v1394, %v1386
      %v1683 = vpack.c.b16 %v1395, %v1387
      %v1684 = vpack.c.b16 %v1396, %v1388
      %v1685 = vpack.c.b16 %v1397, %v1389
      %v1686 = vpack.c.b16 %v1406, %v1398
      %v1687 = vpack.c.b16 %v1407, %v1399
      %v1688 = vpack.c.b16 %v1408, %v1400
      %v1689 = vpack.c.b16 %v1409, %v1401
      %v1690 = vpack.c.b16 %v1410, %v1402
      %v1691 = vpack.c.b16 %v1411, %v1403
      %v1692 = vpack.c.b16 %v1412, %v1404
      %v1693 = vpack.c.b16 %v1413, %v1405
      %v1694 = vpack.c.b16 %v1422, %v1414
      %v1695 = vpack.c.b16 %v1423, %v1415
      %v1696 = vpack.c.b16 %v1424, %v1416
      %v1697 = vpack.c.b16 %v1425, %v1417
      %v1698 = vpack.c.b16 %v1426, %v1418
      %v1699 = vpack.c.b16 %v1427, %v1419
      %v1700 = vpack.c.b16 %v1428, %v1420
      %v1701 = vpack.c.b16 %v1429, %v1421
      %v1702 = vpack.c.b16 %v1438, %v1430
      %v1703 = vpack.c.b16 %v1439, %v1431
      %v1704 = vpack.c.b16 %v1440, %v1432
      %v1705 = vpack.c.b16 %v1441, %v1433
      %v1706 = vpack.c.b16 %v1442, %v1434
      %v1707 = vpack.c.b16 %v1443, %v1435
      %v1708 = vpack.c.b16 %v1444, %v1436
      %v1709 = vpack.c.b16 %v1445, %v1437
      %v1710 = vpack.c.b16 %v1454, %v1446
      %v1711 = vpack.c.b16 %v1455, %v1447
      %v1712 = vpack.c.b16 %v1456, %v1448
      %v1713 = vpack.c.b16 %v1457, %v1449
      %v1714 = vpack.c.b16 %v1458, %v1450
      %v1715 = vpack.c.b16 %v1459, %v1451
      %v1716 = vpack.c.b16 %v1460, %v1452
      %v1717 = vpack.c.b16 %v1461, %v1453
      %1974 = vmatprep.subr.bf16.mxu0 %v1519
      %1975 = vmatpush1.bf16.msra.mxu0 %v1518
      %1976 = vmatprep.subr.bf16.mxu0 %v1511
      %1977 = vmatpush1.bf16.msra.mxu0 %v1510
      %1978 = vmatprep.subr.bf16.mxu0 %v1503
      %1979 = vmatpush1.bf16.msra.mxu0 %v1502
      %1980 = vmatprep.subr.bf16.mxu0 %v1495
      %1981 = vmatpush1.bf16.msra.mxu0 %v1494
      %1982 = vmatprep.subr.bf16.mxu0 %v1487
      %1983 = vmatpush1.bf16.msra.mxu0 %v1486
      %1984 = vmatprep.subr.bf16.mxu0 %v1479
      %1985 = vmatpush1.bf16.msra.mxu0 %v1478
      %1986 = vmatprep.subr.bf16.mxu0 %v1471
      %1987 = vmatpush1.bf16.msra.mxu0 %v1470
      %1988 = vmatprep.subr.bf16.mxu0 %v1463
      %1989 = vmatpush1.bf16.msra.mxu0 %v1462
      %1990 = vmatprep.subr.bf16.mxu0 %v1583
      %1991 = vmatpush2.bf16.msra.mxu0 %v1582
      %1992 = vmatprep.subr.bf16.mxu0 %v1575
      %1993 = vmatpush2.bf16.msra.mxu0 %v1574
      %1994 = vmatprep.subr.bf16.mxu0 %v1567
      %1995 = vmatpush2.bf16.msra.mxu0 %v1566
      %1996 = vmatprep.subr.bf16.mxu0 %v1559
      %1997 = vmatpush2.bf16.msra.mxu0 %v1558
      %1998 = vmatprep.subr.bf16.mxu0 %v1551
      %1999 = vmatpush2.bf16.msra.mxu0 %v1550
      %2000 = vmatprep.subr.bf16.mxu0 %v1543
      %2001 = vmatpush2.bf16.msra.mxu0 %v1542
      %2002 = vmatprep.subr.bf16.mxu0 %v1535
      %2003 = vmatpush2.bf16.msra.mxu0 %v1534
      %2004 = vmatprep.subr.bf16.mxu0 %v1527
      %2005 = vmatpush2.bf16.msra.mxu0 %v1526
      %2006 = vmatprep.mubr.bf16.mxu0 %v687
      %2007 = vmatmul.mubr.bf16.gmra.mxu0 %v686
      %v2008 = vpop.f32.mrf.mxu0
      %v2009 = vadd.f32 0.0, %v2008
      %v2010 = vpop.f32.mrf.mxu0
      %v2011 = vadd.f32 0.0, %v2010
      %v2012 = vpop.f32.mrf.mxu0
      %v2013 = vpop.f32.mrf.mxu0
      %2014 = vdwg.mxu0
      %2015 = vmatprep.subr.bf16.mxu0 %v1647
      %2016 = vmatpush1.bf16.msra.mxu0 %v1646
      %2017 = vmatprep.subr.bf16.mxu0 %v1639
      %2018 = vmatpush1.bf16.msra.mxu0 %v1638
      %2019 = vmatprep.subr.bf16.mxu0 %v1631
      %2020 = vmatpush1.bf16.msra.mxu0 %v1630
      %2021 = vmatprep.subr.bf16.mxu0 %v1623
      %2022 = vmatpush1.bf16.msra.mxu0 %v1622
      %2023 = vmatprep.subr.bf16.mxu0 %v1615
      %2024 = vmatpush1.bf16.msra.mxu0 %v1614
      %2025 = vmatprep.subr.bf16.mxu0 %v1607
      %2026 = vmatpush1.bf16.msra.mxu0 %v1606
      %2027 = vmatprep.subr.bf16.mxu0 %v1599
      %2028 = vmatpush1.bf16.msra.mxu0 %v1598
      %2029 = vmatprep.subr.bf16.mxu0 %v1591
      %2030 = vmatpush1.bf16.msra.mxu0 %v1590
      %2031 = vmatprep.subr.bf16.mxu0 %v1711
      %2032 = vmatpush2.bf16.msra.mxu0 %v1710
      %2033 = vmatprep.subr.bf16.mxu0 %v1703
      %2034 = vmatpush2.bf16.msra.mxu0 %v1702
      %2035 = vmatprep.subr.bf16.mxu0 %v1695
      %2036 = vmatpush2.bf16.msra.mxu0 %v1694
      %2037 = vmatprep.subr.bf16.mxu0 %v1687
      %2038 = vmatpush2.bf16.msra.mxu0 %v1686
      %2039 = vmatprep.subr.bf16.mxu0 %v1679
      %2040 = vmatpush2.bf16.msra.mxu0 %v1678
      %2041 = vmatprep.subr.bf16.mxu0 %v1671
      %2042 = vmatpush2.bf16.msra.mxu0 %v1670
      %2043 = vmatprep.subr.bf16.mxu0 %v1663
      %2044 = vmatpush2.bf16.msra.mxu0 %v1662
      %2045 = vmatprep.subr.bf16.mxu0 %v1655
      %2046 = vmatpush2.bf16.msra.mxu0 %v1654
      %2047 = vmatprep.mubr.bf16.mxu0 %v689
      %2048 = vmatmul.mubr.bf16.gmra.mxu0 %v688
      %v2049 = vpop.f32.mrf.mxu0
      %v2050 = vadd.f32 %v2009, %v2049
      %v2051 = vpop.f32.mrf.mxu0
      %v2052 = vadd.f32 %v2011, %v2051
      %v2053 = vpop.f32.mrf.mxu0
      %v2054 = vpop.f32.mrf.mxu0
      %2055 = vdwg.mxu0
      %2056 = vmatprep.subr.bf16.mxu0 %v1521
      %2057 = vmatpush1.bf16.msra.mxu0 %v1520
      %2058 = vmatprep.subr.bf16.mxu0 %v1513
      %2059 = vmatpush1.bf16.msra.mxu0 %v1512
      %2060 = vmatprep.subr.bf16.mxu0 %v1505
      %2061 = vmatpush1.bf16.msra.mxu0 %v1504
      %2062 = vmatprep.subr.bf16.mxu0 %v1497
      %2063 = vmatpush1.bf16.msra.mxu0 %v1496
      %2064 = vmatprep.subr.bf16.mxu0 %v1489
      %2065 = vmatpush1.bf16.msra.mxu0 %v1488
      %2066 = vmatprep.subr.bf16.mxu0 %v1481
      %2067 = vmatpush1.bf16.msra.mxu0 %v1480
      %2068 = vmatprep.subr.bf16.mxu0 %v1473
      %2069 = vmatpush1.bf16.msra.mxu0 %v1472
      %2070 = vmatprep.subr.bf16.mxu0 %v1465
      %2071 = vmatpush1.bf16.msra.mxu0 %v1464
      %2072 = vmatprep.subr.bf16.mxu0 %v1585
      %2073 = vmatpush2.bf16.msra.mxu0 %v1584
      %2074 = vmatprep.subr.bf16.mxu0 %v1577
      %2075 = vmatpush2.bf16.msra.mxu0 %v1576
      %2076 = vmatprep.subr.bf16.mxu0 %v1569
      %2077 = vmatpush2.bf16.msra.mxu0 %v1568
      %2078 = vmatprep.subr.bf16.mxu0 %v1561
      %2079 = vmatpush2.bf16.msra.mxu0 %v1560
      %2080 = vmatprep.subr.bf16.mxu0 %v1553
      %2081 = vmatpush2.bf16.msra.mxu0 %v1552
      %2082 = vmatprep.subr.bf16.mxu0 %v1545
      %2083 = vmatpush2.bf16.msra.mxu0 %v1544
      %2084 = vmatprep.subr.bf16.mxu0 %v1537
      %2085 = vmatpush2.bf16.msra.mxu0 %v1536
      %2086 = vmatprep.subr.bf16.mxu0 %v1529
      %2087 = vmatpush2.bf16.msra.mxu0 %v1528
      %2088 = vmatprep.mubr.bf16.mxu0 %v687
      %2089 = vmatmul.mubr.bf16.gmra.mxu0 %v686
      %v2090 = vpop.f32.mrf.mxu0
      %v2091 = vadd.f32 0.0, %v2090
      %v2092 = vpop.f32.mrf.mxu0
      %v2093 = vadd.f32 0.0, %v2092
      %v2094 = vpop.f32.mrf.mxu0
      %v2095 = vpop.f32.mrf.mxu0
      %2096 = vdwg.mxu0
      %2097 = vmatprep.subr.bf16.mxu0 %v1649
      %2098 = vmatpush1.bf16.msra.mxu0 %v1648
      %2099 = vmatprep.subr.bf16.mxu0 %v1641
      %2100 = vmatpush1.bf16.msra.mxu0 %v1640
      %2101 = vmatprep.subr.bf16.mxu0 %v1633
      %2102 = vmatpush1.bf16.msra.mxu0 %v1632
      %2103 = vmatprep.subr.bf16.mxu0 %v1625
      %2104 = vmatpush1.bf16.msra.mxu0 %v1624
      %2105 = vmatprep.subr.bf16.mxu0 %v1617
      %2106 = vmatpush1.bf16.msra.mxu0 %v1616
      %2107 = vmatprep.subr.bf16.mxu0 %v1609
      %2108 = vmatpush1.bf16.msra.mxu0 %v1608
      %2109 = vmatprep.subr.bf16.mxu0 %v1601
      %2110 = vmatpush1.bf16.msra.mxu0 %v1600
      %2111 = vmatprep.subr.bf16.mxu0 %v1593
      %2112 = vmatpush1.bf16.msra.mxu0 %v1592
      %2113 = vmatprep.subr.bf16.mxu0 %v1713
      %2114 = vmatpush2.bf16.msra.mxu0 %v1712
      %2115 = vmatprep.subr.bf16.mxu0 %v1705
      %2116 = vmatpush2.bf16.msra.mxu0 %v1704
      %2117 = vmatprep.subr.bf16.mxu0 %v1697
      %2118 = vmatpush2.bf16.msra.mxu0 %v1696
      %2119 = vmatprep.subr.bf16.mxu0 %v1689
      %2120 = vmatpush2.bf16.msra.mxu0 %v1688
      %2121 = vmatprep.subr.bf16.mxu0 %v1681
      %2122 = vmatpush2.bf16.msra.mxu0 %v1680
      %2123 = vmatprep.subr.bf16.mxu0 %v1673
      %2124 = vmatpush2.bf16.msra.mxu0 %v1672
      %2125 = vmatprep.subr.bf16.mxu0 %v1665
      %2126 = vmatpush2.bf16.msra.mxu0 %v1664
      %2127 = vmatprep.subr.bf16.mxu0 %v1657
      %2128 = vmatpush2.bf16.msra.mxu0 %v1656
      %2129 = vmatprep.mubr.bf16.mxu0 %v689
      %2130 = vmatmul.mubr.bf16.gmra.mxu0 %v688
      %v2131 = vpop.f32.mrf.mxu0
      %v2132 = vadd.f32 %v2091, %v2131
      %v2133 = vpop.f32.mrf.mxu0
      %v2134 = vadd.f32 %v2093, %v2133
      %v2135 = vpop.f32.mrf.mxu0
      %v2136 = vpop.f32.mrf.mxu0
      %2137 = vdwg.mxu0
      %2138 = vmatprep.subr.bf16.mxu0 %v1523
      %2139 = vmatpush1.bf16.msra.mxu0 %v1522
      %2140 = vmatprep.subr.bf16.mxu0 %v1515
      %2141 = vmatpush1.bf16.msra.mxu0 %v1514
      %2142 = vmatprep.subr.bf16.mxu0 %v1507
      %2143 = vmatpush1.bf16.msra.mxu0 %v1506
      %2144 = vmatprep.subr.bf16.mxu0 %v1499
      %2145 = vmatpush1.bf16.msra.mxu0 %v1498
      %2146 = vmatprep.subr.bf16.mxu0 %v1491
      %2147 = vmatpush1.bf16.msra.mxu0 %v1490
      %2148 = vmatprep.subr.bf16.mxu0 %v1483
      %2149 = vmatpush1.bf16.msra.mxu0 %v1482
      %2150 = vmatprep.subr.bf16.mxu0 %v1475
      %2151 = vmatpush1.bf16.msra.mxu0 %v1474
      %2152 = vmatprep.subr.bf16.mxu0 %v1467
      %2153 = vmatpush1.bf16.msra.mxu0 %v1466
      %2154 = vmatprep.subr.bf16.mxu0 %v1587
      %2155 = vmatpush2.bf16.msra.mxu0 %v1586
      %2156 = vmatprep.subr.bf16.mxu0 %v1579
      %2157 = vmatpush2.bf16.msra.mxu0 %v1578
      %2158 = vmatprep.subr.bf16.mxu0 %v1571
      %2159 = vmatpush2.bf16.msra.mxu0 %v1570
      %2160 = vmatprep.subr.bf16.mxu0 %v1563
      %2161 = vmatpush2.bf16.msra.mxu0 %v1562
      %2162 = vmatprep.subr.bf16.mxu0 %v1555
      %2163 = vmatpush2.bf16.msra.mxu0 %v1554
      %2164 = vmatprep.subr.bf16.mxu0 %v1547
      %2165 = vmatpush2.bf16.msra.mxu0 %v1546
      %2166 = vmatprep.subr.bf16.mxu0 %v1539
      %2167 = vmatpush2.bf16.msra.mxu0 %v1538
      %2168 = vmatprep.subr.bf16.mxu0 %v1531
      %2169 = vmatpush2.bf16.msra.mxu0 %v1530
      %2170 = vmatprep.mubr.bf16.mxu0 %v687
      %2171 = vmatmul.mubr.bf16.gmra.mxu0 %v686
      %v2172 = vpop.f32.mrf.mxu0
      %v2173 = vadd.f32 0.0, %v2172
      %v2174 = vpop.f32.mrf.mxu0
      %v2175 = vadd.f32 0.0, %v2174
      %v2176 = vpop.f32.mrf.mxu0
      %v2177 = vpop.f32.mrf.mxu0
      %2178 = vdwg.mxu0
      %2179 = vmatprep.subr.bf16.mxu0 %v1651
      %2180 = vmatpush1.bf16.msra.mxu0 %v1650
      %2181 = vmatprep.subr.bf16.mxu0 %v1643
      %2182 = vmatpush1.bf16.msra.mxu0 %v1642
      %2183 = vmatprep.subr.bf16.mxu0 %v1635
      %2184 = vmatpush1.bf16.msra.mxu0 %v1634
      %2185 = vmatprep.subr.bf16.mxu0 %v1627
      %2186 = vmatpush1.bf16.msra.mxu0 %v1626
      %2187 = vmatprep.subr.bf16.mxu0 %v1619
      %2188 = vmatpush1.bf16.msra.mxu0 %v1618
      %2189 = vmatprep.subr.bf16.mxu0 %v1611
      %2190 = vmatpush1.bf16.msra.mxu0 %v1610
      %2191 = vmatprep.subr.bf16.mxu0 %v1603
      %2192 = vmatpush1.bf16.msra.mxu0 %v1602
      %2193 = vmatprep.subr.bf16.mxu0 %v1595
      %2194 = vmatpush1.bf16.msra.mxu0 %v1594
      %2195 = vmatprep.subr.bf16.mxu0 %v1715
      %2196 = vmatpush2.bf16.msra.mxu0 %v1714
      %2197 = vmatprep.subr.bf16.mxu0 %v1707
      %2198 = vmatpush2.bf16.msra.mxu0 %v1706
      %2199 = vmatprep.subr.bf16.mxu0 %v1699
      %2200 = vmatpush2.bf16.msra.mxu0 %v1698
      %2201 = vmatprep.subr.bf16.mxu0 %v1691
      %2202 = vmatpush2.bf16.msra.mxu0 %v1690
      %2203 = vmatprep.subr.bf16.mxu0 %v1683
      %2204 = vmatpush2.bf16.msra.mxu0 %v1682
      %2205 = vmatprep.subr.bf16.mxu0 %v1675
      %2206 = vmatpush2.bf16.msra.mxu0 %v1674
      %2207 = vmatprep.subr.bf16.mxu0 %v1667
      %2208 = vmatpush2.bf16.msra.mxu0 %v1666
      %2209 = vmatprep.subr.bf16.mxu0 %v1659
      %2210 = vmatpush2.bf16.msra.mxu0 %v1658
      %2211 = vmatprep.mubr.bf16.mxu0 %v689
      %2212 = vmatmul.mubr.bf16.gmra.mxu0 %v688
      %v2213 = vpop.f32.mrf.mxu0
      %v2214 = vadd.f32 %v2173, %v2213
      %v2215 = vpop.f32.mrf.mxu0
      %v2216 = vadd.f32 %v2175, %v2215
      %v2217 = vpop.f32.mrf.mxu0
      %v2218 = vpop.f32.mrf.mxu0
      %2219 = vdwg.mxu0
      %2220 = vmatprep.subr.bf16.mxu0 %v1525
      %2221 = vmatpush1.bf16.msra.mxu0 %v1524
      %2222 = vmatprep.subr.bf16.mxu0 %v1517
      %2223 = vmatpush1.bf16.msra.mxu0 %v1516
      %2224 = vmatprep.subr.bf16.mxu0 %v1509
      %2225 = vmatpush1.bf16.msra.mxu0 %v1508
      %2226 = vmatprep.subr.bf16.mxu0 %v1501
      %2227 = vmatpush1.bf16.msra.mxu0 %v1500
      %2228 = vmatprep.subr.bf16.mxu0 %v1493
      %2229 = vmatpush1.bf16.msra.mxu0 %v1492
      %2230 = vmatprep.subr.bf16.mxu0 %v1485
      %2231 = vmatpush1.bf16.msra.mxu0 %v1484
      %2232 = vmatprep.subr.bf16.mxu0 %v1477
      %2233 = vmatpush1.bf16.msra.mxu0 %v1476
      %2234 = vmatprep.subr.bf16.mxu0 %v1469
      %2235 = vmatpush1.bf16.msra.mxu0 %v1468
      %2236 = vmatprep.subr.bf16.mxu0 %v1589
      %2237 = vmatpush2.bf16.msra.mxu0 %v1588
      %2238 = vmatprep.subr.bf16.mxu0 %v1581
      %2239 = vmatpush2.bf16.msra.mxu0 %v1580
      %2240 = vmatprep.subr.bf16.mxu0 %v1573
      %2241 = vmatpush2.bf16.msra.mxu0 %v1572
      %2242 = vmatprep.subr.bf16.mxu0 %v1565
      %2243 = vmatpush2.bf16.msra.mxu0 %v1564
      %2244 = vmatprep.subr.bf16.mxu0 %v1557
      %2245 = vmatpush2.bf16.msra.mxu0 %v1556
      %2246 = vmatprep.subr.bf16.mxu0 %v1549
      %2247 = vmatpush2.bf16.msra.mxu0 %v1548
      %2248 = vmatprep.subr.bf16.mxu0 %v1541
      %2249 = vmatpush2.bf16.msra.mxu0 %v1540
      %2250 = vmatprep.subr.bf16.mxu0 %v1533
      %2251 = vmatpush2.bf16.msra.mxu0 %v1532
      %2252 = vmatprep.mubr.bf16.mxu0 %v687
      %2253 = vmatmul.mubr.bf16.gmra.mxu0 %v686
      %v2254 = vpop.f32.mrf.mxu0
      %v2255 = vadd.f32 0.0, %v2254
      %v2256 = vpop.f32.mrf.mxu0
      %v2257 = vadd.f32 0.0, %v2256
      %v2258 = vpop.f32.mrf.mxu0
      %v2259 = vpop.f32.mrf.mxu0
      %2260 = vdwg.mxu0
      %2261 = vmatprep.subr.bf16.mxu0 %v1653
      %2262 = vmatpush1.bf16.msra.mxu0 %v1652
      %2263 = vmatprep.subr.bf16.mxu0 %v1645
      %2264 = vmatpush1.bf16.msra.mxu0 %v1644
      %2265 = vmatprep.subr.bf16.mxu0 %v1637
      %2266 = vmatpush1.bf16.msra.mxu0 %v1636
      %2267 = vmatprep.subr.bf16.mxu0 %v1629
      %2268 = vmatpush1.bf16.msra.mxu0 %v1628
      %2269 = vmatprep.subr.bf16.mxu0 %v1621
      %2270 = vmatpush1.bf16.msra.mxu0 %v1620
      %2271 = vmatprep.subr.bf16.mxu0 %v1613
      %2272 = vmatpush1.bf16.msra.mxu0 %v1612
      %2273 = vmatprep.subr.bf16.mxu0 %v1605
      %2274 = vmatpush1.bf16.msra.mxu0 %v1604
      %2275 = vmatprep.subr.bf16.mxu0 %v1597
      %2276 = vmatpush1.bf16.msra.mxu0 %v1596
      %2277 = vmatprep.subr.bf16.mxu0 %v1717
      %2278 = vmatpush2.bf16.msra.mxu0 %v1716
      %2279 = vmatprep.subr.bf16.mxu0 %v1709
      %2280 = vmatpush2.bf16.msra.mxu0 %v1708
      %2281 = vmatprep.subr.bf16.mxu0 %v1701
      %2282 = vmatpush2.bf16.msra.mxu0 %v1700
      %2283 = vmatprep.subr.bf16.mxu0 %v1693
      %2284 = vmatpush2.bf16.msra.mxu0 %v1692
      %2285 = vmatprep.subr.bf16.mxu0 %v1685
      %2286 = vmatpush2.bf16.msra.mxu0 %v1684
      %2287 = vmatprep.subr.bf16.mxu0 %v1677
      %2288 = vmatpush2.bf16.msra.mxu0 %v1676
      %2289 = vmatprep.subr.bf16.mxu0 %v1669
      %2290 = vmatpush2.bf16.msra.mxu0 %v1668
      %2291 = vmatprep.subr.bf16.mxu0 %v1661
      %2292 = vmatpush2.bf16.msra.mxu0 %v1660
      %2293 = vmatprep.mubr.bf16.mxu0 %v689
      %2294 = vmatmul.mubr.bf16.gmra.mxu0 %v688
      %v2295 = vpop.f32.mrf.mxu0
      %v2296 = vadd.f32 %v2255, %v2295
      %v2297 = vpop.f32.mrf.mxu0
      %v2298 = vadd.f32 %v2257, %v2297
      %v2299 = vpop.f32.mrf.mxu0
      %v2300 = vpop.f32.mrf.mxu0
      %2301 = vdwg.mxu0
      %v2302 = vadd.f32 %v414, %v2050
      %v2303 = vadd.f32 %v415, %v2052
      %v2304 = vadd.f32 %v416, %v2132
      %v2305 = vadd.f32 %v417, %v2134
      %v2306 = vadd.f32 %v418, %v2214
      %v2307 = vadd.f32 %v419, %v2216
      %v2308 = vadd.f32 %v420, %v2296
      %v2309 = vadd.f32 %v421, %v2298
      %2310 = vst [vmem:[#allocation2] sm:$0xff] %v2302
      %2311 = vst [vmem:[#allocation2 + $0x8] sm:$0xff] %v2303
      %2312 = vst [vmem:[#allocation2 + $0x10] sm:$0xff] %v2304
      %2313 = vst [vmem:[#allocation2 + $0x18] sm:$0xff] %v2305
      %2314 = vst [vmem:[#allocation2 + $0x20] sm:$0xff] %v2306
      %2315 = vst [vmem:[#allocation2 + $0x28] sm:$0xff] %v2307
      %2316 = vst [vmem:[#allocation2 + $0x30] sm:$0xff] %v2308
      %2317 = vst [vmem:[#allocation2 + $0x38] sm:$0xff] %v2309
      %p2318 = scmp.eq.s32.totalorder %s24, 3
      // Predicated region
      $region69: #{multi_model_forward.1} parent=63 // pred_check
        %p2319 = pneg %p2318
      $region70: #{multi_model_forward.1} parent=63 // pred_check_branch
        %2321 = sbr.rel (%p2319) target = $region72
      $region71: #{multi_model_forward.1} parent=63 // pred_region
        %v2322 = vld [vmem:[%s0] sm:$0xf]
        %v2323 = vld [vmem:[%s2] sm:$0xf]
        %v2324 = vld [vmem:[%s2 + $0x4] sm:$0xf]
        %v2325 = vld [vmem:[%s2 + $0x8] sm:$0xf]
        %v2326 = vld [vmem:[%s2 + $0xc] sm:$0xf]
        %v2327 = vld [vmem:[%s2 + $0x10] sm:$0xf]
        %v2328 = vld [vmem:[%s2 + $0x14] sm:$0xf]
        %v2329 = vld [vmem:[%s2 + $0x18] sm:$0xf]
        %v2330 = vld [vmem:[%s2 + $0x1c] sm:$0xf]
        %v2331 = vld [vmem:[%s2 + $0x20] sm:$0xf]
        %v2332 = vld [vmem:[%s2 + $0x24] sm:$0xf]
        %v2333 = vld [vmem:[%s2 + $0x28] sm:$0xf]
        %v2334 = vld [vmem:[%s2 + $0x2c] sm:$0xf]
        %v2335 = vld [vmem:[%s2 + $0x30] sm:$0xf]
        %v2336 = vld [vmem:[%s2 + $0x34] sm:$0xf]
        %v2337 = vld [vmem:[%s2 + $0x38] sm:$0xf]
        %v2338 = vld [vmem:[%s2 + $0x3c] sm:$0xf]
        %v2339 = vld [vmem:[%s3] sm:$0x1]
        %v2341 = vlaneseq
        %v2342 = vshrl.u32 %v2341, 7
        %v2343 = vsub.s32 0, %v2342
        %v2344 = vrot.slane %v2339, %v2343
        %v2362 = vunpack.c.l.b16 %v2323
        %v2363 = vunpack.c.l.b16 %v2324
        %v2364 = vunpack.c.l.b16 %v2325
        %v2365 = vunpack.c.l.b16 %v2326
        %v2366 = vunpack.c.l.b16 %v2327
        %v2367 = vunpack.c.l.b16 %v2328
        %v2368 = vunpack.c.l.b16 %v2329
        %v2369 = vunpack.c.l.b16 %v2330
        %v2370 = vunpack.c.l.b16 %v2331
        %v2371 = vunpack.c.l.b16 %v2332
        %v2372 = vunpack.c.l.b16 %v2333
        %v2373 = vunpack.c.l.b16 %v2334
        %v2374 = vunpack.c.l.b16 %v2335
        %v2375 = vunpack.c.l.b16 %v2336
        %v2376 = vunpack.c.l.b16 %v2337
        %v2377 = vunpack.c.l.b16 %v2338
        %v2378 = vpack.c.b16 %v2363, %v2362
        %v2379 = vpack.c.b16 %v2365, %v2364
        %v2380 = vpack.c.b16 %v2367, %v2366
        %v2381 = vpack.c.b16 %v2369, %v2368
        %v2382 = vpack.c.b16 %v2371, %v2370
        %v2383 = vpack.c.b16 %v2373, %v2372
        %v2384 = vpack.c.b16 %v2375, %v2374
        %v2385 = vpack.c.b16 %v2377, %v2376
        %2394 = vmatprep.subr.bf16.mxu0 0
        %2395 = vmatpush1.bf16.msra.mxu0 %v2385
        %2396 = vmatprep.subr.bf16.mxu0 0
        %2397 = vmatpush1.bf16.msra.mxu0 %v2384
        %2398 = vmatprep.subr.bf16.mxu0 0
        %2399 = vmatpush1.bf16.msra.mxu0 %v2383
        %2400 = vmatprep.subr.bf16.mxu0 0
        %2401 = vmatpush1.bf16.msra.mxu0 %v2382
        %2402 = vmatprep.subr.bf16.mxu0 0
        %2403 = vmatpush1.bf16.msra.mxu0 %v2381
        %2404 = vmatprep.subr.bf16.mxu0 0
        %2405 = vmatpush1.bf16.msra.mxu0 %v2380
        %2406 = vmatprep.subr.bf16.mxu0 0
        %2407 = vmatpush1.bf16.msra.mxu0 %v2379
        %2408 = vmatprep.subr.bf16.mxu0 0
        %2409 = vmatpush1.bf16.msra.mxu0 %v2378
        %2410 = vmatprep.subr.bf16.mxu0 0
        %2411 = vmatpush2.bf16.msra.mxu0 0
        %2412 = vmatprep.subr.bf16.mxu0 0
        %2413 = vmatpush2.bf16.msra.mxu0 0
        %2414 = vmatprep.subr.bf16.mxu0 0
        %2415 = vmatpush2.bf16.msra.mxu0 0
        %2416 = vmatprep.subr.bf16.mxu0 0
        %2417 = vmatpush2.bf16.msra.mxu0 0
        %2418 = vmatprep.subr.bf16.mxu0 0
        %2419 = vmatpush2.bf16.msra.mxu0 0
        %2420 = vmatprep.subr.bf16.mxu0 0
        %2421 = vmatpush2.bf16.msra.mxu0 0
        %2422 = vmatprep.subr.bf16.mxu0 0
        %2423 = vmatpush2.bf16.msra.mxu0 0
        %2424 = vmatprep.subr.bf16.mxu0 0
        %2425 = vmatpush2.bf16.msra.mxu0 0
        %2426 = vmatprep.mubr.bf16.mxu0 0
        %2427 = vmatmul.mubr.bf16.gmra.mxu0 %v2322
        %v2428 = vpop.f32.mrf.mxu0
        %v2429 = vadd.f32 %v2344, %v2428
        %v2430 = vpop.f32.mrf.mxu0
        %v2431 = vpop.f32.mrf.mxu0
        %v2432 = vpop.f32.mrf.mxu0
        %2433 = vdwg.mxu0
        %v2434 = vtanh.pop %v2429
        %v2435 = vld [vmem:[#allocation2] sm:$0xff]
        %v2436 = vld [vmem:[#allocation2 + $0x8] sm:$0xff]
        %v2437 = vld [vmem:[#allocation2 + $0x10] sm:$0xff]
        %v2438 = vld [vmem:[#allocation2 + $0x18] sm:$0xff]
        %v2439 = vld [vmem:[#allocation2 + $0x20] sm:$0xff]
        %v2440 = vld [vmem:[#allocation2 + $0x28] sm:$0xff]
        %v2441 = vld [vmem:[#allocation2 + $0x30] sm:$0xff]
        %v2442 = vld [vmem:[#allocation2 + $0x38] sm:$0xff]
        %v2443 = vld [vmem:[%s5] sm:$0xff]
        %v2445 = vlaneseq
        %v2446 = vshrl.u32 %v2445, 7
        %v2447 = vsub.s32 0, %v2446
        %v2448 = vrot.slane %v2443, %v2447
        %v2449 = vlaneseq
        %v2450 = vshrl.u32 %v2449, 7
        %v2451 = vsub.s32 1, %v2450
        %v2452 = vrot.slane %v2443, %v2451
        %v2453 = vlaneseq
        %v2454 = vshrl.u32 %v2453, 7
        %v2455 = vsub.s32 2, %v2454
        %v2456 = vrot.slane %v2443, %v2455
        %v2457 = vlaneseq
        %v2458 = vshrl.u32 %v2457, 7
        %v2459 = vsub.s32 3, %v2458
        %v2460 = vrot.slane %v2443, %v2459
        %v2461 = vlaneseq
        %v2462 = vshrl.u32 %v2461, 7
        %v2463 = vsub.s32 4, %v2462
        %v2464 = vrot.slane %v2443, %v2463
        %v2465 = vlaneseq
        %v2466 = vshrl.u32 %v2465, 7
        %v2467 = vsub.s32 5, %v2466
        %v2468 = vrot.slane %v2443, %v2467
        %v2469 = vlaneseq
        %v2470 = vshrl.u32 %v2469, 7
        %v2471 = vsub.s32 6, %v2470
        %v2472 = vrot.slane %v2443, %v2471
        %v2473 = vlaneseq
        %v2474 = vshrl.u32 %v2473, 7
        %v2475 = vsub.s32 7, %v2474
        %v2476 = vrot.slane %v2443, %v2475
        %v2485 = vadd.f32 %v2435, %v2448
        %v2486 = vadd.f32 %v2436, %v2452
        %v2487 = vadd.f32 %v2437, %v2456
        %v2488 = vadd.f32 %v2438, %v2460
        %v2489 = vadd.f32 %v2439, %v2464
        %v2490 = vadd.f32 %v2440, %v2468
        %v2491 = vadd.f32 %v2441, %v2472
        %v2492 = vadd.f32 %v2442, %v2476
        %v2493 = vmax.f32 %v2485, 0.0
        %v2494 = vmax.f32 %v2486, 0.0
        %v2495 = vmax.f32 %v2487, 0.0
        %v2496 = vmax.f32 %v2488, 0.0
        %v2497 = vmax.f32 %v2489, 0.0
        %v2498 = vmax.f32 %v2490, 0.0
        %v2499 = vmax.f32 %v2491, 0.0
        %v2500 = vmax.f32 %v2492, 0.0
        %v2501 = vpack.c.bf16 %v2434, %v2434
        %v2502 = vld [vmem:[%s6] sm:$0xff]
        %v2503 = vld [vmem:[%s6 + $0x8] sm:$0xff]
        %v2504 = vld [vmem:[%s6 + $0x10] sm:$0xff]
        %v2505 = vld [vmem:[%s6 + $0x18] sm:$0xff]
        %v2506 = vld [vmem:[%s6 + $0x20] sm:$0xff]
        %v2507 = vld [vmem:[%s6 + $0x28] sm:$0xff]
        %v2508 = vld [vmem:[%s6 + $0x30] sm:$0xff]
        %v2509 = vld [vmem:[%s6 + $0x38] sm:$0xff]
        %v2510 = vld [vmem:[%s6 + $0x40] sm:$0xff]
        %v2511 = vld [vmem:[%s6 + $0x48] sm:$0xff]
        %v2512 = vld [vmem:[%s6 + $0x50] sm:$0xff]
        %v2513 = vld [vmem:[%s6 + $0x58] sm:$0xff]
        %v2514 = vld [vmem:[%s6 + $0x60] sm:$0xff]
        %v2515 = vld [vmem:[%s6 + $0x68] sm:$0xff]
        %v2516 = vld [vmem:[%s6 + $0x70] sm:$0xff]
        %v2517 = vld [vmem:[%s6 + $0x78] sm:$0xff]
        %v2518 = vpack.c.bf16 %v2493, %v2493
        %v2519 = vpack.c.bf16 %v2494, %v2494
        %v2520 = vpack.c.bf16 %v2495, %v2495
        %v2521 = vpack.c.bf16 %v2496, %v2496
        %v2522 = vpack.c.bf16 %v2497, %v2497
        %v2523 = vpack.c.bf16 %v2498, %v2498
        %v2524 = vpack.c.bf16 %v2499, %v2499
        %v2525 = vpack.c.bf16 %v2500, %v2500
        %v2526 = vld [vmem:[%s7] sm:$0xff]
        %v2527 = vld [vmem:[%s7 + $0x8] sm:$0xff]
        %v2528 = vld [vmem:[%s7 + $0x10] sm:$0xff]
        %v2529 = vld [vmem:[%s7 + $0x18] sm:$0xff]
        %v2530 = vld [vmem:[%s7 + $0x20] sm:$0xff]
        %v2531 = vld [vmem:[%s7 + $0x28] sm:$0xff]
        %v2532 = vld [vmem:[%s7 + $0x30] sm:$0xff]
        %v2533 = vld [vmem:[%s7 + $0x38] sm:$0xff]
        %v2534 = vld [vmem:[%s7 + $0x40] sm:$0xff]
        %v2535 = vld [vmem:[%s7 + $0x48] sm:$0xff]
        %v2536 = vld [vmem:[%s7 + $0x50] sm:$0xff]
        %v2537 = vld [vmem:[%s7 + $0x58] sm:$0xff]
        %v2538 = vld [vmem:[%s7 + $0x60] sm:$0xff]
        %v2539 = vld [vmem:[%s7 + $0x68] sm:$0xff]
        %v2540 = vld [vmem:[%s7 + $0x70] sm:$0xff]
        %v2541 = vld [vmem:[%s7 + $0x78] sm:$0xff]
        %v2542 = vld [vmem:[%s7 + $0x80] sm:$0xff]
        %v2543 = vld [vmem:[%s7 + $0x88] sm:$0xff]
        %v2544 = vld [vmem:[%s7 + $0x90] sm:$0xff]
        %v2545 = vld [vmem:[%s7 + $0x98] sm:$0xff]
        %v2546 = vld [vmem:[%s7 + $0xa0] sm:$0xff]
        %v2547 = vld [vmem:[%s7 + $0xa8] sm:$0xff]
        %v2548 = vld [vmem:[%s7 + $0xb0] sm:$0xff]
        %v2549 = vld [vmem:[%s7 + $0xb8] sm:$0xff]
        %v2550 = vld [vmem:[%s7 + $0xc0] sm:$0xff]
        %v2551 = vld [vmem:[%s7 + $0xc8] sm:$0xff]
        %v2552 = vld [vmem:[%s7 + $0xd0] sm:$0xff]
        %v2553 = vld [vmem:[%s7 + $0xd8] sm:$0xff]
        %v2554 = vld [vmem:[%s7 + $0xe0] sm:$0xff]
        %v2555 = vld [vmem:[%s7 + $0xe8] sm:$0xff]
        %v2556 = vld [vmem:[%s7 + $0xf0] sm:$0xff]
        %v2557 = vld [vmem:[%s7 + $0xf8] sm:$0xff]
        %v2558 = vld [vmem:[%s7 + $0x100] sm:$0xff]
        %v2559 = vld [vmem:[%s7 + $0x108] sm:$0xff]
        %v2560 = vld [vmem:[%s7 + $0x110] sm:$0xff]
        %v2561 = vld [vmem:[%s7 + $0x118] sm:$0xff]
        %v2562 = vld [vmem:[%s7 + $0x120] sm:$0xff]
        %v2563 = vld [vmem:[%s7 + $0x128] sm:$0xff]
        %v2564 = vld [vmem:[%s7 + $0x130] sm:$0xff]
        %v2565 = vld [vmem:[%s7 + $0x138] sm:$0xff]
        %v2566 = vld [vmem:[%s7 + $0x140] sm:$0xff]
        %v2567 = vld [vmem:[%s7 + $0x148] sm:$0xff]
        %v2568 = vld [vmem:[%s7 + $0x150] sm:$0xff]
        %v2569 = vld [vmem:[%s7 + $0x158] sm:$0xff]
        %v2570 = vld [vmem:[%s7 + $0x160] sm:$0xff]
        %v2571 = vld [vmem:[%s7 + $0x168] sm:$0xff]
        %v2572 = vld [vmem:[%s7 + $0x170] sm:$0xff]
        %v2573 = vld [vmem:[%s7 + $0x178] sm:$0xff]
        %v2574 = vld [vmem:[%s7 + $0x180] sm:$0xff]
        %v2575 = vld [vmem:[%s7 + $0x188] sm:$0xff]
        %v2576 = vld [vmem:[%s7 + $0x190] sm:$0xff]
        %v2577 = vld [vmem:[%s7 + $0x198] sm:$0xff]
        %v2578 = vld [vmem:[%s7 + $0x1a0] sm:$0xff]
        %v2579 = vld [vmem:[%s7 + $0x1a8] sm:$0xff]
        %v2580 = vld [vmem:[%s7 + $0x1b0] sm:$0xff]
        %v2581 = vld [vmem:[%s7 + $0x1b8] sm:$0xff]
        %v2582 = vld [vmem:[%s7 + $0x1c0] sm:$0xff]
        %v2583 = vld [vmem:[%s7 + $0x1c8] sm:$0xff]
        %v2584 = vld [vmem:[%s7 + $0x1d0] sm:$0xff]
        %v2585 = vld [vmem:[%s7 + $0x1d8] sm:$0xff]
        %v2586 = vld [vmem:[%s7 + $0x1e0] sm:$0xff]
        %v2587 = vld [vmem:[%s7 + $0x1e8] sm:$0xff]
        %v2588 = vld [vmem:[%s7 + $0x1f0] sm:$0xff]
        %v2589 = vld [vmem:[%s7 + $0x1f8] sm:$0xff]
        %v2590 = vld [vmem:[%s7 + $0x200] sm:$0xff]
        %v2591 = vld [vmem:[%s7 + $0x208] sm:$0xff]
        %v2592 = vld [vmem:[%s7 + $0x210] sm:$0xff]
        %v2593 = vld [vmem:[%s7 + $0x218] sm:$0xff]
        %v2594 = vld [vmem:[%s7 + $0x220] sm:$0xff]
        %v2595 = vld [vmem:[%s7 + $0x228] sm:$0xff]
        %v2596 = vld [vmem:[%s7 + $0x230] sm:$0xff]
        %v2597 = vld [vmem:[%s7 + $0x238] sm:$0xff]
        %v2598 = vld [vmem:[%s7 + $0x240] sm:$0xff]
        %v2599 = vld [vmem:[%s7 + $0x248] sm:$0xff]
        %v2600 = vld [vmem:[%s7 + $0x250] sm:$0xff]
        %v2601 = vld [vmem:[%s7 + $0x258] sm:$0xff]
        %v2602 = vld [vmem:[%s7 + $0x260] sm:$0xff]
        %v2603 = vld [vmem:[%s7 + $0x268] sm:$0xff]
        %v2604 = vld [vmem:[%s7 + $0x270] sm:$0xff]
        %v2605 = vld [vmem:[%s7 + $0x278] sm:$0xff]
        %v2606 = vld [vmem:[%s7 + $0x280] sm:$0xff]
        %v2607 = vld [vmem:[%s7 + $0x288] sm:$0xff]
        %v2608 = vld [vmem:[%s7 + $0x290] sm:$0xff]
        %v2609 = vld [vmem:[%s7 + $0x298] sm:$0xff]
        %v2610 = vld [vmem:[%s7 + $0x2a0] sm:$0xff]
        %v2611 = vld [vmem:[%s7 + $0x2a8] sm:$0xff]
        %v2612 = vld [vmem:[%s7 + $0x2b0] sm:$0xff]
        %v2613 = vld [vmem:[%s7 + $0x2b8] sm:$0xff]
        %v2614 = vld [vmem:[%s7 + $0x2c0] sm:$0xff]
        %v2615 = vld [vmem:[%s7 + $0x2c8] sm:$0xff]
        %v2616 = vld [vmem:[%s7 + $0x2d0] sm:$0xff]
        %v2617 = vld [vmem:[%s7 + $0x2d8] sm:$0xff]
        %v2618 = vld [vmem:[%s7 + $0x2e0] sm:$0xff]
        %v2619 = vld [vmem:[%s7 + $0x2e8] sm:$0xff]
        %v2620 = vld [vmem:[%s7 + $0x2f0] sm:$0xff]
        %v2621 = vld [vmem:[%s7 + $0x2f8] sm:$0xff]
        %v2622 = vld [vmem:[%s7 + $0x300] sm:$0xff]
        %v2623 = vld [vmem:[%s7 + $0x308] sm:$0xff]
        %v2624 = vld [vmem:[%s7 + $0x310] sm:$0xff]
        %v2625 = vld [vmem:[%s7 + $0x318] sm:$0xff]
        %v2626 = vld [vmem:[%s7 + $0x320] sm:$0xff]
        %v2627 = vld [vmem:[%s7 + $0x328] sm:$0xff]
        %v2628 = vld [vmem:[%s7 + $0x330] sm:$0xff]
        %v2629 = vld [vmem:[%s7 + $0x338] sm:$0xff]
        %v2630 = vld [vmem:[%s7 + $0x340] sm:$0xff]
        %v2631 = vld [vmem:[%s7 + $0x348] sm:$0xff]
        %v2632 = vld [vmem:[%s7 + $0x350] sm:$0xff]
        %v2633 = vld [vmem:[%s7 + $0x358] sm:$0xff]
        %v2634 = vld [vmem:[%s7 + $0x360] sm:$0xff]
        %v2635 = vld [vmem:[%s7 + $0x368] sm:$0xff]
        %v2636 = vld [vmem:[%s7 + $0x370] sm:$0xff]
        %v2637 = vld [vmem:[%s7 + $0x378] sm:$0xff]
        %v2638 = vld [vmem:[%s7 + $0x380] sm:$0xff]
        %v2639 = vld [vmem:[%s7 + $0x388] sm:$0xff]
        %v2640 = vld [vmem:[%s7 + $0x390] sm:$0xff]
        %v2641 = vld [vmem:[%s7 + $0x398] sm:$0xff]
        %v2642 = vld [vmem:[%s7 + $0x3a0] sm:$0xff]
        %v2643 = vld [vmem:[%s7 + $0x3a8] sm:$0xff]
        %v2644 = vld [vmem:[%s7 + $0x3b0] sm:$0xff]
        %v2645 = vld [vmem:[%s7 + $0x3b8] sm:$0xff]
        %v2646 = vld [vmem:[%s7 + $0x3c0] sm:$0xff]
        %v2647 = vld [vmem:[%s7 + $0x3c8] sm:$0xff]
        %v2648 = vld [vmem:[%s7 + $0x3d0] sm:$0xff]
        %v2649 = vld [vmem:[%s7 + $0x3d8] sm:$0xff]
        %v2650 = vld [vmem:[%s7 + $0x3e0] sm:$0xff]
        %v2651 = vld [vmem:[%s7 + $0x3e8] sm:$0xff]
        %v2652 = vld [vmem:[%s7 + $0x3f0] sm:$0xff]
        %v2653 = vld [vmem:[%s7 + $0x3f8] sm:$0xff]
        %v2782 = vunpack.c.l.b16 %v2526
        %v2783 = vunpack.c.h.b16 %v2526
        %v2784 = vunpack.c.l.b16 %v2527
        %v2785 = vunpack.c.h.b16 %v2527
        %v2786 = vunpack.c.l.b16 %v2528
        %v2787 = vunpack.c.h.b16 %v2528
        %v2788 = vunpack.c.l.b16 %v2529
        %v2789 = vunpack.c.h.b16 %v2529
        %v2790 = vunpack.c.l.b16 %v2530
        %v2791 = vunpack.c.h.b16 %v2530
        %v2792 = vunpack.c.l.b16 %v2531
        %v2793 = vunpack.c.h.b16 %v2531
        %v2794 = vunpack.c.l.b16 %v2532
        %v2795 = vunpack.c.h.b16 %v2532
        %v2796 = vunpack.c.l.b16 %v2533
        %v2797 = vunpack.c.h.b16 %v2533
        %v2798 = vunpack.c.l.b16 %v2534
        %v2799 = vunpack.c.h.b16 %v2534
        %v2800 = vunpack.c.l.b16 %v2535
        %v2801 = vunpack.c.h.b16 %v2535
        %v2802 = vunpack.c.l.b16 %v2536
        %v2803 = vunpack.c.h.b16 %v2536
        %v2804 = vunpack.c.l.b16 %v2537
        %v2805 = vunpack.c.h.b16 %v2537
        %v2806 = vunpack.c.l.b16 %v2538
        %v2807 = vunpack.c.h.b16 %v2538
        %v2808 = vunpack.c.l.b16 %v2539
        %v2809 = vunpack.c.h.b16 %v2539
        %v2810 = vunpack.c.l.b16 %v2540
        %v2811 = vunpack.c.h.b16 %v2540
        %v2812 = vunpack.c.l.b16 %v2541
        %v2813 = vunpack.c.h.b16 %v2541
        %v2814 = vunpack.c.l.b16 %v2542
        %v2815 = vunpack.c.h.b16 %v2542
        %v2816 = vunpack.c.l.b16 %v2543
        %v2817 = vunpack.c.h.b16 %v2543
        %v2818 = vunpack.c.l.b16 %v2544
        %v2819 = vunpack.c.h.b16 %v2544
        %v2820 = vunpack.c.l.b16 %v2545
        %v2821 = vunpack.c.h.b16 %v2545
        %v2822 = vunpack.c.l.b16 %v2546
        %v2823 = vunpack.c.h.b16 %v2546
        %v2824 = vunpack.c.l.b16 %v2547
        %v2825 = vunpack.c.h.b16 %v2547
        %v2826 = vunpack.c.l.b16 %v2548
        %v2827 = vunpack.c.h.b16 %v2548
        %v2828 = vunpack.c.l.b16 %v2549
        %v2829 = vunpack.c.h.b16 %v2549
        %v2830 = vunpack.c.l.b16 %v2550
        %v2831 = vunpack.c.h.b16 %v2550
        %v2832 = vunpack.c.l.b16 %v2551
        %v2833 = vunpack.c.h.b16 %v2551
        %v2834 = vunpack.c.l.b16 %v2552
        %v2835 = vunpack.c.h.b16 %v2552
        %v2836 = vunpack.c.l.b16 %v2553
        %v2837 = vunpack.c.h.b16 %v2553
        %v2838 = vunpack.c.l.b16 %v2554
        %v2839 = vunpack.c.h.b16 %v2554
        %v2840 = vunpack.c.l.b16 %v2555
        %v2841 = vunpack.c.h.b16 %v2555
        %v2842 = vunpack.c.l.b16 %v2556
        %v2843 = vunpack.c.h.b16 %v2556
        %v2844 = vunpack.c.l.b16 %v2557
        %v2845 = vunpack.c.h.b16 %v2557
        %v2846 = vunpack.c.l.b16 %v2558
        %v2847 = vunpack.c.h.b16 %v2558
        %v2848 = vunpack.c.l.b16 %v2559
        %v2849 = vunpack.c.h.b16 %v2559
        %v2850 = vunpack.c.l.b16 %v2560
        %v2851 = vunpack.c.h.b16 %v2560
        %v2852 = vunpack.c.l.b16 %v2561
        %v2853 = vunpack.c.h.b16 %v2561
        %v2854 = vunpack.c.l.b16 %v2562
        %v2855 = vunpack.c.h.b16 %v2562
        %v2856 = vunpack.c.l.b16 %v2563
        %v2857 = vunpack.c.h.b16 %v2563
        %v2858 = vunpack.c.l.b16 %v2564
        %v2859 = vunpack.c.h.b16 %v2564
        %v2860 = vunpack.c.l.b16 %v2565
        %v2861 = vunpack.c.h.b16 %v2565
        %v2862 = vunpack.c.l.b16 %v2566
        %v2863 = vunpack.c.h.b16 %v2566
        %v2864 = vunpack.c.l.b16 %v2567
        %v2865 = vunpack.c.h.b16 %v2567
        %v2866 = vunpack.c.l.b16 %v2568
        %v2867 = vunpack.c.h.b16 %v2568
        %v2868 = vunpack.c.l.b16 %v2569
        %v2869 = vunpack.c.h.b16 %v2569
        %v2870 = vunpack.c.l.b16 %v2570
        %v2871 = vunpack.c.h.b16 %v2570
        %v2872 = vunpack.c.l.b16 %v2571
        %v2873 = vunpack.c.h.b16 %v2571
        %v2874 = vunpack.c.l.b16 %v2572
        %v2875 = vunpack.c.h.b16 %v2572
        %v2876 = vunpack.c.l.b16 %v2573
        %v2877 = vunpack.c.h.b16 %v2573
        %v2878 = vunpack.c.l.b16 %v2574
        %v2879 = vunpack.c.h.b16 %v2574
        %v2880 = vunpack.c.l.b16 %v2575
        %v2881 = vunpack.c.h.b16 %v2575
        %v2882 = vunpack.c.l.b16 %v2576
        %v2883 = vunpack.c.h.b16 %v2576
        %v2884 = vunpack.c.l.b16 %v2577
        %v2885 = vunpack.c.h.b16 %v2577
        %v2886 = vunpack.c.l.b16 %v2578
        %v2887 = vunpack.c.h.b16 %v2578
        %v2888 = vunpack.c.l.b16 %v2579
        %v2889 = vunpack.c.h.b16 %v2579
        %v2890 = vunpack.c.l.b16 %v2580
        %v2891 = vunpack.c.h.b16 %v2580
        %v2892 = vunpack.c.l.b16 %v2581
        %v2893 = vunpack.c.h.b16 %v2581
        %v2894 = vunpack.c.l.b16 %v2582
        %v2895 = vunpack.c.h.b16 %v2582
        %v2896 = vunpack.c.l.b16 %v2583
        %v2897 = vunpack.c.h.b16 %v2583
        %v2898 = vunpack.c.l.b16 %v2584
        %v2899 = vunpack.c.h.b16 %v2584
        %v2900 = vunpack.c.l.b16 %v2585
        %v2901 = vunpack.c.h.b16 %v2585
        %v2902 = vunpack.c.l.b16 %v2586
        %v2903 = vunpack.c.h.b16 %v2586
        %v2904 = vunpack.c.l.b16 %v2587
        %v2905 = vunpack.c.h.b16 %v2587
        %v2906 = vunpack.c.l.b16 %v2588
        %v2907 = vunpack.c.h.b16 %v2588
        %v2908 = vunpack.c.l.b16 %v2589
        %v2909 = vunpack.c.h.b16 %v2589
        %v2910 = vunpack.c.l.b16 %v2590
        %v2911 = vunpack.c.h.b16 %v2590
        %v2912 = vunpack.c.l.b16 %v2591
        %v2913 = vunpack.c.h.b16 %v2591
        %v2914 = vunpack.c.l.b16 %v2592
        %v2915 = vunpack.c.h.b16 %v2592
        %v2916 = vunpack.c.l.b16 %v2593
        %v2917 = vunpack.c.h.b16 %v2593
        %v2918 = vunpack.c.l.b16 %v2594
        %v2919 = vunpack.c.h.b16 %v2594
        %v2920 = vunpack.c.l.b16 %v2595
        %v2921 = vunpack.c.h.b16 %v2595
        %v2922 = vunpack.c.l.b16 %v2596
        %v2923 = vunpack.c.h.b16 %v2596
        %v2924 = vunpack.c.l.b16 %v2597
        %v2925 = vunpack.c.h.b16 %v2597
        %v2926 = vunpack.c.l.b16 %v2598
        %v2927 = vunpack.c.h.b16 %v2598
        %v2928 = vunpack.c.l.b16 %v2599
        %v2929 = vunpack.c.h.b16 %v2599
        %v2930 = vunpack.c.l.b16 %v2600
        %v2931 = vunpack.c.h.b16 %v2600
        %v2932 = vunpack.c.l.b16 %v2601
        %v2933 = vunpack.c.h.b16 %v2601
        %v2934 = vunpack.c.l.b16 %v2602
        %v2935 = vunpack.c.h.b16 %v2602
        %v2936 = vunpack.c.l.b16 %v2603
        %v2937 = vunpack.c.h.b16 %v2603
        %v2938 = vunpack.c.l.b16 %v2604
        %v2939 = vunpack.c.h.b16 %v2604
        %v2940 = vunpack.c.l.b16 %v2605
        %v2941 = vunpack.c.h.b16 %v2605
        %v2942 = vunpack.c.l.b16 %v2606
        %v2943 = vunpack.c.h.b16 %v2606
        %v2944 = vunpack.c.l.b16 %v2607
        %v2945 = vunpack.c.h.b16 %v2607
        %v2946 = vunpack.c.l.b16 %v2608
        %v2947 = vunpack.c.h.b16 %v2608
        %v2948 = vunpack.c.l.b16 %v2609
        %v2949 = vunpack.c.h.b16 %v2609
        %v2950 = vunpack.c.l.b16 %v2610
        %v2951 = vunpack.c.h.b16 %v2610
        %v2952 = vunpack.c.l.b16 %v2611
        %v2953 = vunpack.c.h.b16 %v2611
        %v2954 = vunpack.c.l.b16 %v2612
        %v2955 = vunpack.c.h.b16 %v2612
        %v2956 = vunpack.c.l.b16 %v2613
        %v2957 = vunpack.c.h.b16 %v2613
        %v2958 = vunpack.c.l.b16 %v2614
        %v2959 = vunpack.c.h.b16 %v2614
        %v2960 = vunpack.c.l.b16 %v2615
        %v2961 = vunpack.c.h.b16 %v2615
        %v2962 = vunpack.c.l.b16 %v2616
        %v2963 = vunpack.c.h.b16 %v2616
        %v2964 = vunpack.c.l.b16 %v2617
        %v2965 = vunpack.c.h.b16 %v2617
        %v2966 = vunpack.c.l.b16 %v2618
        %v2967 = vunpack.c.h.b16 %v2618
        %v2968 = vunpack.c.l.b16 %v2619
        %v2969 = vunpack.c.h.b16 %v2619
        %v2970 = vunpack.c.l.b16 %v2620
        %v2971 = vunpack.c.h.b16 %v2620
        %v2972 = vunpack.c.l.b16 %v2621
        %v2973 = vunpack.c.h.b16 %v2621
        %v2974 = vunpack.c.l.b16 %v2622
        %v2975 = vunpack.c.h.b16 %v2622
        %v2976 = vunpack.c.l.b16 %v2623
        %v2977 = vunpack.c.h.b16 %v2623
        %v2978 = vunpack.c.l.b16 %v2624
        %v2979 = vunpack.c.h.b16 %v2624
        %v2980 = vunpack.c.l.b16 %v2625
        %v2981 = vunpack.c.h.b16 %v2625
        %v2982 = vunpack.c.l.b16 %v2626
        %v2983 = vunpack.c.h.b16 %v2626
        %v2984 = vunpack.c.l.b16 %v2627
        %v2985 = vunpack.c.h.b16 %v2627
        %v2986 = vunpack.c.l.b16 %v2628
        %v2987 = vunpack.c.h.b16 %v2628
        %v2988 = vunpack.c.l.b16 %v2629
        %v2989 = vunpack.c.h.b16 %v2629
        %v2990 = vunpack.c.l.b16 %v2630
        %v2991 = vunpack.c.h.b16 %v2630
        %v2992 = vunpack.c.l.b16 %v2631
        %v2993 = vunpack.c.h.b16 %v2631
        %v2994 = vunpack.c.l.b16 %v2632
        %v2995 = vunpack.c.h.b16 %v2632
        %v2996 = vunpack.c.l.b16 %v2633
        %v2997 = vunpack.c.h.b16 %v2633
        %v2998 = vunpack.c.l.b16 %v2634
        %v2999 = vunpack.c.h.b16 %v2634
        %v3000 = vunpack.c.l.b16 %v2635
        %v3001 = vunpack.c.h.b16 %v2635
        %v3002 = vunpack.c.l.b16 %v2636
        %v3003 = vunpack.c.h.b16 %v2636
        %v3004 = vunpack.c.l.b16 %v2637
        %v3005 = vunpack.c.h.b16 %v2637
        %v3006 = vunpack.c.l.b16 %v2638
        %v3007 = vunpack.c.h.b16 %v2638
        %v3008 = vunpack.c.l.b16 %v2639
        %v3009 = vunpack.c.h.b16 %v2639
        %v3010 = vunpack.c.l.b16 %v2640
        %v3011 = vunpack.c.h.b16 %v2640
        %v3012 = vunpack.c.l.b16 %v2641
        %v3013 = vunpack.c.h.b16 %v2641
        %v3014 = vunpack.c.l.b16 %v2642
        %v3015 = vunpack.c.h.b16 %v2642
        %v3016 = vunpack.c.l.b16 %v2643
        %v3017 = vunpack.c.h.b16 %v2643
        %v3018 = vunpack.c.l.b16 %v2644
        %v3019 = vunpack.c.h.b16 %v2644
        %v3020 = vunpack.c.l.b16 %v2645
        %v3021 = vunpack.c.h.b16 %v2645
        %v3022 = vunpack.c.l.b16 %v2646
        %v3023 = vunpack.c.h.b16 %v2646
        %v3024 = vunpack.c.l.b16 %v2647
        %v3025 = vunpack.c.h.b16 %v2647
        %v3026 = vunpack.c.l.b16 %v2648
        %v3027 = vunpack.c.h.b16 %v2648
        %v3028 = vunpack.c.l.b16 %v2649
        %v3029 = vunpack.c.h.b16 %v2649
        %v3030 = vunpack.c.l.b16 %v2650
        %v3031 = vunpack.c.h.b16 %v2650
        %v3032 = vunpack.c.l.b16 %v2651
        %v3033 = vunpack.c.h.b16 %v2651
        %v3034 = vunpack.c.l.b16 %v2652
        %v3035 = vunpack.c.h.b16 %v2652
        %v3036 = vunpack.c.l.b16 %v2653
        %v3037 = vunpack.c.h.b16 %v2653
        %v3038 = vpack.c.b16 %v2784, %v2782
        %v3039 = vpack.c.b16 %v2785, %v2783
        %v3040 = vpack.c.b16 %v2788, %v2786
        %v3041 = vpack.c.b16 %v2789, %v2787
        %v3042 = vpack.c.b16 %v2792, %v2790
        %v3043 = vpack.c.b16 %v2793, %v2791
        %v3044 = vpack.c.b16 %v2796, %v2794
        %v3045 = vpack.c.b16 %v2797, %v2795
        %v3046 = vpack.c.b16 %v2800, %v2798
        %v3047 = vpack.c.b16 %v2801, %v2799
        %v3048 = vpack.c.b16 %v2804, %v2802
        %v3049 = vpack.c.b16 %v2805, %v2803
        %v3050 = vpack.c.b16 %v2808, %v2806
        %v3051 = vpack.c.b16 %v2809, %v2807
        %v3052 = vpack.c.b16 %v2812, %v2810
        %v3053 = vpack.c.b16 %v2813, %v2811
        %v3054 = vpack.c.b16 %v2816, %v2814
        %v3055 = vpack.c.b16 %v2817, %v2815
        %v3056 = vpack.c.b16 %v2820, %v2818
        %v3057 = vpack.c.b16 %v2821, %v2819
        %v3058 = vpack.c.b16 %v2824, %v2822
        %v3059 = vpack.c.b16 %v2825, %v2823
        %v3060 = vpack.c.b16 %v2828, %v2826
        %v3061 = vpack.c.b16 %v2829, %v2827
        %v3062 = vpack.c.b16 %v2832, %v2830
        %v3063 = vpack.c.b16 %v2833, %v2831
        %v3064 = vpack.c.b16 %v2836, %v2834
        %v3065 = vpack.c.b16 %v2837, %v2835
        %v3066 = vpack.c.b16 %v2840, %v2838
        %v3067 = vpack.c.b16 %v2841, %v2839
        %v3068 = vpack.c.b16 %v2844, %v2842
        %v3069 = vpack.c.b16 %v2845, %v2843
        %v3070 = vpack.c.b16 %v2848, %v2846
        %v3071 = vpack.c.b16 %v2849, %v2847
        %v3072 = vpack.c.b16 %v2852, %v2850
        %v3073 = vpack.c.b16 %v2853, %v2851
        %v3074 = vpack.c.b16 %v2856, %v2854
        %v3075 = vpack.c.b16 %v2857, %v2855
        %v3076 = vpack.c.b16 %v2860, %v2858
        %v3077 = vpack.c.b16 %v2861, %v2859
        %v3078 = vpack.c.b16 %v2864, %v2862
        %v3079 = vpack.c.b16 %v2865, %v2863
        %v3080 = vpack.c.b16 %v2868, %v2866
        %v3081 = vpack.c.b16 %v2869, %v2867
        %v3082 = vpack.c.b16 %v2872, %v2870
        %v3083 = vpack.c.b16 %v2873, %v2871
        %v3084 = vpack.c.b16 %v2876, %v2874
        %v3085 = vpack.c.b16 %v2877, %v2875
        %v3086 = vpack.c.b16 %v2880, %v2878
        %v3087 = vpack.c.b16 %v2881, %v2879
        %v3088 = vpack.c.b16 %v2884, %v2882
        %v3089 = vpack.c.b16 %v2885, %v2883
        %v3090 = vpack.c.b16 %v2888, %v2886
        %v3091 = vpack.c.b16 %v2889, %v2887
        %v3092 = vpack.c.b16 %v2892, %v2890
        %v3093 = vpack.c.b16 %v2893, %v2891
        %v3094 = vpack.c.b16 %v2896, %v2894
        %v3095 = vpack.c.b16 %v2897, %v2895
        %v3096 = vpack.c.b16 %v2900, %v2898
        %v3097 = vpack.c.b16 %v2901, %v2899
        %v3098 = vpack.c.b16 %v2904, %v2902
        %v3099 = vpack.c.b16 %v2905, %v2903
        %v3100 = vpack.c.b16 %v2908, %v2906
        %v3101 = vpack.c.b16 %v2909, %v2907
        %v3102 = vpack.c.b16 %v2912, %v2910
        %v3103 = vpack.c.b16 %v2913, %v2911
        %v3104 = vpack.c.b16 %v2916, %v2914
        %v3105 = vpack.c.b16 %v2917, %v2915
        %v3106 = vpack.c.b16 %v2920, %v2918
        %v3107 = vpack.c.b16 %v2921, %v2919
        %v3108 = vpack.c.b16 %v2924, %v2922
        %v3109 = vpack.c.b16 %v2925, %v2923
        %v3110 = vpack.c.b16 %v2928, %v2926
        %v3111 = vpack.c.b16 %v2929, %v2927
        %v3112 = vpack.c.b16 %v2932, %v2930
        %v3113 = vpack.c.b16 %v2933, %v2931
        %v3114 = vpack.c.b16 %v2936, %v2934
        %v3115 = vpack.c.b16 %v2937, %v2935
        %v3116 = vpack.c.b16 %v2940, %v2938
        %v3117 = vpack.c.b16 %v2941, %v2939
        %v3118 = vpack.c.b16 %v2944, %v2942
        %v3119 = vpack.c.b16 %v2945, %v2943
        %v3120 = vpack.c.b16 %v2948, %v2946
        %v3121 = vpack.c.b16 %v2949, %v2947
        %v3122 = vpack.c.b16 %v2952, %v2950
        %v3123 = vpack.c.b16 %v2953, %v2951
        %v3124 = vpack.c.b16 %v2956, %v2954
        %v3125 = vpack.c.b16 %v2957, %v2955
        %v3126 = vpack.c.b16 %v2960, %v2958
        %v3127 = vpack.c.b16 %v2961, %v2959
        %v3128 = vpack.c.b16 %v2964, %v2962
        %v3129 = vpack.c.b16 %v2965, %v2963
        %v3130 = vpack.c.b16 %v2968, %v2966
        %v3131 = vpack.c.b16 %v2969, %v2967
        %v3132 = vpack.c.b16 %v2972, %v2970
        %v3133 = vpack.c.b16 %v2973, %v2971
        %v3134 = vpack.c.b16 %v2976, %v2974
        %v3135 = vpack.c.b16 %v2977, %v2975
        %v3136 = vpack.c.b16 %v2980, %v2978
        %v3137 = vpack.c.b16 %v2981, %v2979
        %v3138 = vpack.c.b16 %v2984, %v2982
        %v3139 = vpack.c.b16 %v2985, %v2983
        %v3140 = vpack.c.b16 %v2988, %v2986
        %v3141 = vpack.c.b16 %v2989, %v2987
        %v3142 = vpack.c.b16 %v2992, %v2990
        %v3143 = vpack.c.b16 %v2993, %v2991
        %v3144 = vpack.c.b16 %v2996, %v2994
        %v3145 = vpack.c.b16 %v2997, %v2995
        %v3146 = vpack.c.b16 %v3000, %v2998
        %v3147 = vpack.c.b16 %v3001, %v2999
        %v3148 = vpack.c.b16 %v3004, %v3002
        %v3149 = vpack.c.b16 %v3005, %v3003
        %v3150 = vpack.c.b16 %v3008, %v3006
        %v3151 = vpack.c.b16 %v3009, %v3007
        %v3152 = vpack.c.b16 %v3012, %v3010
        %v3153 = vpack.c.b16 %v3013, %v3011
        %v3154 = vpack.c.b16 %v3016, %v3014
        %v3155 = vpack.c.b16 %v3017, %v3015
        %v3156 = vpack.c.b16 %v3020, %v3018
        %v3157 = vpack.c.b16 %v3021, %v3019
        %v3158 = vpack.c.b16 %v3024, %v3022
        %v3159 = vpack.c.b16 %v3025, %v3023
        %v3160 = vpack.c.b16 %v3028, %v3026
        %v3161 = vpack.c.b16 %v3029, %v3027
        %v3162 = vpack.c.b16 %v3032, %v3030
        %v3163 = vpack.c.b16 %v3033, %v3031
        %v3164 = vpack.c.b16 %v3036, %v3034
        %v3165 = vpack.c.b16 %v3037, %v3035
        %3294 = vmatprep.subr.bf16.mxu0 %v3053
        %3295 = vmatpush1.bf16.msra.mxu0 %v3052
        %3296 = vmatprep.subr.bf16.mxu0 %v3051
        %3297 = vmatpush1.bf16.msra.mxu0 %v3050
        %3298 = vmatprep.subr.bf16.mxu0 %v3049
        %3299 = vmatpush1.bf16.msra.mxu0 %v3048
        %3300 = vmatprep.subr.bf16.mxu0 %v3047
        %3301 = vmatpush1.bf16.msra.mxu0 %v3046
        %3302 = vmatprep.subr.bf16.mxu0 %v3045
        %3303 = vmatpush1.bf16.msra.mxu0 %v3044
        %3304 = vmatprep.subr.bf16.mxu0 %v3043
        %3305 = vmatpush1.bf16.msra.mxu0 %v3042
        %3306 = vmatprep.subr.bf16.mxu0 %v3041
        %3307 = vmatpush1.bf16.msra.mxu0 %v3040
        %3308 = vmatprep.subr.bf16.mxu0 %v3039
        %3309 = vmatpush1.bf16.msra.mxu0 %v3038
        %3310 = vmatprep.subr.bf16.mxu0 %v3069
        %3311 = vmatpush2.bf16.msra.mxu0 %v3068
        %3312 = vmatprep.subr.bf16.mxu0 %v3067
        %3313 = vmatpush2.bf16.msra.mxu0 %v3066
        %3314 = vmatprep.subr.bf16.mxu0 %v3065
        %3315 = vmatpush2.bf16.msra.mxu0 %v3064
        %3316 = vmatprep.subr.bf16.mxu0 %v3063
        %3317 = vmatpush2.bf16.msra.mxu0 %v3062
        %3318 = vmatprep.subr.bf16.mxu0 %v3061
        %3319 = vmatpush2.bf16.msra.mxu0 %v3060
        %3320 = vmatprep.subr.bf16.mxu0 %v3059
        %3321 = vmatpush2.bf16.msra.mxu0 %v3058
        %3322 = vmatprep.subr.bf16.mxu0 %v3057
        %3323 = vmatpush2.bf16.msra.mxu0 %v3056
        %3324 = vmatprep.subr.bf16.mxu0 %v3055
        %3325 = vmatpush2.bf16.msra.mxu0 %v3054
        %3326 = vmatprep.mubr.bf16.mxu0 %v2519
        %3327 = vmatmul.mubr.bf16.gmra.mxu0 %v2518
        %v3328 = vpop.f32.mrf.mxu0
        %v3329 = vadd.f32 0.0, %v3328
        %v3330 = vpop.f32.mrf.mxu0
        %v3331 = vadd.f32 0.0, %v3330
        %v3332 = vpop.f32.mrf.mxu0
        %v3333 = vpop.f32.mrf.mxu0
        %3334 = vdwg.mxu0
        %3335 = vmatprep.subr.bf16.mxu0 %v3085
        %3336 = vmatpush1.bf16.msra.mxu0 %v3084
        %3337 = vmatprep.subr.bf16.mxu0 %v3083
        %3338 = vmatpush1.bf16.msra.mxu0 %v3082
        %3339 = vmatprep.subr.bf16.mxu0 %v3081
        %3340 = vmatpush1.bf16.msra.mxu0 %v3080
        %3341 = vmatprep.subr.bf16.mxu0 %v3079
        %3342 = vmatpush1.bf16.msra.mxu0 %v3078
        %3343 = vmatprep.subr.bf16.mxu0 %v3077
        %3344 = vmatpush1.bf16.msra.mxu0 %v3076
        %3345 = vmatprep.subr.bf16.mxu0 %v3075
        %3346 = vmatpush1.bf16.msra.mxu0 %v3074
        %3347 = vmatprep.subr.bf16.mxu0 %v3073
        %3348 = vmatpush1.bf16.msra.mxu0 %v3072
        %3349 = vmatprep.subr.bf16.mxu0 %v3071
        %3350 = vmatpush1.bf16.msra.mxu0 %v3070
        %3351 = vmatprep.subr.bf16.mxu0 %v3101
        %3352 = vmatpush2.bf16.msra.mxu0 %v3100
        %3353 = vmatprep.subr.bf16.mxu0 %v3099
        %3354 = vmatpush2.bf16.msra.mxu0 %v3098
        %3355 = vmatprep.subr.bf16.mxu0 %v3097
        %3356 = vmatpush2.bf16.msra.mxu0 %v3096
        %3357 = vmatprep.subr.bf16.mxu0 %v3095
        %3358 = vmatpush2.bf16.msra.mxu0 %v3094
        %3359 = vmatprep.subr.bf16.mxu0 %v3093
        %3360 = vmatpush2.bf16.msra.mxu0 %v3092
        %3361 = vmatprep.subr.bf16.mxu0 %v3091
        %3362 = vmatpush2.bf16.msra.mxu0 %v3090
        %3363 = vmatprep.subr.bf16.mxu0 %v3089
        %3364 = vmatpush2.bf16.msra.mxu0 %v3088
        %3365 = vmatprep.subr.bf16.mxu0 %v3087
        %3366 = vmatpush2.bf16.msra.mxu0 %v3086
        %3367 = vmatprep.mubr.bf16.mxu0 %v2521
        %3368 = vmatmul.mubr.bf16.gmra.mxu0 %v2520
        %v3369 = vpop.f32.mrf.mxu0
        %v3370 = vadd.f32 %v3329, %v3369
        %v3371 = vpop.f32.mrf.mxu0
        %v3372 = vadd.f32 %v3331, %v3371
        %v3373 = vpop.f32.mrf.mxu0
        %v3374 = vpop.f32.mrf.mxu0
        %3375 = vdwg.mxu0
        %3376 = vmatprep.subr.bf16.mxu0 %v3117
        %3377 = vmatpush1.bf16.msra.mxu0 %v3116
        %3378 = vmatprep.subr.bf16.mxu0 %v3115
        %3379 = vmatpush1.bf16.msra.mxu0 %v3114
        %3380 = vmatprep.subr.bf16.mxu0 %v3113
        %3381 = vmatpush1.bf16.msra.mxu0 %v3112
        %3382 = vmatprep.subr.bf16.mxu0 %v3111
        %3383 = vmatpush1.bf16.msra.mxu0 %v3110
        %3384 = vmatprep.subr.bf16.mxu0 %v3109
        %3385 = vmatpush1.bf16.msra.mxu0 %v3108
        %3386 = vmatprep.subr.bf16.mxu0 %v3107
        %3387 = vmatpush1.bf16.msra.mxu0 %v3106
        %3388 = vmatprep.subr.bf16.mxu0 %v3105
        %3389 = vmatpush1.bf16.msra.mxu0 %v3104
        %3390 = vmatprep.subr.bf16.mxu0 %v3103
        %3391 = vmatpush1.bf16.msra.mxu0 %v3102
        %3392 = vmatprep.subr.bf16.mxu0 %v3133
        %3393 = vmatpush2.bf16.msra.mxu0 %v3132
        %3394 = vmatprep.subr.bf16.mxu0 %v3131
        %3395 = vmatpush2.bf16.msra.mxu0 %v3130
        %3396 = vmatprep.subr.bf16.mxu0 %v3129
        %3397 = vmatpush2.bf16.msra.mxu0 %v3128
        %3398 = vmatprep.subr.bf16.mxu0 %v3127
        %3399 = vmatpush2.bf16.msra.mxu0 %v3126
        %3400 = vmatprep.subr.bf16.mxu0 %v3125
        %3401 = vmatpush2.bf16.msra.mxu0 %v3124
        %3402 = vmatprep.subr.bf16.mxu0 %v3123
        %3403 = vmatpush2.bf16.msra.mxu0 %v3122
        %3404 = vmatprep.subr.bf16.mxu0 %v3121
        %3405 = vmatpush2.bf16.msra.mxu0 %v3120
        %3406 = vmatprep.subr.bf16.mxu0 %v3119
        %3407 = vmatpush2.bf16.msra.mxu0 %v3118
        %3408 = vmatprep.mubr.bf16.mxu0 %v2523
        %3409 = vmatmul.mubr.bf16.gmra.mxu0 %v2522
        %v3410 = vpop.f32.mrf.mxu0
        %v3411 = vadd.f32 %v3370, %v3410
        %v3412 = vpop.f32.mrf.mxu0
        %v3413 = vadd.f32 %v3372, %v3412
        %v3414 = vpop.f32.mrf.mxu0
        %v3415 = vpop.f32.mrf.mxu0
        %3416 = vdwg.mxu0
        %3417 = vmatprep.subr.bf16.mxu0 %v3149
        %3418 = vmatpush1.bf16.msra.mxu0 %v3148
        %3419 = vmatprep.subr.bf16.mxu0 %v3147
        %3420 = vmatpush1.bf16.msra.mxu0 %v3146
        %3421 = vmatprep.subr.bf16.mxu0 %v3145
        %3422 = vmatpush1.bf16.msra.mxu0 %v3144
        %3423 = vmatprep.subr.bf16.mxu0 %v3143
        %3424 = vmatpush1.bf16.msra.mxu0 %v3142
        %3425 = vmatprep.subr.bf16.mxu0 %v3141
        %3426 = vmatpush1.bf16.msra.mxu0 %v3140
        %3427 = vmatprep.subr.bf16.mxu0 %v3139
        %3428 = vmatpush1.bf16.msra.mxu0 %v3138
        %3429 = vmatprep.subr.bf16.mxu0 %v3137
        %3430 = vmatpush1.bf16.msra.mxu0 %v3136
        %3431 = vmatprep.subr.bf16.mxu0 %v3135
        %3432 = vmatpush1.bf16.msra.mxu0 %v3134
        %3433 = vmatprep.subr.bf16.mxu0 %v3165
        %3434 = vmatpush2.bf16.msra.mxu0 %v3164
        %3435 = vmatprep.subr.bf16.mxu0 %v3163
        %3436 = vmatpush2.bf16.msra.mxu0 %v3162
        %3437 = vmatprep.subr.bf16.mxu0 %v3161
        %3438 = vmatpush2.bf16.msra.mxu0 %v3160
        %3439 = vmatprep.subr.bf16.mxu0 %v3159
        %3440 = vmatpush2.bf16.msra.mxu0 %v3158
        %3441 = vmatprep.subr.bf16.mxu0 %v3157
        %3442 = vmatpush2.bf16.msra.mxu0 %v3156
        %3443 = vmatprep.subr.bf16.mxu0 %v3155
        %3444 = vmatpush2.bf16.msra.mxu0 %v3154
        %3445 = vmatprep.subr.bf16.mxu0 %v3153
        %3446 = vmatpush2.bf16.msra.mxu0 %v3152
        %3447 = vmatprep.subr.bf16.mxu0 %v3151
        %3448 = vmatpush2.bf16.msra.mxu0 %v3150
        %3449 = vmatprep.mubr.bf16.mxu0 %v2525
        %3450 = vmatmul.mubr.bf16.gmra.mxu0 %v2524
        %v3451 = vpop.f32.mrf.mxu0
        %v3452 = vadd.f32 %v3411, %v3451
        %v3453 = vpop.f32.mrf.mxu0
        %v3454 = vadd.f32 %v3413, %v3453
        %v3455 = vpop.f32.mrf.mxu0
        %v3456 = vpop.f32.mrf.mxu0
        %3457 = vdwg.mxu0
        %v3474 = vunpack.c.l.b16 %v2502
        %v3475 = vunpack.c.h.b16 %v2502
        %v3476 = vunpack.c.l.b16 %v2503
        %v3477 = vunpack.c.h.b16 %v2503
        %v3478 = vunpack.c.l.b16 %v2504
        %v3479 = vunpack.c.h.b16 %v2504
        %v3480 = vunpack.c.l.b16 %v2505
        %v3481 = vunpack.c.h.b16 %v2505
        %v3482 = vunpack.c.l.b16 %v2506
        %v3483 = vunpack.c.h.b16 %v2506
        %v3484 = vunpack.c.l.b16 %v2507
        %v3485 = vunpack.c.h.b16 %v2507
        %v3486 = vunpack.c.l.b16 %v2508
        %v3487 = vunpack.c.h.b16 %v2508
        %v3488 = vunpack.c.l.b16 %v2509
        %v3489 = vunpack.c.h.b16 %v2509
        %v3490 = vunpack.c.l.b16 %v2510
        %v3491 = vunpack.c.h.b16 %v2510
        %v3492 = vunpack.c.l.b16 %v2511
        %v3493 = vunpack.c.h.b16 %v2511
        %v3494 = vunpack.c.l.b16 %v2512
        %v3495 = vunpack.c.h.b16 %v2512
        %v3496 = vunpack.c.l.b16 %v2513
        %v3497 = vunpack.c.h.b16 %v2513
        %v3498 = vunpack.c.l.b16 %v2514
        %v3499 = vunpack.c.h.b16 %v2514
        %v3500 = vunpack.c.l.b16 %v2515
        %v3501 = vunpack.c.h.b16 %v2515
        %v3502 = vunpack.c.l.b16 %v2516
        %v3503 = vunpack.c.h.b16 %v2516
        %v3504 = vunpack.c.l.b16 %v2517
        %v3505 = vunpack.c.h.b16 %v2517
        %v3506 = vpack.c.b16 %v3476, %v3474
        %v3507 = vpack.c.b16 %v3477, %v3475
        %v3508 = vpack.c.b16 %v3480, %v3478
        %v3509 = vpack.c.b16 %v3481, %v3479
        %v3510 = vpack.c.b16 %v3484, %v3482
        %v3511 = vpack.c.b16 %v3485, %v3483
        %v3512 = vpack.c.b16 %v3488, %v3486
        %v3513 = vpack.c.b16 %v3489, %v3487
        %v3514 = vpack.c.b16 %v3492, %v3490
        %v3515 = vpack.c.b16 %v3493, %v3491
        %v3516 = vpack.c.b16 %v3496, %v3494
        %v3517 = vpack.c.b16 %v3497, %v3495
        %v3518 = vpack.c.b16 %v3500, %v3498
        %v3519 = vpack.c.b16 %v3501, %v3499
        %v3520 = vpack.c.b16 %v3504, %v3502
        %v3521 = vpack.c.b16 %v3505, %v3503
        %3538 = vmatprep.subr.bf16.mxu0 %v3521
        %3539 = vmatpush1.bf16.msra.mxu0 %v3520
        %3540 = vmatprep.subr.bf16.mxu0 %v3519
        %3541 = vmatpush1.bf16.msra.mxu0 %v3518
        %3542 = vmatprep.subr.bf16.mxu0 %v3517
        %3543 = vmatpush1.bf16.msra.mxu0 %v3516
        %3544 = vmatprep.subr.bf16.mxu0 %v3515
        %3545 = vmatpush1.bf16.msra.mxu0 %v3514
        %3546 = vmatprep.subr.bf16.mxu0 %v3513
        %3547 = vmatpush1.bf16.msra.mxu0 %v3512
        %3548 = vmatprep.subr.bf16.mxu0 %v3511
        %3549 = vmatpush1.bf16.msra.mxu0 %v3510
        %3550 = vmatprep.subr.bf16.mxu0 %v3509
        %3551 = vmatpush1.bf16.msra.mxu0 %v3508
        %3552 = vmatprep.subr.bf16.mxu0 %v3507
        %3553 = vmatpush1.bf16.msra.mxu0 %v3506
        %3554 = vmatprep.subr.bf16.mxu0 0
        %3555 = vmatpush2.bf16.msra.mxu0 0
        %3556 = vmatprep.subr.bf16.mxu0 0
        %3557 = vmatpush2.bf16.msra.mxu0 0
        %3558 = vmatprep.subr.bf16.mxu0 0
        %3559 = vmatpush2.bf16.msra.mxu0 0
        %3560 = vmatprep.subr.bf16.mxu0 0
        %3561 = vmatpush2.bf16.msra.mxu0 0
        %3562 = vmatprep.subr.bf16.mxu0 0
        %3563 = vmatpush2.bf16.msra.mxu0 0
        %3564 = vmatprep.subr.bf16.mxu0 0
        %3565 = vmatpush2.bf16.msra.mxu0 0
        %3566 = vmatprep.subr.bf16.mxu0 0
        %3567 = vmatpush2.bf16.msra.mxu0 0
        %3568 = vmatprep.subr.bf16.mxu0 0
        %3569 = vmatpush2.bf16.msra.mxu0 0
        %3570 = vmatprep.mubr.bf16.mxu0 0
        %3571 = vmatmul.mubr.bf16.gmra.mxu0 %v2501
        %v3572 = vpop.f32.mrf.mxu0
        %v3573 = vadd.f32 %v3452, %v3572
        %v3574 = vpop.f32.mrf.mxu0
        %v3575 = vadd.f32 %v3454, %v3574
        %v3576 = vpop.f32.mrf.mxu0
        %v3577 = vpop.f32.mrf.mxu0
        %3578 = vdwg.mxu0
        %v3579 = vld [vmem:[%s8] sm:$0x3]
        %v3581 = vlaneseq
        %v3582 = vshrl.u32 %v3581, 7
        %v3583 = vsub.s32 0, %v3582
        %v3584 = vrot.slane %v3579, %v3583
        %v3585 = vlaneseq
        %v3586 = vshrl.u32 %v3585, 7
        %v3587 = vsub.s32 1, %v3586
        %v3588 = vrot.slane %v3579, %v3587
        %v3591 = vadd.f32 %v3573, %v3584
        %v3592 = vadd.f32 %v3575, %v3588
        %v3593 = vmax.f32 %v3591, 0.0
        %v3594 = vmax.f32 %v3592, 0.0
        %v3595 = vld [vmem:[%s9] sm:$0x3]
        %v3597 = vlaneseq
        %v3598 = vshrl.u32 %v3597, 7
        %v3599 = vsub.s32 0, %v3598
        %v3600 = vrot.slane %v3595, %v3599
        %v3601 = vlaneseq
        %v3602 = vshrl.u32 %v3601, 7
        %v3603 = vsub.s32 1, %v3602
        %v3604 = vrot.slane %v3595, %v3603
        %v3607 = vmul.f32 %v3593, %v3600
        %v3608 = vmul.f32 %v3594, %v3604
        %v3609 = vadd.f32 %v3607, %v3608
        %3610 = vadd.xlane.f32.xlu0 %v3609
        %v3611 = vpop.xlane.xlu0 %3610
        %v3612 = vld [vmem:[#allocation3] sm:$0x1]
        %v3614 = vlaneseq
        %v3615 = vshrl.u32 %v3614, 7
        %v3616 = vsub.s32 0, %v3615
        %v3617 = vrot.slane %v3612, %v3616
        %v3619 = vadd.f32 %v3611, %v3617
        %vm3620 = vcmask 7168
        %3621 = vst.msk [vmem:[%s11] sm:$0xff] %vm3620, %v3619
      $region72: #{multi_model_forward.1} parent=63 // pred_fallthru
        _
      // Predicated region
      $region73: #{multi_model_forward.1} parent=63 // pred_check
        %p3622 = pneg %p278
      $region74: #{multi_model_forward.1} parent=63 // pred_check_branch
        %3624 = sbr.rel (%p3622) target = $region76
      $region75: #{multi_model_forward.1} parent=63 // pred_region
        _
      $region76: #{multi_model_forward.1} parent=63 // pred_fallthru
        _
      // Predicated region
      $region77: #{multi_model_forward.1} parent=63 // pred_check
        %p3625 = pneg %p278
      $region78: #{multi_model_forward.1} parent=63 // pred_check_branch
        %3627 = sbr.rel (%p3625) target = $region80
      $region79: #{multi_model_forward.1} parent=63 // pred_region
        _
      $region80: #{multi_model_forward.1} parent=63 // pred_fallthru
        _
    $region64: #{multi_model_forward.1} parent=5 // pred_fallthru
      _
    %p3628 = scmp.le.s32.totalorder 2, %s19
    // Predicated region
    $region81: #{multi_model_forward.1} parent=5 // pred_check
      %p3629 = pneg %p3628
    $region82: #{multi_model_forward.1} parent=5 // pred_check_branch
      %3631 = sbr.rel (%p3629) target = $region84
    $region83: #{multi_model_forward.1} parent=5 // pred_region
      %s3632 = ssub.s32 %s19, 2
    $region84: #{multi_model_forward.1} parent=5 // pred_fallthru
      _
  $region6: #{multi_model_forward.1} parent=0 // loop_footer
    %s23 = sadd.s32 1, %s19
  $region7: #{multi_model_forward.1} parent=0 // loop_footer_branch
    %18 = sbr.rel target = $region3
  $region8: #{multi_model_forward.1} parent=0 // loop_exit
    _

</llo_original>
